<compile_context>
chip_gen: v5e
topology: v5e:2x2
jax: 0.10.0
libtpu: 0.0.40
codegen_flags: <defaults>
</compile_context>

<pallas_src>
import functools
import math

import jax
import jax.numpy as jnp
from jax.experimental import pallas as pl
from jax.experimental.pallas import tpu as pltpu

BN_EPS = 1e-5
_ALIGN = 128            # lane / feature alignment
_NODE_ALIGN = 512       # node-dim padding (matches preferred M/K tiles)
_TM, _TN, _TK = 512, 256, 2048   # preferred tile sizes (clipped to padded dims)
_FUSE_FIN_MAX = 256     # fuse linear into prop kernel when F_in_pad <= this

_COMPILER_PARAMS = pltpu.CompilerParams(
    dimension_semantics=("parallel", "parallel", "arbitrary"),
    vmem_limit_bytes=32 * 1024 * 1024)


# ----------------------------------------------------------------------------
# Kernels
# ----------------------------------------------------------------------------
def _masked_log_softmax(acc, n_valid):
    """Numerically-stable log_softmax over the first n_valid lanes (rest -> 0)."""
    mask = jax.lax.broadcasted_iota(jnp.int32, acc.shape, 1) < n_valid
    masked = jnp.where(mask, acc, -1e30)            # Python float: no captured const
    m = jnp.max(masked, axis=-1, keepdims=True)
    shifted = masked - m
    lse = jnp.log(jnp.sum(jnp.exp(shifted), axis=-1, keepdims=True))
    return jnp.where(mask, shifted - lse, 0.0)


def _fused_layer_kernel(p_ref, x_ref, w_ref, b_ref, o_ref, acc_ref, *,
                        epilogue, n_valid):
    """o = epilogue(prop @ (x @ W + b)); W/b resident, h recomputed per K-tile."""
    k = pl.program_id(2)

    @pl.when(k == 0)
    def _():
        acc_ref[...] = jnp.zeros_like(acc_ref)

    # h K-tile: (tk, tn) = x_tile @ W + b  (f32 accum on MXU, then bf16 for prop)
    h = jnp.dot(x_ref[...], w_ref[...],
                preferred_element_type=jnp.float32) + b_ref[...]
    acc_ref[...] += jnp.dot(p_ref[...], h.astype(p_ref.dtype),
                            preferred_element_type=jnp.float32)

    @pl.when(k == pl.num_programs(2) - 1)
    def _():
        acc = acc_ref[...]
        if epilogue == "relu":
            o_ref[...] = jnp.maximum(acc, 0.0).astype(o_ref.dtype)
        else:
            o_ref[...] = _masked_log_softmax(acc, n_valid).astype(o_ref.dtype)


def _linear_kernel(x_ref, w_ref, b_ref, o_ref, acc_ref):
    """o = x @ W + b, tiled over (M, N, K); bias applied on last k step."""
    k = pl.program_id(2)

    @pl.when(k == 0)
    def _():
        acc_ref[...] = jnp.zeros_like(acc_ref)

    acc_ref[...] += jnp.dot(x_ref[...], w_ref[...],
                            preferred_element_type=jnp.float32)

    @pl.when(k == pl.num_programs(2) - 1)
    def _():
        o_ref[...] = (acc_ref[...] + b_ref[...]).astype(o_ref.dtype)


def _prop_kernel(p_ref, h_ref, o_ref, acc_ref, *, epilogue, n_valid):
    """o = epilogue(prop @ h).  epilogue in {"relu", "log_softmax"}."""
    k = pl.program_id(2)

    @pl.when(k == 0)
    def _():
        acc_ref[...] = jnp.zeros_like(acc_ref)

    acc_ref[...] += jnp.dot(p_ref[...], h_ref[...],
                            preferred_element_type=jnp.float32)

    @pl.when(k == pl.num_programs(2) - 1)
    def _():
        acc = acc_ref[...]
        if epilogue == "relu":
            o_ref[...] = jnp.maximum(acc, 0.0).astype(o_ref.dtype)
        else:
            o_ref[...] = _masked_log_softmax(acc, n_valid).astype(o_ref.dtype)


# ----------------------------------------------------------------------------
# Tile-size / padding helpers
# ----------------------------------------------------------------------------
def _round_up(v, m=_ALIGN):
    return ((v + m - 1) // m) * m


def _pad2(a, rows, cols):
    return jnp.pad(a, ((0, rows - a.shape[0]), (0, cols - a.shape[1])))


def _pick_tile(dim, pref, min_grid=1):
    """Largest multiple of 128 dividing `dim`, <= pref; prefer >= min_grid blocks."""
    divisors = [t for t in range(_ALIGN, min(dim, pref) + 1, _ALIGN)
                if dim % t == 0]
    if not divisors:
        return dim
    ok = [t for t in divisors if dim // t >= min_grid]
    return max(ok) if ok else max(divisors)


def _fold_bn(w, b, bn):
    """Fold eval-mode BatchNorm1d into the preceding Linear."""
    scale = bn["gamma"] * jax.lax.rsqrt(bn["var"] + BN_EPS)      # (1, H)
    return w * scale, (b - bn["mean"]) * scale + bn["beta"]


# ----------------------------------------------------------------------------
# pallas_call wrappers
# ----------------------------------------------------------------------------
def _fused_layer(prop_p, x_p, w_p, b_p, *, epilogue, n_valid=0,
                 out_dtype=jnp.bfloat16):
    """epilogue(prop @ (x @ W + b)) with W/b resident in VMEM."""
    M, K = prop_p.shape                       # M == K == n_pad
    fi_pad = x_p.shape[1]
    fo_pad = w_p.shape[1]
    tm = _pick_tile(M, _TM, min_grid=2)       # keep both v7x TCs busy
    tk = _pick_tile(K, _TK)
    tn = fo_pad if epilogue == "log_softmax" else _pick_tile(fo_pad, _TN)
    grid = (M // tm, fo_pad // tn, K // tk)
    kernel = functools.partial(_fused_layer_kernel, epilogue=epilogue,
                               n_valid=n_valid)
    return pl.pallas_call(
        kernel,
        out_shape=jax.ShapeDtypeStruct((M, fo_pad), out_dtype),
        grid=grid,
        in_specs=[
            pl.BlockSpec((tm, tk), lambda i, j, k: (i, k)),       # prop
            pl.BlockSpec((tk, fi_pad), lambda i, j, k: (k, 0)),   # x
            pl.BlockSpec((fi_pad, tn), lambda i, j, k: (0, j)),   # W (resident)
            pl.BlockSpec((1, tn), lambda i, j, k: (0, j)),        # b (resident)
        ],
        out_specs=pl.BlockSpec((tm, tn), lambda i, j, k: (i, j)),
        scratch_shapes=[pltpu.VMEM((tm, tn), jnp.float32)],
        compiler_params=_COMPILER_PARAMS,
        cost_estimate=pl.CostEstimate(
            flops=2 * M * K * fo_pad + 2 * grid[0] * grid[1] * K * fi_pad * tn,
            transcendentals=M * fo_pad if epilogue == "log_softmax" else 0,
            bytes_accessed=M * K * 2 + grid[0] * K * fi_pad * 2
            + fi_pad * fo_pad * 2 + M * fo_pad * jnp.dtype(out_dtype).itemsize),
    )(prop_p, x_p, w_p, b_p)


def _tiled_linear(x, w, b, *, out_dtype=jnp.bfloat16):
    M, K = x.shape
    _, N = w.shape
    tm = _pick_tile(M, _TM, min_grid=2)
    tn = _pick_tile(N, _TN)
    tk = _pick_tile(K, _TK)
    grid = (M // tm, N // tn, K // tk)
    return pl.pallas_call(
        _linear_kernel,
        out_shape=jax.ShapeDtypeStruct((M, N), out_dtype),
        grid=grid,
        in_specs=[
            pl.BlockSpec((tm, tk), lambda i, j, k: (i, k)),
            pl.BlockSpec((tk, tn), lambda i, j, k: (k, j)),
            pl.BlockSpec((1, tn), lambda i, j, k: (0, j)),
        ],
        out_specs=pl.BlockSpec((tm, tn), lambda i, j, k: (i, j)),
        scratch_shapes=[pltpu.VMEM((tm, tn), jnp.float32)],
        compiler_params=_COMPILER_PARAMS,
        cost_estimate=pl.CostEstimate(
            flops=2 * M * N * K,
            transcendentals=0,
            bytes_accessed=M * K * 2 + K * N * 2 + N * 4
            + M * N * jnp.dtype(out_dtype).itemsize),
    )(x, w, b)


def _tiled_prop(prop, h, *, epilogue, n_valid=0, out_dtype=jnp.bfloat16):
    M, K = prop.shape
    _, N = h.shape
    tm = _pick_tile(M, _TM, min_grid=2)
    tk = _pick_tile(K, _TK)
    tn = N if epilogue == "log_softmax" else _pick_tile(N, _TN)
    grid = (M // tm, N // tn, K // tk)
    kernel = functools.partial(_prop_kernel, epilogue=epilogue, n_valid=n_valid)
    return pl.pallas_call(
        kernel,
        out_shape=jax.ShapeDtypeStruct((M, N), out_dtype),
        grid=grid,
        in_specs=[
            pl.BlockSpec((tm, tk), lambda i, j, k: (i, k)),
            pl.BlockSpec((tk, tn), lambda i, j, k: (k, j)),
        ],
        out_specs=pl.BlockSpec((tm, tn), lambda i, j, k: (i, j)),
        scratch_shapes=[pltpu.VMEM((tm, tn), jnp.float32)],
        compiler_params=_COMPILER_PARAMS,
        cost_estimate=pl.CostEstimate(
            flops=2 * M * N * K,
            transcendentals=M * N if epilogue == "log_softmax" else 0,
            bytes_accessed=M * K * 2 + K * N * 2
            + M * N * jnp.dtype(out_dtype).itemsize),
    )(prop, h)


# ----------------------------------------------------------------------------
# Parameter construction (shapes follow GCN1.__init__; weights pre-transposed)
# ----------------------------------------------------------------------------
def init_gcn1_params(key, in_channels, hidden_channels, out_channels, num_layers):
    dims = [in_channels] + [hidden_channels] * (num_layers - 1) + [out_channels]
    params = {"lins": [], "bns": []}
    for i in range(num_layers):
        key, kw, kb = jax.random.split(key, 3)
        bound = 1.0 / math.sqrt(dims[i])
        w = jax.random.uniform(kw, (dims[i], dims[i + 1]), jnp.float32,
                               minval=-bound, maxval=bound)
        b = jax.random.uniform(kb, (1, dims[i + 1]), jnp.float32,
                               minval=-bound, maxval=bound)
        params["lins"].append((w, b))
    for _ in range(num_layers - 1):
        key, kg, kbt, km, kv = jax.random.split(key, 5)
        h = hidden_channels
        params["bns"].append(dict(
            gamma=jax.random.uniform(kg, (1, h), jnp.float32, minval=0.5, maxval=1.5),
            beta=0.1 * jax.random.normal(kbt, (1, h), jnp.float32),
            mean=0.1 * jax.random.normal(km, (1, h), jnp.float32),
            var=jax.random.uniform(kv, (1, h), jnp.float32, minval=0.5, maxval=1.5),
        ))
    return params


# ----------------------------------------------------------------------------
# Forward pass (glue in plain JAX, hot path in Pallas)
# ----------------------------------------------------------------------------
def prepare_prop(prop, node_align=_NODE_ALIGN):
    """One-time: cast prop to bf16 BEFORE padding, pad node dim to node_align."""
    n = prop.shape[0]
    n_pad = _round_up(n, node_align)
    return _pad2(prop.astype(jnp.bfloat16), n_pad, n_pad)


@functools.partial(jax.jit, static_argnames=("batch_norm",))
def gcn1_forward(params, x, prop_p, batch_norm=True):
    """prop_p: output of prepare_prop (bf16, padded).  Returns (n, out_ch) f32."""
    n = x.shape[0]
    n_pad = prop_p.shape[0]
    out_ch = params["lins"][-1][0].shape[1]

    # dropout in eval mode is identity
    x_p = _pad2(x.astype(jnp.bfloat16), n_pad, _round_up(x.shape[1]))

    num_layers = len(params["lins"])
    for i, (w, b) in enumerate(params["lins"]):
        is_last = (i == num_layers - 1)
        if (not is_last) and batch_norm:
            w, b = _fold_bn(w, b, params["bns"][i])
        fi, fo = w.shape
        fi_pad, fo_pad = _round_up(fi), _round_up(fo)
        w_p = _pad2(w, fi_pad, fo_pad).astype(jnp.bfloat16)
        b_p = _pad2(b, 1, fo_pad).astype(jnp.float32)

        epilogue = "log_softmax" if is_last else "relu"
        n_valid = fo if is_last else 0
        out_dtype = jnp.float32 if is_last else jnp.bfloat16

        if fi_pad <= _FUSE_FIN_MAX:
            # Fused: keep W'/b' resident; h never touches HBM.
            x_p = _fused_layer(prop_p, x_p, w_p, b_p, epilogue=epilogue,
                               n_valid=n_valid, out_dtype=out_dtype)
        else:
            # Wide input features: separate linear, then prop (with fused epilogue).
            h = _tiled_linear(x_p, w_p, b_p, out_dtype=jnp.bfloat16)
            x_p = _tiled_prop(prop_p, h, epilogue=epilogue, n_valid=n_valid,
                              out_dtype=out_dtype)

    return x_p[:n, :out_ch]


# Pure-JAX (f32) reference for sanity checking.
def gcn1_forward_ref(params, x, prop, batch_norm=True):
    for i, (w, b) in enumerate(params["lins"][:-1]):
        h = x @ w + b
        if batch_norm:
            bn = params["bns"][i]
            h = (h - bn["mean"]) / jnp.sqrt(bn["var"] + BN_EPS) * bn["gamma"] + bn["beta"]
        h = prop @ h
        x = jnp.maximum(h, 0.0)
    w, b = params["lins"][-1]
    h = prop @ (x @ w + b)
    return jax.nn.log_softmax(h, axis=-1)


if __name__ == "__main__":
    # small shapes consistent with the module's forward
    N = 16               # number of graph nodes
    IN_CH = 32
    HID_CH = 32
    OUT_CH = 8
    NUM_LAYERS = 3

    key = jax.random.PRNGKey(0)
    key, kx, kp = jax.random.split(key, 3)

    x = jax.random.normal(kx, (N, IN_CH), jnp.float32)
    # symmetric row-normalized-ish dense propagation matrix
    a = jax.random.uniform(kp, (N, N), jnp.float32)
    a = 0.5 * (a + a.T) + jnp.eye(N, dtype=jnp.float32)
    prop = a / jnp.sum(a, axis=-1, keepdims=True)

    params = init_gcn1_params(key, IN_CH, HID_CH, OUT_CH, NUM_LAYERS)

    # hoisted, one-time: pad + bf16-cast prop outside the per-call forward
    prop_p = prepare_prop(prop)

    out = gcn1_forward(params, x, prop_p, batch_norm=True)
    out = jax.block_until_ready(out)

    ref = gcn1_forward_ref(params, x, prop, batch_norm=True)
    assert out.shape == (N, OUT_CH)
    # bf16 MXU inputs + folded BN -> loosen tolerance vs f32 reference
    assert jnp.allclose(out, ref, atol=5e-2, rtol=5e-2), "mismatch vs reference"

    print("KERNEL_OK")
</pallas_src>

<mosaic_0001>
module attributes {stable_mosaic.version = 11 : i64} {
  func.func @_fused_layer_kernel(%arg0: i32, %arg1: i32, %arg2: i32, %arg3: memref<256x512xbf16, #tpu.memory_space<vmem>>, %arg4: memref<512x128xbf16, #tpu.memory_space<vmem>>, %arg5: memref<128x128xbf16, #tpu.memory_space<vmem>>, %arg6: memref<1x128xf32, #tpu.memory_space<vmem>>, %arg7: memref<256x128xbf16, #tpu.memory_space<vmem>>, %arg8: memref<256x128xf32, #tpu.memory_space<vmem>>) attributes {dimension_semantics = [#tpu.dimension_semantics<parallel>, #tpu.dimension_semantics<parallel>, #tpu.dimension_semantics<arbitrary>], iteration_bounds = array<i64: 2, 1, 1>, scalar_prefetch = 0 : i64, scratch_operands = 1 : i64, tpu.core_type = #tpu.core_type<tc>, window_params = [{transform_indices = @transform_0, window_bounds = array<i64: 256, 512>}, {transform_indices = @transform_1, window_bounds = array<i64: 512, 128>}, {transform_indices = @transform_2, window_bounds = array<i64: 128, 128>}, {transform_indices = @transform_3, window_bounds = array<i64: 1, 128>}, {transform_indices = @transform_4, window_bounds = array<i64: 256, 128>}]} {
    %c0_i32 = arith.constant 0 : i32
    %0 = arith.cmpi eq, %arg2, %c0_i32 : i32
    %1 = arith.extui %0 : i1 to i32
    %c0_i32_0 = arith.constant 0 : i32
    %2 = arith.cmpi ne, %1, %c0_i32_0 : i32
    scf.if %2 {
      %cst_15 = arith.constant 0.000000e+00 : f32
      %18 = vector.broadcast %cst_15 : f32 to vector<256x128xf32>
      %c0_16 = arith.constant 0 : index
      %c0_17 = arith.constant 0 : index
      %19 = vector.load %arg8[%c0_16, %c0_17] : memref<256x128xf32, #tpu.memory_space<vmem>>, vector<256x128xf32>
      tpu.vector_store %arg8[%c0_16, %c0_17], %18 {strides = array<i32>} : memref<256x128xf32, #tpu.memory_space<vmem>>, vector<256x128xf32>,
    } else {
    }
    %c0 = arith.constant 0 : index
    %c0_1 = arith.constant 0 : index
    %3 = vector.load %arg4[%c0, %c0_1] : memref<512x128xbf16, #tpu.memory_space<vmem>>, vector<512x128xbf16>
    %c0_2 = arith.constant 0 : index
    %c0_3 = arith.constant 0 : index
    %4 = vector.load %arg5[%c0_2, %c0_3] : memref<128x128xbf16, #tpu.memory_space<vmem>>, vector<128x128xbf16>
    %cst = arith.constant dense<0.000000e+00> : vector<512x128xf32>
    %5 = tpu.matmul %3, %4, %cst {dimension_numbers = #tpu.dot_dimension_numbers<[1], [0], [0], [1], [0, 0, 1, 1], [], []>} : vector<512x128xbf16>, vector<128x128xbf16>, vector<512x128xf32> -> vector<512x128xf32>
    %c0_4 = arith.constant 0 : index
    %c0_5 = arith.constant 0 : index
    %6 = vector.load %arg6[%c0_4, %c0_5] : memref<1x128xf32, #tpu.memory_space<vmem>>, vector<1x128xf32>
    %7 = vector.broadcast %6 : vector<1x128xf32> to vector<512x128xf32>
    %8 = arith.addf %5, %7 : vector<512x128xf32>
    %c0_6 = arith.constant 0 : index
    %c0_7 = arith.constant 0 : index
    %9 = vector.load %arg8[%c0_6, %c0_7] : memref<256x128xf32, #tpu.memory_space<vmem>>, vector<256x128xf32>
    %c0_8 = arith.constant 0 : index
    %c0_9 = arith.constant 0 : index
    %10 = vector.load %arg3[%c0_8, %c0_9] : memref<256x512xbf16, #tpu.memory_space<vmem>>, vector<256x512xbf16>
    %11 = arith.truncf %8 : vector<512x128xf32> to vector<512x128xbf16>
    %cst_10 = arith.constant dense<0.000000e+00> : vector<256x128xf32>
    %12 = tpu.matmul %10, %11, %cst_10 {dimension_numbers = #tpu.dot_dimension_numbers<[1], [0], [0], [1], [0, 0, 1, 1], [], []>} : vector<256x512xbf16>, vector<512x128xbf16>, vector<256x128xf32> -> vector<256x128xf32>
    %13 = arith.addf %9, %12 : vector<256x128xf32>
    %c0_11 = arith.constant 0 : index
    %c0_12 = arith.constant 0 : index
    %14 = vector.load %arg8[%c0_11, %c0_12] : memref<256x128xf32, #tpu.memory_space<vmem>>, vector<256x128xf32>
    tpu.vector_store %arg8[%c0_11, %c0_12], %13 {strides = array<i32>} : memref<256x128xf32, #tpu.memory_space<vmem>>, vector<256x128xf32>,
    %c0_i32_13 = arith.constant 0 : i32
    %15 = arith.cmpi eq, %arg2, %c0_i32_13 : i32
    %16 = arith.extui %15 : i1 to i32
    %c0_i32_14 = arith.constant 0 : i32
    %17 = arith.cmpi ne, %16, %c0_i32_14 : i32
    scf.if %17 {
      %c0_15 = arith.constant 0 : index
      %c0_16 = arith.constant 0 : index
      %18 = vector.load %arg8[%c0_15, %c0_16] : memref<256x128xf32, #tpu.memory_space<vmem>>, vector<256x128xf32>
      %cst_17 = arith.constant 0.000000e+00 : f32
      %19 = vector.broadcast %cst_17 : f32 to vector<256x128xf32>
      %20 = arith.maximumf %18, %19 : vector<256x128xf32>
      %21 = arith.truncf %20 : vector<256x128xf32> to vector<256x128xbf16>
      %c0_18 = arith.constant 0 : index
      %c0_19 = arith.constant 0 : index
      %22 = vector.load %arg7[%c0_18, %c0_19] : memref<256x128xbf16, #tpu.memory_space<vmem>>, vector<256x128xbf16>
      tpu.vector_store %arg7[%c0_18, %c0_19], %21 {strides = array<i32>} : memref<256x128xbf16, #tpu.memory_space<vmem>>, vector<256x128xbf16>,
    } else {
    }
    return
  }
  func.func @transform_0(%arg0: i32, %arg1: i32, %arg2: i32) -> (i32, i32) {
    %c0_i32 = arith.constant 0 : i32
    return %arg0, %arg2 : i32, i32
  }
  func.func @transform_1(%arg0: i32, %arg1: i32, %arg2: i32) -> (i32, i32) {
    %c0_i32 = arith.constant 0 : i32
    %c0_i32_0 = arith.constant 0 : i32
    return %arg2, %c0_i32 : i32, i32
  }
  func.func @transform_2(%arg0: i32, %arg1: i32, %arg2: i32) -> (i32, i32) {
    %c0_i32 = arith.constant 0 : i32
    %c0_i32_0 = arith.constant 0 : i32
    return %c0_i32, %arg1 : i32, i32
  }
  func.func @transform_3(%arg0: i32, %arg1: i32, %arg2: i32) -> (i32, i32) {
    %c0_i32 = arith.constant 0 : i32
    %c0_i32_0 = arith.constant 0 : i32
    return %c0_i32, %arg1 : i32, i32
  }
  func.func @transform_4(%arg0: i32, %arg1: i32, %arg2: i32) -> (i32, i32) {
    %c0_i32 = arith.constant 0 : i32
    return %arg0, %arg1 : i32, i32
  }
}

module attributes {stable_mosaic.version = 11 : i64} {
  func.func @_fused_layer_kernel(%arg0: i32, %arg1: i32, %arg2: i32, %arg3: memref<256x512xbf16, #tpu.memory_space<vmem>>, %arg4: memref<512x128xbf16, #tpu.memory_space<vmem>>, %arg5: memref<128x128xbf16, #tpu.memory_space<vmem>>, %arg6: memref<1x128xf32, #tpu.memory_space<vmem>>, %arg7: memref<256x128xf32, #tpu.memory_space<vmem>>, %arg8: memref<256x128xf32, #tpu.memory_space<vmem>>) attributes {dimension_semantics = [#tpu.dimension_semantics<parallel>, #tpu.dimension_semantics<parallel>, #tpu.dimension_semantics<arbitrary>], iteration_bounds = array<i64: 2, 1, 1>, scalar_prefetch = 0 : i64, scratch_operands = 1 : i64, tpu.core_type = #tpu.core_type<tc>, window_params = [{transform_indices = @transform_0, window_bounds = array<i64: 256, 512>}, {transform_indices = @transform_1, window_bounds = array<i64: 512, 128>}, {transform_indices = @transform_2, window_bounds = array<i64: 128, 128>}, {transform_indices = @transform_3, window_bounds = array<i64: 1, 128>}, {transform_indices = @transform_4, window_bounds = array<i64: 256, 128>}]} {
    %c0_i32 = arith.constant 0 : i32
    %0 = arith.cmpi eq, %arg2, %c0_i32 : i32
    %1 = arith.extui %0 : i1 to i32
    %c0_i32_0 = arith.constant 0 : i32
    %2 = arith.cmpi ne, %1, %c0_i32_0 : i32
    scf.if %2 {
      %cst_15 = arith.constant 0.000000e+00 : f32
      %18 = vector.broadcast %cst_15 : f32 to vector<256x128xf32>
      %c0_16 = arith.constant 0 : index
      %c0_17 = arith.constant 0 : index
      %19 = vector.load %arg8[%c0_16, %c0_17] : memref<256x128xf32, #tpu.memory_space<vmem>>, vector<256x128xf32>
      tpu.vector_store %arg8[%c0_16, %c0_17], %18 {strides = array<i32>} : memref<256x128xf32, #tpu.memory_space<vmem>>, vector<256x128xf32>,
    } else {
    }
    %c0 = arith.constant 0 : index
    %c0_1 = arith.constant 0 : index
    %3 = vector.load %arg4[%c0, %c0_1] : memref<512x128xbf16, #tpu.memory_space<vmem>>, vector<512x128xbf16>
    %c0_2 = arith.constant 0 : index
    %c0_3 = arith.constant 0 : index
    %4 = vector.load %arg5[%c0_2, %c0_3] : memref<128x128xbf16, #tpu.memory_space<vmem>>, vector<128x128xbf16>
    %cst = arith.constant dense<0.000000e+00> : vector<512x128xf32>
    %5 = tpu.matmul %3, %4, %cst {dimension_numbers = #tpu.dot_dimension_numbers<[1], [0], [0], [1], [0, 0, 1, 1], [], []>} : vector<512x128xbf16>, vector<128x128xbf16>, vector<512x128xf32> -> vector<512x128xf32>
    %c0_4 = arith.constant 0 : index
    %c0_5 = arith.constant 0 : index
    %6 = vector.load %arg6[%c0_4, %c0_5] : memref<1x128xf32, #tpu.memory_space<vmem>>, vector<1x128xf32>
    %7 = vector.broadcast %6 : vector<1x128xf32> to vector<512x128xf32>
    %8 = arith.addf %5, %7 : vector<512x128xf32>
    %c0_6 = arith.constant 0 : index
    %c0_7 = arith.constant 0 : index
    %9 = vector.load %arg8[%c0_6, %c0_7] : memref<256x128xf32, #tpu.memory_space<vmem>>, vector<256x128xf32>
    %c0_8 = arith.constant 0 : index
    %c0_9 = arith.constant 0 : index
    %10 = vector.load %arg3[%c0_8, %c0_9] : memref<256x512xbf16, #tpu.memory_space<vmem>>, vector<256x512xbf16>
    %11 = arith.truncf %8 : vector<512x128xf32> to vector<512x128xbf16>
    %cst_10 = arith.constant dense<0.000000e+00> : vector<256x128xf32>
    %12 = tpu.matmul %10, %11, %cst_10 {dimension_numbers = #tpu.dot_dimension_numbers<[1], [0], [0], [1], [0, 0, 1, 1], [], []>} : vector<256x512xbf16>, vector<512x128xbf16>, vector<256x128xf32> -> vector<256x128xf32>
    %13 = arith.addf %9, %12 : vector<256x128xf32>
    %c0_11 = arith.constant 0 : index
    %c0_12 = arith.constant 0 : index
    %14 = vector.load %arg8[%c0_11, %c0_12] : memref<256x128xf32, #tpu.memory_space<vmem>>, vector<256x128xf32>
    tpu.vector_store %arg8[%c0_11, %c0_12], %13 {strides = array<i32>} : memref<256x128xf32, #tpu.memory_space<vmem>>, vector<256x128xf32>,
    %c0_i32_13 = arith.constant 0 : i32
    %15 = arith.cmpi eq, %arg2, %c0_i32_13 : i32
    %16 = arith.extui %15 : i1 to i32
    %c0_i32_14 = arith.constant 0 : i32
    %17 = arith.cmpi ne, %16, %c0_i32_14 : i32
    scf.if %17 {
      %c0_15 = arith.constant 0 : index
      %c0_16 = arith.constant 0 : index
      %18 = vector.load %arg8[%c0_15, %c0_16] : memref<256x128xf32, #tpu.memory_space<vmem>>, vector<256x128xf32>
      %19 = tpu.iota {dimensions = array<i32: 1>} : vector<256x128xi32>
      %c8_i32 = arith.constant 8 : i32
      %20 = vector.broadcast %c8_i32 : i32 to vector<256x128xi32>
      %21 = arith.cmpi slt, %19, %20 : vector<256x128xi32>
      %cst_17 = arith.constant -1.000000e+30 : f32
      %22 = vector.broadcast %cst_17 : f32 to vector<256x128xf32>
      %23 = arith.select %21, %18, %22 : vector<256x128xi1>, vector<256x128xf32>
      %cst_18 = arith.constant dense<0xFF800000> : vector<256xf32>
      %24 = vector.multi_reduction <maximumf>, %23, %cst_18 [1] : vector<256x128xf32> to vector<256xf32>
      %25 = vector.shape_cast %24 : vector<256xf32> to vector<256x1xf32>
      %26 = vector.broadcast %25 : vector<256x1xf32> to vector<256x128xf32>
      %27 = arith.subf %23, %26 : vector<256x128xf32>
      %28 = math.exp %27 : vector<256x128xf32>
      %cst_19 = arith.constant dense<0.000000e+00> : vector<256xf32>
      %29 = vector.multi_reduction <add>, %28, %cst_19 [1] : vector<256x128xf32> to vector<256xf32>
      %30 = vector.shape_cast %29 : vector<256xf32> to vector<256x1xf32>
      %31 = math.log %30 : vector<256x1xf32>
      %32 = vector.broadcast %31 : vector<256x1xf32> to vector<256x128xf32>
      %33 = arith.subf %27, %32 : vector<256x128xf32>
      %cst_20 = arith.constant 0.000000e+00 : f32
      %34 = vector.broadcast %cst_20 : f32 to vector<256x128xf32>
      %35 = arith.select %21, %33, %34 : vector<256x128xi1>, vector<256x128xf32>
      %c0_21 = arith.constant 0 : index
      %c0_22 = arith.constant 0 : index
      %36 = vector.load %arg7[%c0_21, %c0_22] : memref<256x128xf32, #tpu.memory_space<vmem>>, vector<256x128xf32>
      tpu.vector_store %arg7[%c0_21, %c0_22], %35 {strides = array<i32>} : memref<256x128xf32, #tpu.memory_space<vmem>>, vector<256x128xf32>,
    } else {
    }
    return
  }
  func.func @transform_0(%arg0: i32, %arg1: i32, %arg2: i32) -> (i32, i32) {
    %c0_i32 = arith.constant 0 : i32
    return %arg0, %arg2 : i32, i32
  }
  func.func @transform_1(%arg0: i32, %arg1: i32, %arg2: i32) -> (i32, i32) {
    %c0_i32 = arith.constant 0 : i32
    %c0_i32_0 = arith.constant 0 : i32
    return %arg2, %c0_i32 : i32, i32
  }
  func.func @transform_2(%arg0: i32, %arg1: i32, %arg2: i32) -> (i32, i32) {
    %c0_i32 = arith.constant 0 : i32
    %c0_i32_0 = arith.constant 0 : i32
    return %c0_i32, %arg1 : i32, i32
  }
  func.func @transform_3(%arg0: i32, %arg1: i32, %arg2: i32) -> (i32, i32) {
    %c0_i32 = arith.constant 0 : i32
    %c0_i32_0 = arith.constant 0 : i32
    return %c0_i32, %arg1 : i32, i32
  }
  func.func @transform_4(%arg0: i32, %arg1: i32, %arg2: i32) -> (i32, i32) {
    %c0_i32 = arith.constant 0 : i32
    return %arg0, %arg1 : i32, i32
  }
}

module attributes {stable_mosaic.version = 11 : i64} {
  func.func @_fused_layer_kernel(%arg0: i32, %arg1: i32, %arg2: i32, %arg3: memref<256x512xbf16, #tpu.memory_space<vmem>>, %arg4: memref<512x128xbf16, #tpu.memory_space<vmem>>, %arg5: memref<128x128xbf16, #tpu.memory_space<vmem>>, %arg6: memref<1x128xf32, #tpu.memory_space<vmem>>, %arg7: memref<256x128xbf16, #tpu.memory_space<vmem>>, %arg8: memref<256x128xf32, #tpu.memory_space<vmem>>) attributes {dimension_semantics = [#tpu.dimension_semantics<parallel>, #tpu.dimension_semantics<parallel>, #tpu.dimension_semantics<arbitrary>], iteration_bounds = array<i64: 2, 1, 1>, scalar_prefetch = 0 : i64, scratch_operands = 1 : i64, tpu.core_type = #tpu.core_type<tc>, window_params = [{transform_indices = @transform_0, window_bounds = array<i64: 256, 512>}, {transform_indices = @transform_1, window_bounds = array<i64: 512, 128>}, {transform_indices = @transform_2, window_bounds = array<i64: 128, 128>}, {transform_indices = @transform_3, window_bounds = array<i64: 1, 128>}, {transform_indices = @transform_4, window_bounds = array<i64: 256, 128>}]} {
    %c0_i32 = arith.constant 0 : i32
    %0 = arith.cmpi eq, %arg2, %c0_i32 : i32
    %1 = arith.extui %0 : i1 to i32
    %c0_i32_0 = arith.constant 0 : i32
    %2 = arith.cmpi ne, %1, %c0_i32_0 : i32
    scf.if %2 {
      %cst_15 = arith.constant 0.000000e+00 : f32
      %18 = vector.broadcast %cst_15 : f32 to vector<256x128xf32>
      %c0_16 = arith.constant 0 : index
      %c0_17 = arith.constant 0 : index
      %19 = vector.load %arg8[%c0_16, %c0_17] : memref<256x128xf32, #tpu.memory_space<vmem>>, vector<256x128xf32>
      tpu.vector_store %arg8[%c0_16, %c0_17], %18 {strides = array<i32>} : memref<256x128xf32, #tpu.memory_space<vmem>>, vector<256x128xf32>,
    } else {
    }
    %c0 = arith.constant 0 : index
    %c0_1 = arith.constant 0 : index
    %3 = vector.load %arg4[%c0, %c0_1] : memref<512x128xbf16, #tpu.memory_space<vmem>>, vector<512x128xbf16>
    %c0_2 = arith.constant 0 : index
    %c0_3 = arith.constant 0 : index
    %4 = vector.load %arg5[%c0_2, %c0_3] : memref<128x128xbf16, #tpu.memory_space<vmem>>, vector<128x128xbf16>
    %cst = arith.constant dense<0.000000e+00> : vector<512x128xf32>
    %5 = tpu.matmul %3, %4, %cst {dimension_numbers = #tpu.dot_dimension_numbers<[1], [0], [0], [1], [0, 0, 1, 1], [], []>} : vector<512x128xbf16>, vector<128x128xbf16>, vector<512x128xf32> -> vector<512x128xf32>
    %c0_4 = arith.constant 0 : index
    %c0_5 = arith.constant 0 : index
    %6 = vector.load %arg6[%c0_4, %c0_5] : memref<1x128xf32, #tpu.memory_space<vmem>>, vector<1x128xf32>
    %7 = vector.broadcast %6 : vector<1x128xf32> to vector<512x128xf32>
    %8 = arith.addf %5, %7 : vector<512x128xf32>
    %c0_6 = arith.constant 0 : index
    %c0_7 = arith.constant 0 : index
    %9 = vector.load %arg8[%c0_6, %c0_7] : memref<256x128xf32, #tpu.memory_space<vmem>>, vector<256x128xf32>
    %c0_8 = arith.constant 0 : index
    %c0_9 = arith.constant 0 : index
    %10 = vector.load %arg3[%c0_8, %c0_9] : memref<256x512xbf16, #tpu.memory_space<vmem>>, vector<256x512xbf16>
    %11 = arith.truncf %8 : vector<512x128xf32> to vector<512x128xbf16>
    %cst_10 = arith.constant dense<0.000000e+00> : vector<256x128xf32>
    %12 = tpu.matmul %10, %11, %cst_10 {dimension_numbers = #tpu.dot_dimension_numbers<[1], [0], [0], [1], [0, 0, 1, 1], [], []>} : vector<256x512xbf16>, vector<512x128xbf16>, vector<256x128xf32> -> vector<256x128xf32>
    %13 = arith.addf %9, %12 : vector<256x128xf32>
    %c0_11 = arith.constant 0 : index
    %c0_12 = arith.constant 0 : index
    %14 = vector.load %arg8[%c0_11, %c0_12] : memref<256x128xf32, #tpu.memory_space<vmem>>, vector<256x128xf32>
    tpu.vector_store %arg8[%c0_11, %c0_12], %13 {strides = array<i32>} : memref<256x128xf32, #tpu.memory_space<vmem>>, vector<256x128xf32>,
    %c0_i32_13 = arith.constant 0 : i32
    %15 = arith.cmpi eq, %arg2, %c0_i32_13 : i32
    %16 = arith.extui %15 : i1 to i32
    %c0_i32_14 = arith.constant 0 : i32
    %17 = arith.cmpi ne, %16, %c0_i32_14 : i32
    scf.if %17 {
      %c0_15 = arith.constant 0 : index
      %c0_16 = arith.constant 0 : index
      %18 = vector.load %arg8[%c0_15, %c0_16] : memref<256x128xf32, #tpu.memory_space<vmem>>, vector<256x128xf32>
      %cst_17 = arith.constant 0.000000e+00 : f32
      %19 = vector.broadcast %cst_17 : f32 to vector<256x128xf32>
      %20 = arith.maximumf %18, %19 : vector<256x128xf32>
      %21 = arith.truncf %20 : vector<256x128xf32> to vector<256x128xbf16>
      %c0_18 = arith.constant 0 : index
      %c0_19 = arith.constant 0 : index
      %22 = vector.load %arg7[%c0_18, %c0_19] : memref<256x128xbf16, #tpu.memory_space<vmem>>, vector<256x128xbf16>
      tpu.vector_store %arg7[%c0_18, %c0_19], %21 {strides = array<i32>} : memref<256x128xbf16, #tpu.memory_space<vmem>>, vector<256x128xbf16>,
    } else {
    }
    return
  }
  func.func @transform_0(%arg0: i32, %arg1: i32, %arg2: i32) -> (i32, i32) {
    %c0_i32 = arith.constant 0 : i32
    return %arg0, %arg2 : i32, i32
  }
  func.func @transform_1(%arg0: i32, %arg1: i32, %arg2: i32) -> (i32, i32) {
    %c0_i32 = arith.constant 0 : i32
    %c0_i32_0 = arith.constant 0 : i32
    return %arg2, %c0_i32 : i32, i32
  }
  func.func @transform_2(%arg0: i32, %arg1: i32, %arg2: i32) -> (i32, i32) {
    %c0_i32 = arith.constant 0 : i32
    %c0_i32_0 = arith.constant 0 : i32
    return %c0_i32, %arg1 : i32, i32
  }
  func.func @transform_3(%arg0: i32, %arg1: i32, %arg2: i32) -> (i32, i32) {
    %c0_i32 = arith.constant 0 : i32
    %c0_i32_0 = arith.constant 0 : i32
    return %c0_i32, %arg1 : i32, i32
  }
  func.func @transform_4(%arg0: i32, %arg1: i32, %arg2: i32) -> (i32, i32) {
    %c0_i32 = arith.constant 0 : i32
    return %arg0, %arg1 : i32, i32
  }
}

</mosaic_0001>

<llo_original>
// kernel: gcn1_forward.4
$region0: #{gcn1_forward.4}
  #allocation0 [shape = 'u32[]', space=smem, size = 0x4, offset = 0x4, fixed_abs, tag = 'smem constant byte address 0x4 - core index']
  #allocation1 [shape = 'u32[72,128]{1,0:T(1,128)}', space=vmem, size = 0x9000, scoped, tag = 'internal scratch']
  #allocation2 [shape = 'f32[256,128]{1,0:T(8,128)}', space=vmem, size = 0x20000, scoped, tag = 'scratch operand']
  %s0 = inlined_call_operand.vmem [shape: bf16[512,512], index: 0, kind: input, shape index: {}]
  %s1 = inlined_call_operand.vmem [shape: bf16[512,128], index: 1, kind: input, shape index: {}]
  %s2 = inlined_call_operand.vmem [shape: bf16[128,128], index: 2, kind: input, shape index: {}]
  %s3 = inlined_call_operand.vmem [shape: f32[1,128], index: 3, kind: input, shape index: {}]
  %s4 = inlined_call_operand.vmem [shape: bf16[512,128], index: 4, kind: output, shape index: {}]
  %s5 = sld [smem:[#allocation0]]
  $region57: #{gcn1_forward.4} parent=0
    _
  %s7 = ssub.s32 1, %s5
  %s8 = scalar_select 0, %s7, %s5
  loop: start=0, step=1, limit=4
  $region2: #{gcn1_forward.4} parent=0 // loop_pre_header
    _
  $region3: #{gcn1_forward.4} parent=0 // loop_header
    %s10 = sphi 0, %s14
    %p11 = scmp.ge.s32.totalorder %s10, 4
    %s17 = sphi 0, %s36
    %s18 = sphi 0, %s32
    %s19 = sphi 0, %s28
    %s20 = sphi 0, %s17
    %s21 = sphi 0, %s18
    %s22 = sphi 0, %s19
    %s23 = sphi 0, %s20
    %s24 = sphi 0, %s21
    %s25 = sphi 0, %s22
    %s41 = sphi 0, %s43
    %s44 = sphi 0, %s41
    %s45 = sphi 0, %s44
    %s61 = sphi 0, %s45
    %s67 = sphi 0, %s69
    %s70 = sphi 0, %s67
    %s71 = sphi 0, %s70
    %s87 = sphi 0, %s71
    %s93 = sphi 0, %s95
    %s96 = sphi 0, %s93
    %s97 = sphi 0, %s96
    %s113 = sphi 0, %s97
    %s119 = sphi 0, %s121
    %s122 = sphi 0, %s119
    %s123 = sphi 0, %s122
    %s139 = sphi 0, %s123
    %s147 = sphi 0, %s149
    %s150 = sphi 0, %s147
    %s151 = sphi 0, %s150
    %s167 = sphi 0, %s151
  $region4: #{gcn1_forward.4} parent=0 // loop_header_branch
    %13 = sbr.rel (%p11) target = $region8
  $region5: #{gcn1_forward.4} parent=0 // loop_body
    %s15 = ssub.s32 %s10, 1
    %s16 = ssub.s32 %s10, 2
    %s26 = sadd.s32 1, %s19
    %p27 = scmp.ge.s32.totalorder %s26, 1
    %s28 = scalar_select %p27, 0, %s26
    %s29 = sadd.s32 1, %s18
    %s30 = scalar_select %p27, %s29, %s18
    %p31 = scmp.ge.s32.totalorder %s30, 1
    %s32 = scalar_select %p31, 0, %s30
    %s33 = sadd.s32 1, %s17
    %s34 = scalar_select %p31, %s33, %s17
    %p35 = scmp.ge.s32.totalorder %s34, 2
    %s36 = scalar_select %p35, 0, %s34
    %s37 = ssub.s32 %s17, %s36
    %s38 = ssub.s32 %s19, %s28
    %s39 = sor.u32 %s37, %s38
    %p40 = scmp.eq.s32.totalorder %s39, 0
    %s42 = sadd.s32 %s41, 1
    %s43 = scalar_select %p40, %s41, %s42
    %p46 = pneg %p40
    %p47 = scmp.eq.s32.totalorder %s10, 1
    %p48 = por %p46, %p47
    %p49 = scmp.ne.s32.totalorder %s41, %s44
    %p50 = scmp.eq.s32.totalorder %s10, 0
    %p51 = por %p49, %p50
    %p52 = scmp.ne.s32.totalorder %s41, %s44
    %p53 = scmp.eq.s32.totalorder %s15, 1
    %p54 = por %p52, %p53
    %p55 = scmp.ne.s32.totalorder %s44, %s45
    %p56 = scmp.eq.s32.totalorder %s15, 0
    %p57 = por %p55, %p56
    %p58 = scmp.ne.s32.totalorder %s44, %s45
    %p59 = scmp.eq.s32.totalorder %s16, 1
    %p60 = por %p58, %p59
    %p62 = scmp.ne.s32.totalorder %s45, %s61
    %p63 = scmp.eq.s32.totalorder %s16, 0
    %p64 = por %p62, %p63
    %s65 = ssub.s32 %s19, %s28
    %p66 = scmp.eq.s32.totalorder %s65, 0
    %s68 = sadd.s32 %s67, 1
    %s69 = scalar_select %p66, %s67, %s68
    %p72 = pneg %p66
    %p73 = scmp.eq.s32.totalorder %s10, 1
    %p74 = por %p72, %p73
    %p75 = scmp.ne.s32.totalorder %s67, %s70
    %p76 = scmp.eq.s32.totalorder %s10, 0
    %p77 = por %p75, %p76
    %p78 = scmp.ne.s32.totalorder %s67, %s70
    %p79 = scmp.eq.s32.totalorder %s15, 1
    %p80 = por %p78, %p79
    %p81 = scmp.ne.s32.totalorder %s70, %s71
    %p82 = scmp.eq.s32.totalorder %s15, 0
    %p83 = por %p81, %p82
    %p84 = scmp.ne.s32.totalorder %s70, %s71
    %p85 = scmp.eq.s32.totalorder %s16, 1
    %p86 = por %p84, %p85
    %p88 = scmp.ne.s32.totalorder %s71, %s87
    %p89 = scmp.eq.s32.totalorder %s16, 0
    %p90 = por %p88, %p89
    %s91 = ssub.s32 %s18, %s32
    %p92 = scmp.eq.s32.totalorder %s91, 0
    %s94 = sadd.s32 %s93, 1
    %s95 = scalar_select %p92, %s93, %s94
    %p98 = pneg %p92
    %p99 = scmp.eq.s32.totalorder %s10, 1
    %p100 = por %p98, %p99
    %p101 = scmp.ne.s32.totalorder %s93, %s96
    %p102 = scmp.eq.s32.totalorder %s10, 0
    %p103 = por %p101, %p102
    %p104 = scmp.ne.s32.totalorder %s93, %s96
    %p105 = scmp.eq.s32.totalorder %s15, 1
    %p106 = por %p104, %p105
    %p107 = scmp.ne.s32.totalorder %s96, %s97
    %p108 = scmp.eq.s32.totalorder %s15, 0
    %p109 = por %p107, %p108
    %p110 = scmp.ne.s32.totalorder %s96, %s97
    %p111 = scmp.eq.s32.totalorder %s16, 1
    %p112 = por %p110, %p111
    %p114 = scmp.ne.s32.totalorder %s97, %s113
    %p115 = scmp.eq.s32.totalorder %s16, 0
    %p116 = por %p114, %p115
    %s117 = ssub.s32 %s18, %s32
    %p118 = scmp.eq.s32.totalorder %s117, 0
    %s120 = sadd.s32 %s119, 1
    %s121 = scalar_select %p118, %s119, %s120
    %p124 = pneg %p118
    %p125 = scmp.eq.s32.totalorder %s10, 1
    %p126 = por %p124, %p125
    %p127 = scmp.ne.s32.totalorder %s119, %s122
    %p128 = scmp.eq.s32.totalorder %s10, 0
    %p129 = por %p127, %p128
    %p130 = scmp.ne.s32.totalorder %s119, %s122
    %p131 = scmp.eq.s32.totalorder %s15, 1
    %p132 = por %p130, %p131
    %p133 = scmp.ne.s32.totalorder %s122, %s123
    %p134 = scmp.eq.s32.totalorder %s15, 0
    %p135 = por %p133, %p134
    %p136 = scmp.ne.s32.totalorder %s122, %s123
    %p137 = scmp.eq.s32.totalorder %s16, 1
    %p138 = por %p136, %p137
    %p140 = scmp.ne.s32.totalorder %s123, %s139
    %p141 = scmp.eq.s32.totalorder %s16, 0
    %p142 = por %p140, %p141
    %s143 = ssub.s32 %s17, %s36
    %s144 = ssub.s32 %s18, %s32
    %s145 = sor.u32 %s143, %s144
    %p146 = scmp.eq.s32.totalorder %s145, 0
    %s148 = sadd.s32 %s147, 1
    %s149 = scalar_select %p146, %s147, %s148
    %p152 = pneg %p146
    %p153 = scmp.eq.s32.totalorder %s10, 1
    %p154 = por %p152, %p153
    %p155 = scmp.ne.s32.totalorder %s147, %s150
    %p156 = scmp.eq.s32.totalorder %s10, 0
    %p157 = por %p155, %p156
    %p158 = scmp.ne.s32.totalorder %s147, %s150
    %p159 = scmp.eq.s32.totalorder %s15, 1
    %p160 = por %p158, %p159
    %p161 = scmp.ne.s32.totalorder %s150, %s151
    %p162 = scmp.eq.s32.totalorder %s15, 0
    %p163 = por %p161, %p162
    %p164 = scmp.ne.s32.totalorder %s150, %s151
    %p165 = scmp.eq.s32.totalorder %s16, 1
    %p166 = por %p164, %p165
    %p168 = scmp.ne.s32.totalorder %s151, %s167
    %p169 = scmp.eq.s32.totalorder %s16, 0
    %p170 = por %p168, %p169
    %p171 = scmp.le.s32.totalorder 1, %s10
    %p172 = scmp.lt.s32.totalorder %s10, 3
    %p173 = pnand %p171, %p172
    %p174 = pneg %p173
    // Predicated region
    $region9: #{gcn1_forward.4} parent=5 // pred_check
      _
    $region10: #{gcn1_forward.4} parent=5 // pred_check_branch
      %176 = sbr.rel (%p173) target = $region12
    $region11: #{gcn1_forward.4} parent=5 // pred_region
      %s177 = ssub.s32 %s10, 1
      // Predicated region
      $region13: #{gcn1_forward.4} parent=11 // pred_check
        %p178 = pneg %p83
      $region14: #{gcn1_forward.4} parent=11 // pred_check_branch
        %180 = sbr.rel (%p178) target = $region16
      $region15: #{gcn1_forward.4} parent=11 // pred_region
        %s181 = smul.u32 64, %s22
        %p182 = scmp.lt.s32.totalorder %s181, 63
        %s183 = scalar_select %p182, %s181, 63
        %s184 = smul.addr %s183, 4
        %s185 = scalar_lea.vmem %s1, %s184
        %s186 = smul.u32 64, %s22
      $region16: #{gcn1_forward.4} parent=11 // pred_fallthru
        _
      // Predicated region
      $region17: #{gcn1_forward.4} parent=11 // pred_check
        %p187 = pneg %p109
      $region18: #{gcn1_forward.4} parent=11 // pred_check_branch
        %189 = sbr.rel (%p187) target = $region20
      $region19: #{gcn1_forward.4} parent=11 // pred_region
        %p190 = scmp.lt.s32.totalorder %s21, 0
        %s191 = scalar_select %p190, %s21, 0
        %s192 = smul.addr %s191, 4
        %s193 = scalar_lea.vmem %s2, %s192
      $region20: #{gcn1_forward.4} parent=11 // pred_fallthru
        _
      // Predicated region
      $region21: #{gcn1_forward.4} parent=11 // pred_check
        %p194 = pneg %p135
      $region22: #{gcn1_forward.4} parent=11 // pred_check_branch
        %196 = sbr.rel (%p194) target = $region24
      $region23: #{gcn1_forward.4} parent=11 // pred_region
        %p197 = scmp.lt.s32.totalorder %s21, 0
        %s198 = scalar_select %p197, %s21, 0
        %s199 = scalar_lea.vmem %s3, %s198
      $region24: #{gcn1_forward.4} parent=11 // pred_fallthru
        _
    $region12: #{gcn1_forward.4} parent=5 // pred_fallthru
      _
    %p200 = scmp.lt.s32.totalorder %s10, 2
    // Predicated region
    $region25: #{gcn1_forward.4} parent=5 // pred_check
      %p201 = pneg %p200
    $region26: #{gcn1_forward.4} parent=5 // pred_check_branch
      %203 = sbr.rel (%p201) target = $region28
    $region27: #{gcn1_forward.4} parent=5 // pred_region
      // Predicated region
      $region29: #{gcn1_forward.4} parent=27 // pred_check
        %p204 = pneg %p51
      $region30: #{gcn1_forward.4} parent=27 // pred_check_branch
        %206 = sbr.rel (%p204) target = $region32
      $region31: #{gcn1_forward.4} parent=27 // pred_region
        %s207 = smul.u32 32, %s17
        %s208 = smul.u32 4, %s19
        %p209 = scmp.lt.s32.totalorder %s207, 63
        %s210 = scalar_select %p209, %s207, 63
        %p211 = scmp.lt.s32.totalorder %s208, 3
        %s212 = scalar_select %p211, %s208, 3
        %s213 = smul.addr %s210, 4
        %s214 = sadd.s32 %s212, %s213
        %s215 = smul.addr %s214, 4
        %s216 = scalar_lea.vmem %s0, %s215
        %s217 = smul.u32 32, %s17
        %s218 = smul.u32 4, %s19
      $region32: #{gcn1_forward.4} parent=27 // pred_fallthru
        _
    $region28: #{gcn1_forward.4} parent=5 // pred_fallthru
      _
    %p219 = scmp.le.s32.totalorder 1, %s10
    %p220 = scmp.lt.s32.totalorder %s10, 3
    %p221 = pnand %p219, %p220
    %p222 = pneg %p221
    // Predicated region
    $region33: #{gcn1_forward.4} parent=5 // pred_check
      _
    $region34: #{gcn1_forward.4} parent=5 // pred_check_branch
      %224 = sbr.rel (%p221) target = $region36
    $region35: #{gcn1_forward.4} parent=5 // pred_region
      %s225 = ssub.s32 %s10, 1
      %s226 = smul.u32 32, %s20
      %s227 = smul.u32 4, %s22
      %p228 = scmp.lt.s32.totalorder %s226, 63
      %s229 = scalar_select %p228, %s226, 63
      %p230 = scmp.lt.s32.totalorder %s227, 3
      %s231 = scalar_select %p230, %s227, 3
      %s232 = smul.addr %s229, 4
      %s233 = sadd.s32 %s231, %s232
      %s234 = smul.addr %s233, 4
      %s235 = scalar_lea.vmem %s0, %s234
      %p236 = pneg %p57
      %p237 = pneg %p54
      %s238 = smul.u32 64, %s22
      %p239 = scmp.lt.s32.totalorder %s238, 63
      %s240 = scalar_select %p239, %s238, 63
      %s241 = smul.addr %s240, 4
      %s242 = scalar_lea.vmem %s1, %s241
      %p243 = pneg %p83
      %p244 = pneg %p80
      %p245 = scmp.lt.s32.totalorder %s21, 0
      %s246 = scalar_select %p245, %s21, 0
      %s247 = smul.addr %s246, 4
      %s248 = scalar_lea.vmem %s2, %s247
      %p249 = pneg %p109
      %p250 = pneg %p106
      %p251 = scmp.lt.s32.totalorder %s21, 0
      %s252 = scalar_select %p251, %s21, 0
      %s253 = scalar_lea.vmem %s3, %s252
      %p254 = pneg %p135
      %p255 = pneg %p132
      %p256 = pneg %p163
      %p257 = pneg %p160
      %s258 = smul.u32 32, %s20
      %p259 = scmp.lt.s32.totalorder %s258, 63
      %s260 = scalar_select %p259, %s258, 63
      %p261 = scmp.lt.s32.totalorder %s21, 0
      %s262 = scalar_select %p261, %s21, 0
      %s263 = sadd.s32 %s262, %s260
      %s264 = smul.addr %s263, 4
      %s265 = scalar_lea.vmem %s4, %s264
      %s266 = smul.u32 32, %s20
      %s267 = smul.u32 4, %s22
      %p268 = scmp.lt.s32.totalorder %s266, 63
      %s269 = scalar_select %p268, %s266, 63
      %p270 = scmp.lt.s32.totalorder %s267, 3
      %s271 = scalar_select %p270, %s267, 3
      %s272 = smul.addr %s269, 4
      %s273 = sadd.s32 %s271, %s272
      %s274 = smul.addr %s273, 4
      %s275 = scalar_lea.vmem %s0, %s274
      %s276 = smul.u32 32, %s20
      %s277 = smul.u32 4, %s22
      %s278 = smul.u32 64, %s22
      %p279 = scmp.lt.s32.totalorder %s278, 63
      %s280 = scalar_select %p279, %s278, 63
      %s281 = smul.addr %s280, 4
      %s282 = scalar_lea.vmem %s1, %s281
      %s283 = smul.u32 64, %s22
      %p284 = scmp.lt.s32.totalorder %s21, 0
      %s285 = scalar_select %p284, %s21, 0
      %s286 = smul.addr %s285, 4
      %s287 = scalar_lea.vmem %s2, %s286
      %p288 = scmp.lt.s32.totalorder %s21, 0
      %s289 = scalar_select %p288, %s21, 0
      %s290 = scalar_lea.vmem %s3, %s289
      %s291 = smul.u32 32, %s20
      %p292 = scmp.lt.s32.totalorder %s291, 63
      %s293 = scalar_select %p292, %s291, 63
      %p294 = scmp.lt.s32.totalorder %s21, 0
      %s295 = scalar_select %p294, %s21, 0
      %s296 = sadd.s32 %s295, %s293
      %s297 = smul.addr %s296, 4
      %s298 = scalar_lea.vmem %s4, %s297
      %s299 = smul.u32 32, %s20
      %p300 = scmp.eq.s32.totalorder %s22, 0
      // Predicated region
      $region37: #{gcn1_forward.4} parent=35 // pred_check
        %p301 = pneg %p300
      $region38: #{gcn1_forward.4} parent=35 // pred_check_branch
        %303 = sbr.rel (%p301) target = $region40
      $region39: #{gcn1_forward.4} parent=35 // pred_region
        %304 = vst [vmem:[#allocation2] sm:$0xff] 0.0
        %305 = vst [vmem:[#allocation2 + $0x8] sm:$0xff] 0.0
        %306 = vst [vmem:[#allocation2 + $0x10] sm:$0xff] 0.0
        %307 = vst [vmem:[#allocation2 + $0x18] sm:$0xff] 0.0
        %308 = vst [vmem:[#allocation2 + $0x20] sm:$0xff] 0.0
        %309 = vst [vmem:[#allocation2 + $0x28] sm:$0xff] 0.0
        %310 = vst [vmem:[#allocation2 + $0x30] sm:$0xff] 0.0
        %311 = vst [vmem:[#allocation2 + $0x38] sm:$0xff] 0.0
        %312 = vst [vmem:[#allocation2 + $0x40] sm:$0xff] 0.0
        %313 = vst [vmem:[#allocation2 + $0x48] sm:$0xff] 0.0
        %314 = vst [vmem:[#allocation2 + $0x50] sm:$0xff] 0.0
        %315 = vst [vmem:[#allocation2 + $0x58] sm:$0xff] 0.0
        %316 = vst [vmem:[#allocation2 + $0x60] sm:$0xff] 0.0
        %317 = vst [vmem:[#allocation2 + $0x68] sm:$0xff] 0.0
        %318 = vst [vmem:[#allocation2 + $0x70] sm:$0xff] 0.0
        %319 = vst [vmem:[#allocation2 + $0x78] sm:$0xff] 0.0
        %320 = vst [vmem:[#allocation2 + $0x80] sm:$0xff] 0.0
        %321 = vst [vmem:[#allocation2 + $0x88] sm:$0xff] 0.0
        %322 = vst [vmem:[#allocation2 + $0x90] sm:$0xff] 0.0
        %323 = vst [vmem:[#allocation2 + $0x98] sm:$0xff] 0.0
        %324 = vst [vmem:[#allocation2 + $0xa0] sm:$0xff] 0.0
        %325 = vst [vmem:[#allocation2 + $0xa8] sm:$0xff] 0.0
        %326 = vst [vmem:[#allocation2 + $0xb0] sm:$0xff] 0.0
        %327 = vst [vmem:[#allocation2 + $0xb8] sm:$0xff] 0.0
        %328 = vst [vmem:[#allocation2 + $0xc0] sm:$0xff] 0.0
        %329 = vst [vmem:[#allocation2 + $0xc8] sm:$0xff] 0.0
        %330 = vst [vmem:[#allocation2 + $0xd0] sm:$0xff] 0.0
        %331 = vst [vmem:[#allocation2 + $0xd8] sm:$0xff] 0.0
        %332 = vst [vmem:[#allocation2 + $0xe0] sm:$0xff] 0.0
        %333 = vst [vmem:[#allocation2 + $0xe8] sm:$0xff] 0.0
        %334 = vst [vmem:[#allocation2 + $0xf0] sm:$0xff] 0.0
        %335 = vst [vmem:[#allocation2 + $0xf8] sm:$0xff] 0.0
      $region40: #{gcn1_forward.4} parent=35 // pred_fallthru
        _
      %v336 = vld [vmem:[%s282] sm:$0xf]
      %v337 = vld [vmem:[%s282 + $0x4] sm:$0xf]
      %v338 = vld [vmem:[%s282 + $0x8] sm:$0xf]
      %v339 = vld [vmem:[%s282 + $0xc] sm:$0xf]
      %v340 = vld [vmem:[%s282 + $0x10] sm:$0xf]
      %v341 = vld [vmem:[%s282 + $0x14] sm:$0xf]
      %v342 = vld [vmem:[%s282 + $0x18] sm:$0xf]
      %v343 = vld [vmem:[%s282 + $0x1c] sm:$0xf]
      %v344 = vld [vmem:[%s282 + $0x20] sm:$0xf]
      %v345 = vld [vmem:[%s282 + $0x24] sm:$0xf]
      %v346 = vld [vmem:[%s282 + $0x28] sm:$0xf]
      %v347 = vld [vmem:[%s282 + $0x2c] sm:$0xf]
      %v348 = vld [vmem:[%s282 + $0x30] sm:$0xf]
      %v349 = vld [vmem:[%s282 + $0x34] sm:$0xf]
      %v350 = vld [vmem:[%s282 + $0x38] sm:$0xf]
      %v351 = vld [vmem:[%s282 + $0x3c] sm:$0xf]
      %v352 = vld [vmem:[%s282 + $0x40] sm:$0xf]
      %v353 = vld [vmem:[%s282 + $0x44] sm:$0xf]
      %v354 = vld [vmem:[%s282 + $0x48] sm:$0xf]
      %v355 = vld [vmem:[%s282 + $0x4c] sm:$0xf]
      %v356 = vld [vmem:[%s282 + $0x50] sm:$0xf]
      %v357 = vld [vmem:[%s282 + $0x54] sm:$0xf]
      %v358 = vld [vmem:[%s282 + $0x58] sm:$0xf]
      %v359 = vld [vmem:[%s282 + $0x5c] sm:$0xf]
      %v360 = vld [vmem:[%s282 + $0x60] sm:$0xf]
      %v361 = vld [vmem:[%s282 + $0x64] sm:$0xf]
      %v362 = vld [vmem:[%s282 + $0x68] sm:$0xf]
      %v363 = vld [vmem:[%s282 + $0x6c] sm:$0xf]
      %v364 = vld [vmem:[%s282 + $0x70] sm:$0xf]
      %v365 = vld [vmem:[%s282 + $0x74] sm:$0xf]
      %v366 = vld [vmem:[%s282 + $0x78] sm:$0xf]
      %v367 = vld [vmem:[%s282 + $0x7c] sm:$0xf]
      %v368 = vld [vmem:[%s282 + $0x80] sm:$0xf]
      %v369 = vld [vmem:[%s282 + $0x84] sm:$0xf]
      %v370 = vld [vmem:[%s282 + $0x88] sm:$0xf]
      %v371 = vld [vmem:[%s282 + $0x8c] sm:$0xf]
      %v372 = vld [vmem:[%s282 + $0x90] sm:$0xf]
      %v373 = vld [vmem:[%s282 + $0x94] sm:$0xf]
      %v374 = vld [vmem:[%s282 + $0x98] sm:$0xf]
      %v375 = vld [vmem:[%s282 + $0x9c] sm:$0xf]
      %v376 = vld [vmem:[%s282 + $0xa0] sm:$0xf]
      %v377 = vld [vmem:[%s282 + $0xa4] sm:$0xf]
      %v378 = vld [vmem:[%s282 + $0xa8] sm:$0xf]
      %v379 = vld [vmem:[%s282 + $0xac] sm:$0xf]
      %v380 = vld [vmem:[%s282 + $0xb0] sm:$0xf]
      %v381 = vld [vmem:[%s282 + $0xb4] sm:$0xf]
      %v382 = vld [vmem:[%s282 + $0xb8] sm:$0xf]
      %v383 = vld [vmem:[%s282 + $0xbc] sm:$0xf]
      %v384 = vld [vmem:[%s282 + $0xc0] sm:$0xf]
      %v385 = vld [vmem:[%s282 + $0xc4] sm:$0xf]
      %v386 = vld [vmem:[%s282 + $0xc8] sm:$0xf]
      %v387 = vld [vmem:[%s282 + $0xcc] sm:$0xf]
      %v388 = vld [vmem:[%s282 + $0xd0] sm:$0xf]
      %v389 = vld [vmem:[%s282 + $0xd4] sm:$0xf]
      %v390 = vld [vmem:[%s282 + $0xd8] sm:$0xf]
      %v391 = vld [vmem:[%s282 + $0xdc] sm:$0xf]
      %v392 = vld [vmem:[%s282 + $0xe0] sm:$0xf]
      %v393 = vld [vmem:[%s282 + $0xe4] sm:$0xf]
      %v394 = vld [vmem:[%s282 + $0xe8] sm:$0xf]
      %v395 = vld [vmem:[%s282 + $0xec] sm:$0xf]
      %v396 = vld [vmem:[%s282 + $0xf0] sm:$0xf]
      %v397 = vld [vmem:[%s282 + $0xf4] sm:$0xf]
      %v398 = vld [vmem:[%s282 + $0xf8] sm:$0xf]
      %v399 = vld [vmem:[%s282 + $0xfc] sm:$0xf]
      %v400 = vld [vmem:[%s287] sm:$0xf]
      %v401 = vld [vmem:[%s287 + $0x4] sm:$0xf]
      %v402 = vld [vmem:[%s287 + $0x8] sm:$0xf]
      %v403 = vld [vmem:[%s287 + $0xc] sm:$0xf]
      %v404 = vld [vmem:[%s287 + $0x10] sm:$0xf]
      %v405 = vld [vmem:[%s287 + $0x14] sm:$0xf]
      %v406 = vld [vmem:[%s287 + $0x18] sm:$0xf]
      %v407 = vld [vmem:[%s287 + $0x1c] sm:$0xf]
      %v408 = vld [vmem:[%s287 + $0x20] sm:$0xf]
      %v409 = vld [vmem:[%s287 + $0x24] sm:$0xf]
      %v410 = vld [vmem:[%s287 + $0x28] sm:$0xf]
      %v411 = vld [vmem:[%s287 + $0x2c] sm:$0xf]
      %v412 = vld [vmem:[%s287 + $0x30] sm:$0xf]
      %v413 = vld [vmem:[%s287 + $0x34] sm:$0xf]
      %v414 = vld [vmem:[%s287 + $0x38] sm:$0xf]
      %v415 = vld [vmem:[%s287 + $0x3c] sm:$0xf]
      %v416 = vld [vmem:[%s290] sm:$0x1]
      %v418 = vperm.slane %v416, 0
      %v484 = vunpack.c.l.b16 %v336
      %v485 = vunpack.c.l.b16 %v337
      %v486 = vunpack.c.l.b16 %v338
      %v487 = vunpack.c.l.b16 %v339
      %v488 = vunpack.c.l.b16 %v340
      %v489 = vunpack.c.l.b16 %v341
      %v490 = vunpack.c.l.b16 %v342
      %v491 = vunpack.c.l.b16 %v343
      %v492 = vunpack.c.l.b16 %v344
      %v493 = vunpack.c.l.b16 %v345
      %v494 = vunpack.c.l.b16 %v346
      %v495 = vunpack.c.l.b16 %v347
      %v496 = vunpack.c.l.b16 %v348
      %v497 = vunpack.c.l.b16 %v349
      %v498 = vunpack.c.l.b16 %v350
      %v499 = vunpack.c.l.b16 %v351
      %v500 = vunpack.c.l.b16 %v352
      %v501 = vunpack.c.l.b16 %v353
      %v502 = vunpack.c.l.b16 %v354
      %v503 = vunpack.c.l.b16 %v355
      %v504 = vunpack.c.l.b16 %v356
      %v505 = vunpack.c.l.b16 %v357
      %v506 = vunpack.c.l.b16 %v358
      %v507 = vunpack.c.l.b16 %v359
      %v508 = vunpack.c.l.b16 %v360
      %v509 = vunpack.c.l.b16 %v361
      %v510 = vunpack.c.l.b16 %v362
      %v511 = vunpack.c.l.b16 %v363
      %v512 = vunpack.c.l.b16 %v364
      %v513 = vunpack.c.l.b16 %v365
      %v514 = vunpack.c.l.b16 %v366
      %v515 = vunpack.c.l.b16 %v367
      %v516 = vunpack.c.l.b16 %v368
      %v517 = vunpack.c.l.b16 %v369
      %v518 = vunpack.c.l.b16 %v370
      %v519 = vunpack.c.l.b16 %v371
      %v520 = vunpack.c.l.b16 %v372
      %v521 = vunpack.c.l.b16 %v373
      %v522 = vunpack.c.l.b16 %v374
      %v523 = vunpack.c.l.b16 %v375
      %v524 = vunpack.c.l.b16 %v376
      %v525 = vunpack.c.l.b16 %v377
      %v526 = vunpack.c.l.b16 %v378
      %v527 = vunpack.c.l.b16 %v379
      %v528 = vunpack.c.l.b16 %v380
      %v529 = vunpack.c.l.b16 %v381
      %v530 = vunpack.c.l.b16 %v382
      %v531 = vunpack.c.l.b16 %v383
      %v532 = vunpack.c.l.b16 %v384
      %v533 = vunpack.c.l.b16 %v385
      %v534 = vunpack.c.l.b16 %v386
      %v535 = vunpack.c.l.b16 %v387
      %v536 = vunpack.c.l.b16 %v388
      %v537 = vunpack.c.l.b16 %v389
      %v538 = vunpack.c.l.b16 %v390
      %v539 = vunpack.c.l.b16 %v391
      %v540 = vunpack.c.l.b16 %v392
      %v541 = vunpack.c.l.b16 %v393
      %v542 = vunpack.c.l.b16 %v394
      %v543 = vunpack.c.l.b16 %v395
      %v544 = vunpack.c.l.b16 %v396
      %v545 = vunpack.c.l.b16 %v397
      %v546 = vunpack.c.l.b16 %v398
      %v547 = vunpack.c.l.b16 %v399
      %v548 = vpack.c.b16 %v485, %v484
      %v549 = vpack.c.b16 %v487, %v486
      %v550 = vpack.c.b16 %v489, %v488
      %v551 = vpack.c.b16 %v491, %v490
      %v552 = vpack.c.b16 %v493, %v492
      %v553 = vpack.c.b16 %v495, %v494
      %v554 = vpack.c.b16 %v497, %v496
      %v555 = vpack.c.b16 %v499, %v498
      %v556 = vpack.c.b16 %v501, %v500
      %v557 = vpack.c.b16 %v503, %v502
      %v558 = vpack.c.b16 %v505, %v504
      %v559 = vpack.c.b16 %v507, %v506
      %v560 = vpack.c.b16 %v509, %v508
      %v561 = vpack.c.b16 %v511, %v510
      %v562 = vpack.c.b16 %v513, %v512
      %v563 = vpack.c.b16 %v515, %v514
      %v564 = vpack.c.b16 %v517, %v516
      %v565 = vpack.c.b16 %v519, %v518
      %v566 = vpack.c.b16 %v521, %v520
      %v567 = vpack.c.b16 %v523, %v522
      %v568 = vpack.c.b16 %v525, %v524
      %v569 = vpack.c.b16 %v527, %v526
      %v570 = vpack.c.b16 %v529, %v528
      %v571 = vpack.c.b16 %v531, %v530
      %v572 = vpack.c.b16 %v533, %v532
      %v573 = vpack.c.b16 %v535, %v534
      %v574 = vpack.c.b16 %v537, %v536
      %v575 = vpack.c.b16 %v539, %v538
      %v576 = vpack.c.b16 %v541, %v540
      %v577 = vpack.c.b16 %v543, %v542
      %v578 = vpack.c.b16 %v545, %v544
      %v579 = vpack.c.b16 %v547, %v546
      %v628 = vunpack.c.l.b16 %v400
      %v629 = vunpack.c.l.b16 %v401
      %v630 = vunpack.c.l.b16 %v402
      %v631 = vunpack.c.l.b16 %v403
      %v632 = vunpack.c.l.b16 %v404
      %v633 = vunpack.c.l.b16 %v405
      %v634 = vunpack.c.l.b16 %v406
      %v635 = vunpack.c.l.b16 %v407
      %v636 = vunpack.c.l.b16 %v408
      %v637 = vunpack.c.l.b16 %v409
      %v638 = vunpack.c.l.b16 %v410
      %v639 = vunpack.c.l.b16 %v411
      %v640 = vunpack.c.l.b16 %v412
      %v641 = vunpack.c.l.b16 %v413
      %v642 = vunpack.c.l.b16 %v414
      %v643 = vunpack.c.l.b16 %v415
      %v644 = vpack.c.b16 %v629, %v628
      %v645 = vpack.c.b16 %v631, %v630
      %v646 = vpack.c.b16 %v633, %v632
      %v647 = vpack.c.b16 %v635, %v634
      %v648 = vpack.c.b16 %v637, %v636
      %v649 = vpack.c.b16 %v639, %v638
      %v650 = vpack.c.b16 %v641, %v640
      %v651 = vpack.c.b16 %v643, %v642
      %660 = vmatpush.bf16.msra.mxu0 %v651
      %661 = vmatpush.bf16.msra.mxu0 %v650
      %662 = vmatpush.bf16.msra.mxu0 %v649
      %663 = vmatpush.bf16.msra.mxu0 %v648
      %664 = vmatpush.bf16.msra.mxu0 %v647
      %665 = vmatpush.bf16.msra.mxu0 %v646
      %666 = vmatpush.bf16.msra.mxu0 %v645
      %667 = vmatpush.bf16.msra.mxu0 %v644
      %668 = vmatmul.bf16.gmra.mxu0 %v548
      %v669 = vpop.f32.mrf.mxu0
      %v670 = vadd.f32 %v418, %v669
      %v671 = vpop.f32.mrf.mxu0
      %v672 = vadd.f32 %v418, %v671
      %673 = vmatmul.bf16.gmra.mxu0 %v549
      %v674 = vpop.f32.mrf.mxu0
      %v675 = vadd.f32 %v418, %v674
      %v676 = vpop.f32.mrf.mxu0
      %v677 = vadd.f32 %v418, %v676
      %678 = vmatmul.bf16.gmra.mxu0 %v550
      %v679 = vpop.f32.mrf.mxu0
      %v680 = vadd.f32 %v418, %v679
      %v681 = vpop.f32.mrf.mxu0
      %v682 = vadd.f32 %v418, %v681
      %683 = vmatmul.bf16.gmra.mxu0 %v551
      %v684 = vpop.f32.mrf.mxu0
      %v685 = vadd.f32 %v418, %v684
      %v686 = vpop.f32.mrf.mxu0
      %v687 = vadd.f32 %v418, %v686
      %688 = vmatmul.bf16.gmra.mxu0 %v552
      %v689 = vpop.f32.mrf.mxu0
      %v690 = vadd.f32 %v418, %v689
      %v691 = vpop.f32.mrf.mxu0
      %v692 = vadd.f32 %v418, %v691
      %693 = vmatmul.bf16.gmra.mxu0 %v553
      %v694 = vpop.f32.mrf.mxu0
      %v695 = vadd.f32 %v418, %v694
      %v696 = vpop.f32.mrf.mxu0
      %v697 = vadd.f32 %v418, %v696
      %698 = vmatmul.bf16.gmra.mxu0 %v554
      %v699 = vpop.f32.mrf.mxu0
      %v700 = vadd.f32 %v418, %v699
      %v701 = vpop.f32.mrf.mxu0
      %v702 = vadd.f32 %v418, %v701
      %703 = vmatmul.bf16.gmra.mxu0 %v555
      %v704 = vpop.f32.mrf.mxu0
      %v705 = vadd.f32 %v418, %v704
      %v706 = vpop.f32.mrf.mxu0
      %v707 = vadd.f32 %v418, %v706
      %708 = vmatmul.bf16.gmra.mxu0 %v556
      %v709 = vpop.f32.mrf.mxu0
      %v710 = vadd.f32 %v418, %v709
      %v711 = vpop.f32.mrf.mxu0
      %v712 = vadd.f32 %v418, %v711
      %713 = vmatmul.bf16.gmra.mxu0 %v557
      %v714 = vpop.f32.mrf.mxu0
      %v715 = vadd.f32 %v418, %v714
      %v716 = vpop.f32.mrf.mxu0
      %v717 = vadd.f32 %v418, %v716
      %718 = vmatmul.bf16.gmra.mxu0 %v558
      %v719 = vpop.f32.mrf.mxu0
      %v720 = vadd.f32 %v418, %v719
      %v721 = vpop.f32.mrf.mxu0
      %v722 = vadd.f32 %v418, %v721
      %723 = vmatmul.bf16.gmra.mxu0 %v559
      %v724 = vpop.f32.mrf.mxu0
      %v725 = vadd.f32 %v418, %v724
      %v726 = vpop.f32.mrf.mxu0
      %v727 = vadd.f32 %v418, %v726
      %728 = vmatmul.bf16.gmra.mxu0 %v560
      %v729 = vpop.f32.mrf.mxu0
      %v730 = vadd.f32 %v418, %v729
      %v731 = vpop.f32.mrf.mxu0
      %v732 = vadd.f32 %v418, %v731
      %733 = vmatmul.bf16.gmra.mxu0 %v561
      %v734 = vpop.f32.mrf.mxu0
      %v735 = vadd.f32 %v418, %v734
      %v736 = vpop.f32.mrf.mxu0
      %v737 = vadd.f32 %v418, %v736
      %738 = vmatmul.bf16.gmra.mxu0 %v562
      %v739 = vpop.f32.mrf.mxu0
      %v740 = vadd.f32 %v418, %v739
      %v741 = vpop.f32.mrf.mxu0
      %v742 = vadd.f32 %v418, %v741
      %743 = vmatmul.bf16.gmra.mxu0 %v563
      %v744 = vpop.f32.mrf.mxu0
      %v745 = vadd.f32 %v418, %v744
      %v746 = vpop.f32.mrf.mxu0
      %v747 = vadd.f32 %v418, %v746
      %748 = vmatmul.bf16.gmra.mxu0 %v564
      %v749 = vpop.f32.mrf.mxu0
      %v750 = vadd.f32 %v418, %v749
      %v751 = vpop.f32.mrf.mxu0
      %v752 = vadd.f32 %v418, %v751
      %753 = vmatmul.bf16.gmra.mxu0 %v565
      %v754 = vpop.f32.mrf.mxu0
      %v755 = vadd.f32 %v418, %v754
      %v756 = vpop.f32.mrf.mxu0
      %v757 = vadd.f32 %v418, %v756
      %758 = vmatmul.bf16.gmra.mxu0 %v566
      %v759 = vpop.f32.mrf.mxu0
      %v760 = vadd.f32 %v418, %v759
      %v761 = vpop.f32.mrf.mxu0
      %v762 = vadd.f32 %v418, %v761
      %763 = vmatmul.bf16.gmra.mxu0 %v567
      %v764 = vpop.f32.mrf.mxu0
      %v765 = vadd.f32 %v418, %v764
      %v766 = vpop.f32.mrf.mxu0
      %v767 = vadd.f32 %v418, %v766
      %768 = vmatmul.bf16.gmra.mxu0 %v568
      %v769 = vpop.f32.mrf.mxu0
      %v770 = vadd.f32 %v418, %v769
      %v771 = vpop.f32.mrf.mxu0
      %v772 = vadd.f32 %v418, %v771
      %773 = vmatmul.bf16.gmra.mxu0 %v569
      %v774 = vpop.f32.mrf.mxu0
      %v775 = vadd.f32 %v418, %v774
      %v776 = vpop.f32.mrf.mxu0
      %v777 = vadd.f32 %v418, %v776
      %778 = vmatmul.bf16.gmra.mxu0 %v570
      %v779 = vpop.f32.mrf.mxu0
      %v780 = vadd.f32 %v418, %v779
      %v781 = vpop.f32.mrf.mxu0
      %v782 = vadd.f32 %v418, %v781
      %783 = vmatmul.bf16.gmra.mxu0 %v571
      %v784 = vpop.f32.mrf.mxu0
      %v785 = vadd.f32 %v418, %v784
      %v786 = vpop.f32.mrf.mxu0
      %v787 = vadd.f32 %v418, %v786
      %788 = vmatmul.bf16.gmra.mxu0 %v572
      %v789 = vpop.f32.mrf.mxu0
      %v790 = vadd.f32 %v418, %v789
      %v791 = vpop.f32.mrf.mxu0
      %v792 = vadd.f32 %v418, %v791
      %793 = vmatmul.bf16.gmra.mxu0 %v573
      %v794 = vpop.f32.mrf.mxu0
      %v795 = vadd.f32 %v418, %v794
      %v796 = vpop.f32.mrf.mxu0
      %v797 = vadd.f32 %v418, %v796
      %798 = vmatmul.bf16.gmra.mxu0 %v574
      %v799 = vpop.f32.mrf.mxu0
      %v800 = vadd.f32 %v418, %v799
      %v801 = vpop.f32.mrf.mxu0
      %v802 = vadd.f32 %v418, %v801
      %803 = vmatmul.bf16.gmra.mxu0 %v575
      %v804 = vpop.f32.mrf.mxu0
      %v805 = vadd.f32 %v418, %v804
      %v806 = vpop.f32.mrf.mxu0
      %v807 = vadd.f32 %v418, %v806
      %808 = vmatmul.bf16.gmra.mxu0 %v576
      %v809 = vpop.f32.mrf.mxu0
      %v810 = vadd.f32 %v418, %v809
      %v811 = vpop.f32.mrf.mxu0
      %v812 = vadd.f32 %v418, %v811
      %813 = vmatmul.bf16.gmra.mxu0 %v577
      %v814 = vpop.f32.mrf.mxu0
      %v815 = vadd.f32 %v418, %v814
      %v816 = vpop.f32.mrf.mxu0
      %v817 = vadd.f32 %v418, %v816
      %818 = vmatmul.bf16.gmra.mxu0 %v578
      %v819 = vpop.f32.mrf.mxu0
      %v820 = vadd.f32 %v418, %v819
      %v821 = vpop.f32.mrf.mxu0
      %v822 = vadd.f32 %v418, %v821
      %823 = vmatmul.bf16.gmra.mxu0 %v579
      %v824 = vpop.f32.mrf.mxu0
      %v825 = vadd.f32 %v418, %v824
      %v826 = vpop.f32.mrf.mxu0
      %v827 = vadd.f32 %v418, %v826
      %828 = vdwg.mxu0
      %v829 = vld [vmem:[#allocation2] sm:$0xff]
      %v830 = vld [vmem:[#allocation2 + $0x8] sm:$0xff]
      %v831 = vld [vmem:[#allocation2 + $0x10] sm:$0xff]
      %v832 = vld [vmem:[#allocation2 + $0x18] sm:$0xff]
      %v833 = vld [vmem:[#allocation2 + $0x20] sm:$0xff]
      %v834 = vld [vmem:[#allocation2 + $0x28] sm:$0xff]
      %v835 = vld [vmem:[#allocation2 + $0x30] sm:$0xff]
      %v836 = vld [vmem:[#allocation2 + $0x38] sm:$0xff]
      %v837 = vld [vmem:[#allocation2 + $0x40] sm:$0xff]
      %v838 = vld [vmem:[#allocation2 + $0x48] sm:$0xff]
      %v839 = vld [vmem:[#allocation2 + $0x50] sm:$0xff]
      %v840 = vld [vmem:[#allocation2 + $0x58] sm:$0xff]
      %v841 = vld [vmem:[#allocation2 + $0x60] sm:$0xff]
      %v842 = vld [vmem:[#allocation2 + $0x68] sm:$0xff]
      %v843 = vld [vmem:[#allocation2 + $0x70] sm:$0xff]
      %v844 = vld [vmem:[#allocation2 + $0x78] sm:$0xff]
      %v845 = vld [vmem:[#allocation2 + $0x80] sm:$0xff]
      %v846 = vld [vmem:[#allocation2 + $0x88] sm:$0xff]
      %v847 = vld [vmem:[#allocation2 + $0x90] sm:$0xff]
      %v848 = vld [vmem:[#allocation2 + $0x98] sm:$0xff]
      %v849 = vld [vmem:[#allocation2 + $0xa0] sm:$0xff]
      %v850 = vld [vmem:[#allocation2 + $0xa8] sm:$0xff]
      %v851 = vld [vmem:[#allocation2 + $0xb0] sm:$0xff]
      %v852 = vld [vmem:[#allocation2 + $0xb8] sm:$0xff]
      %v853 = vld [vmem:[#allocation2 + $0xc0] sm:$0xff]
      %v854 = vld [vmem:[#allocation2 + $0xc8] sm:$0xff]
      %v855 = vld [vmem:[#allocation2 + $0xd0] sm:$0xff]
      %v856 = vld [vmem:[#allocation2 + $0xd8] sm:$0xff]
      %v857 = vld [vmem:[#allocation2 + $0xe0] sm:$0xff]
      %v858 = vld [vmem:[#allocation2 + $0xe8] sm:$0xff]
      %v859 = vld [vmem:[#allocation2 + $0xf0] sm:$0xff]
      %v860 = vld [vmem:[#allocation2 + $0xf8] sm:$0xff]
      %v861 = vld [vmem:[%s275] sm:$0xff]
      %v862 = vld [vmem:[%s275 + $0x8] sm:$0xff]
      %v863 = vld [vmem:[%s275 + $0x10] sm:$0xff]
      %v864 = vld [vmem:[%s275 + $0x18] sm:$0xff]
      %v865 = vld [vmem:[%s275 + $0x20] sm:$0xff]
      %v866 = vld [vmem:[%s275 + $0x28] sm:$0xff]
      %v867 = vld [vmem:[%s275 + $0x30] sm:$0xff]
      %v868 = vld [vmem:[%s275 + $0x38] sm:$0xff]
      %v869 = vld [vmem:[%s275 + $0x40] sm:$0xff]
      %v870 = vld [vmem:[%s275 + $0x48] sm:$0xff]
      %v871 = vld [vmem:[%s275 + $0x50] sm:$0xff]
      %v872 = vld [vmem:[%s275 + $0x58] sm:$0xff]
      %v873 = vld [vmem:[%s275 + $0x60] sm:$0xff]
      %v874 = vld [vmem:[%s275 + $0x68] sm:$0xff]
      %v875 = vld [vmem:[%s275 + $0x70] sm:$0xff]
      %v876 = vld [vmem:[%s275 + $0x78] sm:$0xff]
      %v877 = vld [vmem:[%s275 + $0x80] sm:$0xff]
      %v878 = vld [vmem:[%s275 + $0x88] sm:$0xff]
      %v879 = vld [vmem:[%s275 + $0x90] sm:$0xff]
      %v880 = vld [vmem:[%s275 + $0x98] sm:$0xff]
      %v881 = vld [vmem:[%s275 + $0xa0] sm:$0xff]
      %v882 = vld [vmem:[%s275 + $0xa8] sm:$0xff]
      %v883 = vld [vmem:[%s275 + $0xb0] sm:$0xff]
      %v884 = vld [vmem:[%s275 + $0xb8] sm:$0xff]
      %v885 = vld [vmem:[%s275 + $0xc0] sm:$0xff]
      %v886 = vld [vmem:[%s275 + $0xc8] sm:$0xff]
      %v887 = vld [vmem:[%s275 + $0xd0] sm:$0xff]
      %v888 = vld [vmem:[%s275 + $0xd8] sm:$0xff]
      %v889 = vld [vmem:[%s275 + $0xe0] sm:$0xff]
      %v890 = vld [vmem:[%s275 + $0xe8] sm:$0xff]
      %v891 = vld [vmem:[%s275 + $0xf0] sm:$0xff]
      %v892 = vld [vmem:[%s275 + $0xf8] sm:$0xff]
      %v893 = vld [vmem:[%s275 + $0x100] sm:$0xff]
      %v894 = vld [vmem:[%s275 + $0x108] sm:$0xff]
      %v895 = vld [vmem:[%s275 + $0x110] sm:$0xff]
      %v896 = vld [vmem:[%s275 + $0x118] sm:$0xff]
      %v897 = vld [vmem:[%s275 + $0x120] sm:$0xff]
      %v898 = vld [vmem:[%s275 + $0x128] sm:$0xff]
      %v899 = vld [vmem:[%s275 + $0x130] sm:$0xff]
      %v900 = vld [vmem:[%s275 + $0x138] sm:$0xff]
      %v901 = vld [vmem:[%s275 + $0x140] sm:$0xff]
      %v902 = vld [vmem:[%s275 + $0x148] sm:$0xff]
      %v903 = vld [vmem:[%s275 + $0x150] sm:$0xff]
      %v904 = vld [vmem:[%s275 + $0x158] sm:$0xff]
      %v905 = vld [vmem:[%s275 + $0x160] sm:$0xff]
      %v906 = vld [vmem:[%s275 + $0x168] sm:$0xff]
      %v907 = vld [vmem:[%s275 + $0x170] sm:$0xff]
      %v908 = vld [vmem:[%s275 + $0x178] sm:$0xff]
      %v909 = vld [vmem:[%s275 + $0x180] sm:$0xff]
      %v910 = vld [vmem:[%s275 + $0x188] sm:$0xff]
      %v911 = vld [vmem:[%s275 + $0x190] sm:$0xff]
      %v912 = vld [vmem:[%s275 + $0x198] sm:$0xff]
      %v913 = vld [vmem:[%s275 + $0x1a0] sm:$0xff]
      %v914 = vld [vmem:[%s275 + $0x1a8] sm:$0xff]
      %v915 = vld [vmem:[%s275 + $0x1b0] sm:$0xff]
      %v916 = vld [vmem:[%s275 + $0x1b8] sm:$0xff]
      %v917 = vld [vmem:[%s275 + $0x1c0] sm:$0xff]
      %v918 = vld [vmem:[%s275 + $0x1c8] sm:$0xff]
      %v919 = vld [vmem:[%s275 + $0x1d0] sm:$0xff]
      %v920 = vld [vmem:[%s275 + $0x1d8] sm:$0xff]
      %v921 = vld [vmem:[%s275 + $0x1e0] sm:$0xff]
      %v922 = vld [vmem:[%s275 + $0x1e8] sm:$0xff]
      %v923 = vld [vmem:[%s275 + $0x1f0] sm:$0xff]
      %v924 = vld [vmem:[%s275 + $0x1f8] sm:$0xff]
      %v925 = vpack.c.bf16 %v672, %v670
      %v926 = vpack.c.bf16 %v677, %v675
      %v927 = vpack.c.bf16 %v682, %v680
      %v928 = vpack.c.bf16 %v687, %v685
      %v929 = vpack.c.bf16 %v692, %v690
      %v930 = vpack.c.bf16 %v697, %v695
      %v931 = vpack.c.bf16 %v702, %v700
      %v932 = vpack.c.bf16 %v707, %v705
      %v933 = vpack.c.bf16 %v712, %v710
      %v934 = vpack.c.bf16 %v717, %v715
      %v935 = vpack.c.bf16 %v722, %v720
      %v936 = vpack.c.bf16 %v727, %v725
      %v937 = vpack.c.bf16 %v732, %v730
      %v938 = vpack.c.bf16 %v737, %v735
      %v939 = vpack.c.bf16 %v742, %v740
      %v940 = vpack.c.bf16 %v747, %v745
      %v941 = vpack.c.bf16 %v752, %v750
      %v942 = vpack.c.bf16 %v757, %v755
      %v943 = vpack.c.bf16 %v762, %v760
      %v944 = vpack.c.bf16 %v767, %v765
      %v945 = vpack.c.bf16 %v772, %v770
      %v946 = vpack.c.bf16 %v777, %v775
      %v947 = vpack.c.bf16 %v782, %v780
      %v948 = vpack.c.bf16 %v787, %v785
      %v949 = vpack.c.bf16 %v792, %v790
      %v950 = vpack.c.bf16 %v797, %v795
      %v951 = vpack.c.bf16 %v802, %v800
      %v952 = vpack.c.bf16 %v807, %v805
      %v953 = vpack.c.bf16 %v812, %v810
      %v954 = vpack.c.bf16 %v817, %v815
      %v955 = vpack.c.bf16 %v822, %v820
      %v956 = vpack.c.bf16 %v827, %v825
      %v1021 = vunpack.c.l.b16 %v861
      %v1022 = vunpack.c.h.b16 %v861
      %v1023 = vunpack.c.l.b16 %v862
      %v1024 = vunpack.c.h.b16 %v862
      %v1025 = vunpack.c.l.b16 %v863
      %v1026 = vunpack.c.h.b16 %v863
      %v1027 = vunpack.c.l.b16 %v864
      %v1028 = vunpack.c.h.b16 %v864
      %v1029 = vunpack.c.l.b16 %v865
      %v1030 = vunpack.c.h.b16 %v865
      %v1031 = vunpack.c.l.b16 %v866
      %v1032 = vunpack.c.h.b16 %v866
      %v1033 = vunpack.c.l.b16 %v867
      %v1034 = vunpack.c.h.b16 %v867
      %v1035 = vunpack.c.l.b16 %v868
      %v1036 = vunpack.c.h.b16 %v868
      %v1037 = vunpack.c.l.b16 %v869
      %v1038 = vunpack.c.h.b16 %v869
      %v1039 = vunpack.c.l.b16 %v870
      %v1040 = vunpack.c.h.b16 %v870
      %v1041 = vunpack.c.l.b16 %v871
      %v1042 = vunpack.c.h.b16 %v871
      %v1043 = vunpack.c.l.b16 %v872
      %v1044 = vunpack.c.h.b16 %v872
      %v1045 = vunpack.c.l.b16 %v873
      %v1046 = vunpack.c.h.b16 %v873
      %v1047 = vunpack.c.l.b16 %v874
      %v1048 = vunpack.c.h.b16 %v874
      %v1049 = vunpack.c.l.b16 %v875
      %v1050 = vunpack.c.h.b16 %v875
      %v1051 = vunpack.c.l.b16 %v876
      %v1052 = vunpack.c.h.b16 %v876
      %v1053 = vunpack.c.l.b16 %v877
      %v1054 = vunpack.c.h.b16 %v877
      %v1055 = vunpack.c.l.b16 %v878
      %v1056 = vunpack.c.h.b16 %v878
      %v1057 = vunpack.c.l.b16 %v879
      %v1058 = vunpack.c.h.b16 %v879
      %v1059 = vunpack.c.l.b16 %v880
      %v1060 = vunpack.c.h.b16 %v880
      %v1061 = vunpack.c.l.b16 %v881
      %v1062 = vunpack.c.h.b16 %v881
      %v1063 = vunpack.c.l.b16 %v882
      %v1064 = vunpack.c.h.b16 %v882
      %v1065 = vunpack.c.l.b16 %v883
      %v1066 = vunpack.c.h.b16 %v883
      %v1067 = vunpack.c.l.b16 %v884
      %v1068 = vunpack.c.h.b16 %v884
      %v1069 = vunpack.c.l.b16 %v885
      %v1070 = vunpack.c.h.b16 %v885
      %v1071 = vunpack.c.l.b16 %v886
      %v1072 = vunpack.c.h.b16 %v886
      %v1073 = vunpack.c.l.b16 %v887
      %v1074 = vunpack.c.h.b16 %v887
      %v1075 = vunpack.c.l.b16 %v888
      %v1076 = vunpack.c.h.b16 %v888
      %v1077 = vunpack.c.l.b16 %v889
      %v1078 = vunpack.c.h.b16 %v889
      %v1079 = vunpack.c.l.b16 %v890
      %v1080 = vunpack.c.h.b16 %v890
      %v1081 = vunpack.c.l.b16 %v891
      %v1082 = vunpack.c.h.b16 %v891
      %v1083 = vunpack.c.l.b16 %v892
      %v1084 = vunpack.c.h.b16 %v892
      %v1085 = vunpack.c.l.b16 %v893
      %v1086 = vunpack.c.h.b16 %v893
      %v1087 = vunpack.c.l.b16 %v894
      %v1088 = vunpack.c.h.b16 %v894
      %v1089 = vunpack.c.l.b16 %v895
      %v1090 = vunpack.c.h.b16 %v895
      %v1091 = vunpack.c.l.b16 %v896
      %v1092 = vunpack.c.h.b16 %v896
      %v1093 = vunpack.c.l.b16 %v897
      %v1094 = vunpack.c.h.b16 %v897
      %v1095 = vunpack.c.l.b16 %v898
      %v1096 = vunpack.c.h.b16 %v898
      %v1097 = vunpack.c.l.b16 %v899
      %v1098 = vunpack.c.h.b16 %v899
      %v1099 = vunpack.c.l.b16 %v900
      %v1100 = vunpack.c.h.b16 %v900
      %v1101 = vunpack.c.l.b16 %v901
      %v1102 = vunpack.c.h.b16 %v901
      %v1103 = vunpack.c.l.b16 %v902
      %v1104 = vunpack.c.h.b16 %v902
      %v1105 = vunpack.c.l.b16 %v903
      %v1106 = vunpack.c.h.b16 %v903
      %v1107 = vunpack.c.l.b16 %v904
      %v1108 = vunpack.c.h.b16 %v904
      %v1109 = vunpack.c.l.b16 %v905
      %v1110 = vunpack.c.h.b16 %v905
      %v1111 = vunpack.c.l.b16 %v906
      %v1112 = vunpack.c.h.b16 %v906
      %v1113 = vunpack.c.l.b16 %v907
      %v1114 = vunpack.c.h.b16 %v907
      %v1115 = vunpack.c.l.b16 %v908
      %v1116 = vunpack.c.h.b16 %v908
      %v1117 = vunpack.c.l.b16 %v909
      %v1118 = vunpack.c.h.b16 %v909
      %v1119 = vunpack.c.l.b16 %v910
      %v1120 = vunpack.c.h.b16 %v910
      %v1121 = vunpack.c.l.b16 %v911
      %v1122 = vunpack.c.h.b16 %v911
      %v1123 = vunpack.c.l.b16 %v912
      %v1124 = vunpack.c.h.b16 %v912
      %v1125 = vunpack.c.l.b16 %v913
      %v1126 = vunpack.c.h.b16 %v913
      %v1127 = vunpack.c.l.b16 %v914
      %v1128 = vunpack.c.h.b16 %v914
      %v1129 = vunpack.c.l.b16 %v915
      %v1130 = vunpack.c.h.b16 %v915
      %v1131 = vunpack.c.l.b16 %v916
      %v1132 = vunpack.c.h.b16 %v916
      %v1133 = vunpack.c.l.b16 %v917
      %v1134 = vunpack.c.h.b16 %v917
      %v1135 = vunpack.c.l.b16 %v918
      %v1136 = vunpack.c.h.b16 %v918
      %v1137 = vunpack.c.l.b16 %v919
      %v1138 = vunpack.c.h.b16 %v919
      %v1139 = vunpack.c.l.b16 %v920
      %v1140 = vunpack.c.h.b16 %v920
      %v1141 = vunpack.c.l.b16 %v921
      %v1142 = vunpack.c.h.b16 %v921
      %v1143 = vunpack.c.l.b16 %v922
      %v1144 = vunpack.c.h.b16 %v922
      %v1145 = vunpack.c.l.b16 %v923
      %v1146 = vunpack.c.h.b16 %v923
      %v1147 = vunpack.c.l.b16 %v924
      %v1148 = vunpack.c.h.b16 %v924
      %v1149 = vpack.c.b16 %v1025, %v1021
      %v1150 = vpack.c.b16 %v1026, %v1022
      %v1151 = vpack.c.b16 %v1027, %v1023
      %v1152 = vpack.c.b16 %v1028, %v1024
      %v1153 = vpack.c.b16 %v1033, %v1029
      %v1154 = vpack.c.b16 %v1034, %v1030
      %v1155 = vpack.c.b16 %v1035, %v1031
      %v1156 = vpack.c.b16 %v1036, %v1032
      %v1157 = vpack.c.b16 %v1041, %v1037
      %v1158 = vpack.c.b16 %v1042, %v1038
      %v1159 = vpack.c.b16 %v1043, %v1039
      %v1160 = vpack.c.b16 %v1044, %v1040
      %v1161 = vpack.c.b16 %v1049, %v1045
      %v1162 = vpack.c.b16 %v1050, %v1046
      %v1163 = vpack.c.b16 %v1051, %v1047
      %v1164 = vpack.c.b16 %v1052, %v1048
      %v1165 = vpack.c.b16 %v1057, %v1053
      %v1166 = vpack.c.b16 %v1058, %v1054
      %v1167 = vpack.c.b16 %v1059, %v1055
      %v1168 = vpack.c.b16 %v1060, %v1056
      %v1169 = vpack.c.b16 %v1065, %v1061
      %v1170 = vpack.c.b16 %v1066, %v1062
      %v1171 = vpack.c.b16 %v1067, %v1063
      %v1172 = vpack.c.b16 %v1068, %v1064
      %v1173 = vpack.c.b16 %v1073, %v1069
      %v1174 = vpack.c.b16 %v1074, %v1070
      %v1175 = vpack.c.b16 %v1075, %v1071
      %v1176 = vpack.c.b16 %v1076, %v1072
      %v1177 = vpack.c.b16 %v1081, %v1077
      %v1178 = vpack.c.b16 %v1082, %v1078
      %v1179 = vpack.c.b16 %v1083, %v1079
      %v1180 = vpack.c.b16 %v1084, %v1080
      %v1181 = vpack.c.b16 %v1089, %v1085
      %v1182 = vpack.c.b16 %v1090, %v1086
      %v1183 = vpack.c.b16 %v1091, %v1087
      %v1184 = vpack.c.b16 %v1092, %v1088
      %v1185 = vpack.c.b16 %v1097, %v1093
      %v1186 = vpack.c.b16 %v1098, %v1094
      %v1187 = vpack.c.b16 %v1099, %v1095
      %v1188 = vpack.c.b16 %v1100, %v1096
      %v1189 = vpack.c.b16 %v1105, %v1101
      %v1190 = vpack.c.b16 %v1106, %v1102
      %v1191 = vpack.c.b16 %v1107, %v1103
      %v1192 = vpack.c.b16 %v1108, %v1104
      %v1193 = vpack.c.b16 %v1113, %v1109
      %v1194 = vpack.c.b16 %v1114, %v1110
      %v1195 = vpack.c.b16 %v1115, %v1111
      %v1196 = vpack.c.b16 %v1116, %v1112
      %v1197 = vpack.c.b16 %v1121, %v1117
      %v1198 = vpack.c.b16 %v1122, %v1118
      %v1199 = vpack.c.b16 %v1123, %v1119
      %v1200 = vpack.c.b16 %v1124, %v1120
      %v1201 = vpack.c.b16 %v1129, %v1125
      %v1202 = vpack.c.b16 %v1130, %v1126
      %v1203 = vpack.c.b16 %v1131, %v1127
      %v1204 = vpack.c.b16 %v1132, %v1128
      %v1205 = vpack.c.b16 %v1137, %v1133
      %v1206 = vpack.c.b16 %v1138, %v1134
      %v1207 = vpack.c.b16 %v1139, %v1135
      %v1208 = vpack.c.b16 %v1140, %v1136
      %v1209 = vpack.c.b16 %v1145, %v1141
      %v1210 = vpack.c.b16 %v1146, %v1142
      %v1211 = vpack.c.b16 %v1147, %v1143
      %v1212 = vpack.c.b16 %v1148, %v1144
      %1277 = vmatpush.bf16.msra.mxu0 %v932
      %1278 = vmatpush.bf16.msra.mxu0 %v931
      %1279 = vmatpush.bf16.msra.mxu0 %v930
      %1280 = vmatpush.bf16.msra.mxu0 %v929
      %1281 = vmatpush.bf16.msra.mxu0 %v928
      %1282 = vmatpush.bf16.msra.mxu0 %v927
      %1283 = vmatpush.bf16.msra.mxu0 %v926
      %1284 = vmatpush.bf16.msra.mxu0 %v925
      %1285 = vmatmul.bf16.gmra.mxu0 %v1149
      %v1286 = vpop.f32.mrf.mxu0
      %v1287 = vadd.f32 0.0, %v1286
      %v1288 = vpop.f32.mrf.mxu0
      %v1289 = vadd.f32 0.0, %v1288
      %1290 = vmatmul.bf16.gmra.mxu0 %v1153
      %v1291 = vpop.f32.mrf.mxu0
      %v1292 = vadd.f32 0.0, %v1291
      %v1293 = vpop.f32.mrf.mxu0
      %v1294 = vadd.f32 0.0, %v1293
      %1295 = vmatmul.bf16.gmra.mxu0 %v1157
      %v1296 = vpop.f32.mrf.mxu0
      %v1297 = vadd.f32 0.0, %v1296
      %v1298 = vpop.f32.mrf.mxu0
      %v1299 = vadd.f32 0.0, %v1298
      %1300 = vmatmul.bf16.gmra.mxu0 %v1161
      %v1301 = vpop.f32.mrf.mxu0
      %v1302 = vadd.f32 0.0, %v1301
      %v1303 = vpop.f32.mrf.mxu0
      %v1304 = vadd.f32 0.0, %v1303
      %1305 = vmatmul.bf16.gmra.mxu0 %v1165
      %v1306 = vpop.f32.mrf.mxu0
      %v1307 = vadd.f32 0.0, %v1306
      %v1308 = vpop.f32.mrf.mxu0
      %v1309 = vadd.f32 0.0, %v1308
      %1310 = vmatmul.bf16.gmra.mxu0 %v1169
      %v1311 = vpop.f32.mrf.mxu0
      %v1312 = vadd.f32 0.0, %v1311
      %v1313 = vpop.f32.mrf.mxu0
      %v1314 = vadd.f32 0.0, %v1313
      %1315 = vmatmul.bf16.gmra.mxu0 %v1173
      %v1316 = vpop.f32.mrf.mxu0
      %v1317 = vadd.f32 0.0, %v1316
      %v1318 = vpop.f32.mrf.mxu0
      %v1319 = vadd.f32 0.0, %v1318
      %1320 = vmatmul.bf16.gmra.mxu0 %v1177
      %v1321 = vpop.f32.mrf.mxu0
      %v1322 = vadd.f32 0.0, %v1321
      %v1323 = vpop.f32.mrf.mxu0
      %v1324 = vadd.f32 0.0, %v1323
      %1325 = vmatmul.bf16.gmra.mxu0 %v1181
      %v1326 = vpop.f32.mrf.mxu0
      %v1327 = vadd.f32 0.0, %v1326
      %v1328 = vpop.f32.mrf.mxu0
      %v1329 = vadd.f32 0.0, %v1328
      %1330 = vmatmul.bf16.gmra.mxu0 %v1185
      %v1331 = vpop.f32.mrf.mxu0
      %v1332 = vadd.f32 0.0, %v1331
      %v1333 = vpop.f32.mrf.mxu0
      %v1334 = vadd.f32 0.0, %v1333
      %1335 = vmatmul.bf16.gmra.mxu0 %v1189
      %v1336 = vpop.f32.mrf.mxu0
      %v1337 = vadd.f32 0.0, %v1336
      %v1338 = vpop.f32.mrf.mxu0
      %v1339 = vadd.f32 0.0, %v1338
      %1340 = vmatmul.bf16.gmra.mxu0 %v1193
      %v1341 = vpop.f32.mrf.mxu0
      %v1342 = vadd.f32 0.0, %v1341
      %v1343 = vpop.f32.mrf.mxu0
      %v1344 = vadd.f32 0.0, %v1343
      %1345 = vmatmul.bf16.gmra.mxu0 %v1197
      %v1346 = vpop.f32.mrf.mxu0
      %v1347 = vadd.f32 0.0, %v1346
      %v1348 = vpop.f32.mrf.mxu0
      %v1349 = vadd.f32 0.0, %v1348
      %1350 = vmatmul.bf16.gmra.mxu0 %v1201
      %v1351 = vpop.f32.mrf.mxu0
      %v1352 = vadd.f32 0.0, %v1351
      %v1353 = vpop.f32.mrf.mxu0
      %v1354 = vadd.f32 0.0, %v1353
      %1355 = vmatmul.bf16.gmra.mxu0 %v1205
      %v1356 = vpop.f32.mrf.mxu0
      %v1357 = vadd.f32 0.0, %v1356
      %v1358 = vpop.f32.mrf.mxu0
      %v1359 = vadd.f32 0.0, %v1358
      %1360 = vmatmul.bf16.gmra.mxu0 %v1209
      %v1361 = vpop.f32.mrf.mxu0
      %v1362 = vadd.f32 0.0, %v1361
      %v1363 = vpop.f32.mrf.mxu0
      %v1364 = vadd.f32 0.0, %v1363
      %1365 = vdwg.mxu0
      %1366 = vmatpush.bf16.msra.mxu0 %v940
      %1367 = vmatpush.bf16.msra.mxu0 %v939
      %1368 = vmatpush.bf16.msra.mxu0 %v938
      %1369 = vmatpush.bf16.msra.mxu0 %v937
      %1370 = vmatpush.bf16.msra.mxu0 %v936
      %1371 = vmatpush.bf16.msra.mxu0 %v935
      %1372 = vmatpush.bf16.msra.mxu0 %v934
      %1373 = vmatpush.bf16.msra.mxu0 %v933
      %1374 = vmatmul.bf16.gmra.mxu0 %v1150
      %v1375 = vpop.f32.mrf.mxu0
      %v1376 = vadd.f32 %v1287, %v1375
      %v1377 = vpop.f32.mrf.mxu0
      %v1378 = vadd.f32 %v1289, %v1377
      %1379 = vmatmul.bf16.gmra.mxu0 %v1154
      %v1380 = vpop.f32.mrf.mxu0
      %v1381 = vadd.f32 %v1292, %v1380
      %v1382 = vpop.f32.mrf.mxu0
      %v1383 = vadd.f32 %v1294, %v1382
      %1384 = vmatmul.bf16.gmra.mxu0 %v1158
      %v1385 = vpop.f32.mrf.mxu0
      %v1386 = vadd.f32 %v1297, %v1385
      %v1387 = vpop.f32.mrf.mxu0
      %v1388 = vadd.f32 %v1299, %v1387
      %1389 = vmatmul.bf16.gmra.mxu0 %v1162
      %v1390 = vpop.f32.mrf.mxu0
      %v1391 = vadd.f32 %v1302, %v1390
      %v1392 = vpop.f32.mrf.mxu0
      %v1393 = vadd.f32 %v1304, %v1392
      %1394 = vmatmul.bf16.gmra.mxu0 %v1166
      %v1395 = vpop.f32.mrf.mxu0
      %v1396 = vadd.f32 %v1307, %v1395
      %v1397 = vpop.f32.mrf.mxu0
      %v1398 = vadd.f32 %v1309, %v1397
      %1399 = vmatmul.bf16.gmra.mxu0 %v1170
      %v1400 = vpop.f32.mrf.mxu0
      %v1401 = vadd.f32 %v1312, %v1400
      %v1402 = vpop.f32.mrf.mxu0
      %v1403 = vadd.f32 %v1314, %v1402
      %1404 = vmatmul.bf16.gmra.mxu0 %v1174
      %v1405 = vpop.f32.mrf.mxu0
      %v1406 = vadd.f32 %v1317, %v1405
      %v1407 = vpop.f32.mrf.mxu0
      %v1408 = vadd.f32 %v1319, %v1407
      %1409 = vmatmul.bf16.gmra.mxu0 %v1178
      %v1410 = vpop.f32.mrf.mxu0
      %v1411 = vadd.f32 %v1322, %v1410
      %v1412 = vpop.f32.mrf.mxu0
      %v1413 = vadd.f32 %v1324, %v1412
      %1414 = vmatmul.bf16.gmra.mxu0 %v1182
      %v1415 = vpop.f32.mrf.mxu0
      %v1416 = vadd.f32 %v1327, %v1415
      %v1417 = vpop.f32.mrf.mxu0
      %v1418 = vadd.f32 %v1329, %v1417
      %1419 = vmatmul.bf16.gmra.mxu0 %v1186
      %v1420 = vpop.f32.mrf.mxu0
      %v1421 = vadd.f32 %v1332, %v1420
      %v1422 = vpop.f32.mrf.mxu0
      %v1423 = vadd.f32 %v1334, %v1422
      %1424 = vmatmul.bf16.gmra.mxu0 %v1190
      %v1425 = vpop.f32.mrf.mxu0
      %v1426 = vadd.f32 %v1337, %v1425
      %v1427 = vpop.f32.mrf.mxu0
      %v1428 = vadd.f32 %v1339, %v1427
      %1429 = vmatmul.bf16.gmra.mxu0 %v1194
      %v1430 = vpop.f32.mrf.mxu0
      %v1431 = vadd.f32 %v1342, %v1430
      %v1432 = vpop.f32.mrf.mxu0
      %v1433 = vadd.f32 %v1344, %v1432
      %1434 = vmatmul.bf16.gmra.mxu0 %v1198
      %v1435 = vpop.f32.mrf.mxu0
      %v1436 = vadd.f32 %v1347, %v1435
      %v1437 = vpop.f32.mrf.mxu0
      %v1438 = vadd.f32 %v1349, %v1437
      %1439 = vmatmul.bf16.gmra.mxu0 %v1202
      %v1440 = vpop.f32.mrf.mxu0
      %v1441 = vadd.f32 %v1352, %v1440
      %v1442 = vpop.f32.mrf.mxu0
      %v1443 = vadd.f32 %v1354, %v1442
      %1444 = vmatmul.bf16.gmra.mxu0 %v1206
      %v1445 = vpop.f32.mrf.mxu0
      %v1446 = vadd.f32 %v1357, %v1445
      %v1447 = vpop.f32.mrf.mxu0
      %v1448 = vadd.f32 %v1359, %v1447
      %1449 = vmatmul.bf16.gmra.mxu0 %v1210
      %v1450 = vpop.f32.mrf.mxu0
      %v1451 = vadd.f32 %v1362, %v1450
      %v1452 = vpop.f32.mrf.mxu0
      %v1453 = vadd.f32 %v1364, %v1452
      %1454 = vdwg.mxu0
      %1455 = vmatpush.bf16.msra.mxu0 %v948
      %1456 = vmatpush.bf16.msra.mxu0 %v947
      %1457 = vmatpush.bf16.msra.mxu0 %v946
      %1458 = vmatpush.bf16.msra.mxu0 %v945
      %1459 = vmatpush.bf16.msra.mxu0 %v944
      %1460 = vmatpush.bf16.msra.mxu0 %v943
      %1461 = vmatpush.bf16.msra.mxu0 %v942
      %1462 = vmatpush.bf16.msra.mxu0 %v941
      %1463 = vmatmul.bf16.gmra.mxu0 %v1151
      %v1464 = vpop.f32.mrf.mxu0
      %v1465 = vadd.f32 %v1376, %v1464
      %v1466 = vpop.f32.mrf.mxu0
      %v1467 = vadd.f32 %v1378, %v1466
      %1468 = vmatmul.bf16.gmra.mxu0 %v1155
      %v1469 = vpop.f32.mrf.mxu0
      %v1470 = vadd.f32 %v1381, %v1469
      %v1471 = vpop.f32.mrf.mxu0
      %v1472 = vadd.f32 %v1383, %v1471
      %1473 = vmatmul.bf16.gmra.mxu0 %v1159
      %v1474 = vpop.f32.mrf.mxu0
      %v1475 = vadd.f32 %v1386, %v1474
      %v1476 = vpop.f32.mrf.mxu0
      %v1477 = vadd.f32 %v1388, %v1476
      %1478 = vmatmul.bf16.gmra.mxu0 %v1163
      %v1479 = vpop.f32.mrf.mxu0
      %v1480 = vadd.f32 %v1391, %v1479
      %v1481 = vpop.f32.mrf.mxu0
      %v1482 = vadd.f32 %v1393, %v1481
      %1483 = vmatmul.bf16.gmra.mxu0 %v1167
      %v1484 = vpop.f32.mrf.mxu0
      %v1485 = vadd.f32 %v1396, %v1484
      %v1486 = vpop.f32.mrf.mxu0
      %v1487 = vadd.f32 %v1398, %v1486
      %1488 = vmatmul.bf16.gmra.mxu0 %v1171
      %v1489 = vpop.f32.mrf.mxu0
      %v1490 = vadd.f32 %v1401, %v1489
      %v1491 = vpop.f32.mrf.mxu0
      %v1492 = vadd.f32 %v1403, %v1491
      %1493 = vmatmul.bf16.gmra.mxu0 %v1175
      %v1494 = vpop.f32.mrf.mxu0
      %v1495 = vadd.f32 %v1406, %v1494
      %v1496 = vpop.f32.mrf.mxu0
      %v1497 = vadd.f32 %v1408, %v1496
      %1498 = vmatmul.bf16.gmra.mxu0 %v1179
      %v1499 = vpop.f32.mrf.mxu0
      %v1500 = vadd.f32 %v1411, %v1499
      %v1501 = vpop.f32.mrf.mxu0
      %v1502 = vadd.f32 %v1413, %v1501
      %1503 = vmatmul.bf16.gmra.mxu0 %v1183
      %v1504 = vpop.f32.mrf.mxu0
      %v1505 = vadd.f32 %v1416, %v1504
      %v1506 = vpop.f32.mrf.mxu0
      %v1507 = vadd.f32 %v1418, %v1506
      %1508 = vmatmul.bf16.gmra.mxu0 %v1187
      %v1509 = vpop.f32.mrf.mxu0
      %v1510 = vadd.f32 %v1421, %v1509
      %v1511 = vpop.f32.mrf.mxu0
      %v1512 = vadd.f32 %v1423, %v1511
      %1513 = vmatmul.bf16.gmra.mxu0 %v1191
      %v1514 = vpop.f32.mrf.mxu0
      %v1515 = vadd.f32 %v1426, %v1514
      %v1516 = vpop.f32.mrf.mxu0
      %v1517 = vadd.f32 %v1428, %v1516
      %1518 = vmatmul.bf16.gmra.mxu0 %v1195
      %v1519 = vpop.f32.mrf.mxu0
      %v1520 = vadd.f32 %v1431, %v1519
      %v1521 = vpop.f32.mrf.mxu0
      %v1522 = vadd.f32 %v1433, %v1521
      %1523 = vmatmul.bf16.gmra.mxu0 %v1199
      %v1524 = vpop.f32.mrf.mxu0
      %v1525 = vadd.f32 %v1436, %v1524
      %v1526 = vpop.f32.mrf.mxu0
      %v1527 = vadd.f32 %v1438, %v1526
      %1528 = vmatmul.bf16.gmra.mxu0 %v1203
      %v1529 = vpop.f32.mrf.mxu0
      %v1530 = vadd.f32 %v1441, %v1529
      %v1531 = vpop.f32.mrf.mxu0
      %v1532 = vadd.f32 %v1443, %v1531
      %1533 = vmatmul.bf16.gmra.mxu0 %v1207
      %v1534 = vpop.f32.mrf.mxu0
      %v1535 = vadd.f32 %v1446, %v1534
      %v1536 = vpop.f32.mrf.mxu0
      %v1537 = vadd.f32 %v1448, %v1536
      %1538 = vmatmul.bf16.gmra.mxu0 %v1211
      %v1539 = vpop.f32.mrf.mxu0
      %v1540 = vadd.f32 %v1451, %v1539
      %v1541 = vpop.f32.mrf.mxu0
      %v1542 = vadd.f32 %v1453, %v1541
      %1543 = vdwg.mxu0
      %1544 = vmatpush.bf16.msra.mxu0 %v956
      %1545 = vmatpush.bf16.msra.mxu0 %v955
      %1546 = vmatpush.bf16.msra.mxu0 %v954
      %1547 = vmatpush.bf16.msra.mxu0 %v953
      %1548 = vmatpush.bf16.msra.mxu0 %v952
      %1549 = vmatpush.bf16.msra.mxu0 %v951
      %1550 = vmatpush.bf16.msra.mxu0 %v950
      %1551 = vmatpush.bf16.msra.mxu0 %v949
      %1552 = vmatmul.bf16.gmra.mxu0 %v1152
      %v1553 = vpop.f32.mrf.mxu0
      %v1554 = vadd.f32 %v1465, %v1553
      %v1555 = vpop.f32.mrf.mxu0
      %v1556 = vadd.f32 %v1467, %v1555
      %1557 = vmatmul.bf16.gmra.mxu0 %v1156
      %v1558 = vpop.f32.mrf.mxu0
      %v1559 = vadd.f32 %v1470, %v1558
      %v1560 = vpop.f32.mrf.mxu0
      %v1561 = vadd.f32 %v1472, %v1560
      %1562 = vmatmul.bf16.gmra.mxu0 %v1160
      %v1563 = vpop.f32.mrf.mxu0
      %v1564 = vadd.f32 %v1475, %v1563
      %v1565 = vpop.f32.mrf.mxu0
      %v1566 = vadd.f32 %v1477, %v1565
      %1567 = vmatmul.bf16.gmra.mxu0 %v1164
      %v1568 = vpop.f32.mrf.mxu0
      %v1569 = vadd.f32 %v1480, %v1568
      %v1570 = vpop.f32.mrf.mxu0
      %v1571 = vadd.f32 %v1482, %v1570
      %1572 = vmatmul.bf16.gmra.mxu0 %v1168
      %v1573 = vpop.f32.mrf.mxu0
      %v1574 = vadd.f32 %v1485, %v1573
      %v1575 = vpop.f32.mrf.mxu0
      %v1576 = vadd.f32 %v1487, %v1575
      %1577 = vmatmul.bf16.gmra.mxu0 %v1172
      %v1578 = vpop.f32.mrf.mxu0
      %v1579 = vadd.f32 %v1490, %v1578
      %v1580 = vpop.f32.mrf.mxu0
      %v1581 = vadd.f32 %v1492, %v1580
      %1582 = vmatmul.bf16.gmra.mxu0 %v1176
      %v1583 = vpop.f32.mrf.mxu0
      %v1584 = vadd.f32 %v1495, %v1583
      %v1585 = vpop.f32.mrf.mxu0
      %v1586 = vadd.f32 %v1497, %v1585
      %1587 = vmatmul.bf16.gmra.mxu0 %v1180
      %v1588 = vpop.f32.mrf.mxu0
      %v1589 = vadd.f32 %v1500, %v1588
      %v1590 = vpop.f32.mrf.mxu0
      %v1591 = vadd.f32 %v1502, %v1590
      %1592 = vmatmul.bf16.gmra.mxu0 %v1184
      %v1593 = vpop.f32.mrf.mxu0
      %v1594 = vadd.f32 %v1505, %v1593
      %v1595 = vpop.f32.mrf.mxu0
      %v1596 = vadd.f32 %v1507, %v1595
      %1597 = vmatmul.bf16.gmra.mxu0 %v1188
      %v1598 = vpop.f32.mrf.mxu0
      %v1599 = vadd.f32 %v1510, %v1598
      %v1600 = vpop.f32.mrf.mxu0
      %v1601 = vadd.f32 %v1512, %v1600
      %1602 = vmatmul.bf16.gmra.mxu0 %v1192
      %v1603 = vpop.f32.mrf.mxu0
      %v1604 = vadd.f32 %v1515, %v1603
      %v1605 = vpop.f32.mrf.mxu0
      %v1606 = vadd.f32 %v1517, %v1605
      %1607 = vmatmul.bf16.gmra.mxu0 %v1196
      %v1608 = vpop.f32.mrf.mxu0
      %v1609 = vadd.f32 %v1520, %v1608
      %v1610 = vpop.f32.mrf.mxu0
      %v1611 = vadd.f32 %v1522, %v1610
      %1612 = vmatmul.bf16.gmra.mxu0 %v1200
      %v1613 = vpop.f32.mrf.mxu0
      %v1614 = vadd.f32 %v1525, %v1613
      %v1615 = vpop.f32.mrf.mxu0
      %v1616 = vadd.f32 %v1527, %v1615
      %1617 = vmatmul.bf16.gmra.mxu0 %v1204
      %v1618 = vpop.f32.mrf.mxu0
      %v1619 = vadd.f32 %v1530, %v1618
      %v1620 = vpop.f32.mrf.mxu0
      %v1621 = vadd.f32 %v1532, %v1620
      %1622 = vmatmul.bf16.gmra.mxu0 %v1208
      %v1623 = vpop.f32.mrf.mxu0
      %v1624 = vadd.f32 %v1535, %v1623
      %v1625 = vpop.f32.mrf.mxu0
      %v1626 = vadd.f32 %v1537, %v1625
      %1627 = vmatmul.bf16.gmra.mxu0 %v1212
      %v1628 = vpop.f32.mrf.mxu0
      %v1629 = vadd.f32 %v1540, %v1628
      %v1630 = vpop.f32.mrf.mxu0
      %v1631 = vadd.f32 %v1542, %v1630
      %1632 = vdwg.mxu0
      %v1633 = vadd.f32 %v829, %v1554
      %v1634 = vadd.f32 %v830, %v1556
      %v1635 = vadd.f32 %v831, %v1559
      %v1636 = vadd.f32 %v832, %v1561
      %v1637 = vadd.f32 %v833, %v1564
      %v1638 = vadd.f32 %v834, %v1566
      %v1639 = vadd.f32 %v835, %v1569
      %v1640 = vadd.f32 %v836, %v1571
      %v1641 = vadd.f32 %v837, %v1574
      %v1642 = vadd.f32 %v838, %v1576
      %v1643 = vadd.f32 %v839, %v1579
      %v1644 = vadd.f32 %v840, %v1581
      %v1645 = vadd.f32 %v841, %v1584
      %v1646 = vadd.f32 %v842, %v1586
      %v1647 = vadd.f32 %v843, %v1589
      %v1648 = vadd.f32 %v844, %v1591
      %v1649 = vadd.f32 %v845, %v1594
      %v1650 = vadd.f32 %v846, %v1596
      %v1651 = vadd.f32 %v847, %v1599
      %v1652 = vadd.f32 %v848, %v1601
      %v1653 = vadd.f32 %v849, %v1604
      %v1654 = vadd.f32 %v850, %v1606
      %v1655 = vadd.f32 %v851, %v1609
      %v1656 = vadd.f32 %v852, %v1611
      %v1657 = vadd.f32 %v853, %v1614
      %v1658 = vadd.f32 %v854, %v1616
      %v1659 = vadd.f32 %v855, %v1619
      %v1660 = vadd.f32 %v856, %v1621
      %v1661 = vadd.f32 %v857, %v1624
      %v1662 = vadd.f32 %v858, %v1626
      %v1663 = vadd.f32 %v859, %v1629
      %v1664 = vadd.f32 %v860, %v1631
      %1665 = vst [vmem:[#allocation2] sm:$0xff] %v1633
      %1666 = vst [vmem:[#allocation2 + $0x8] sm:$0xff] %v1634
      %1667 = vst [vmem:[#allocation2 + $0x10] sm:$0xff] %v1635
      %1668 = vst [vmem:[#allocation2 + $0x18] sm:$0xff] %v1636
      %1669 = vst [vmem:[#allocation2 + $0x20] sm:$0xff] %v1637
      %1670 = vst [vmem:[#allocation2 + $0x28] sm:$0xff] %v1638
      %1671 = vst [vmem:[#allocation2 + $0x30] sm:$0xff] %v1639
      %1672 = vst [vmem:[#allocation2 + $0x38] sm:$0xff] %v1640
      %1673 = vst [vmem:[#allocation2 + $0x40] sm:$0xff] %v1641
      %1674 = vst [vmem:[#allocation2 + $0x48] sm:$0xff] %v1642
      %1675 = vst [vmem:[#allocation2 + $0x50] sm:$0xff] %v1643
      %1676 = vst [vmem:[#allocation2 + $0x58] sm:$0xff] %v1644
      %1677 = vst [vmem:[#allocation2 + $0x60] sm:$0xff] %v1645
      %1678 = vst [vmem:[#allocation2 + $0x68] sm:$0xff] %v1646
      %1679 = vst [vmem:[#allocation2 + $0x70] sm:$0xff] %v1647
      %1680 = vst [vmem:[#allocation2 + $0x78] sm:$0xff] %v1648
      %1681 = vst [vmem:[#allocation2 + $0x80] sm:$0xff] %v1649
      %1682 = vst [vmem:[#allocation2 + $0x88] sm:$0xff] %v1650
      %1683 = vst [vmem:[#allocation2 + $0x90] sm:$0xff] %v1651
      %1684 = vst [vmem:[#allocation2 + $0x98] sm:$0xff] %v1652
      %1685 = vst [vmem:[#allocation2 + $0xa0] sm:$0xff] %v1653
      %1686 = vst [vmem:[#allocation2 + $0xa8] sm:$0xff] %v1654
      %1687 = vst [vmem:[#allocation2 + $0xb0] sm:$0xff] %v1655
      %1688 = vst [vmem:[#allocation2 + $0xb8] sm:$0xff] %v1656
      %1689 = vst [vmem:[#allocation2 + $0xc0] sm:$0xff] %v1657
      %1690 = vst [vmem:[#allocation2 + $0xc8] sm:$0xff] %v1658
      %1691 = vst [vmem:[#allocation2 + $0xd0] sm:$0xff] %v1659
      %1692 = vst [vmem:[#allocation2 + $0xd8] sm:$0xff] %v1660
      %1693 = vst [vmem:[#allocation2 + $0xe0] sm:$0xff] %v1661
      %1694 = vst [vmem:[#allocation2 + $0xe8] sm:$0xff] %v1662
      %1695 = vst [vmem:[#allocation2 + $0xf0] sm:$0xff] %v1663
      %1696 = vst [vmem:[#allocation2 + $0xf8] sm:$0xff] %v1664
      // Predicated region
      $region41: #{gcn1_forward.4} parent=35 // pred_check
        %p1697 = pneg %p300
      $region42: #{gcn1_forward.4} parent=35 // pred_check_branch
        %1699 = sbr.rel (%p1697) target = $region44
      $region43: #{gcn1_forward.4} parent=35 // pred_region
        %v1700 = vld [vmem:[#allocation2] sm:$0xff]
        %v1701 = vld [vmem:[#allocation2 + $0x8] sm:$0xff]
        %v1702 = vld [vmem:[#allocation2 + $0x10] sm:$0xff]
        %v1703 = vld [vmem:[#allocation2 + $0x18] sm:$0xff]
        %v1704 = vld [vmem:[#allocation2 + $0x20] sm:$0xff]
        %v1705 = vld [vmem:[#allocation2 + $0x28] sm:$0xff]
        %v1706 = vld [vmem:[#allocation2 + $0x30] sm:$0xff]
        %v1707 = vld [vmem:[#allocation2 + $0x38] sm:$0xff]
        %v1708 = vld [vmem:[#allocation2 + $0x40] sm:$0xff]
        %v1709 = vld [vmem:[#allocation2 + $0x48] sm:$0xff]
        %v1710 = vld [vmem:[#allocation2 + $0x50] sm:$0xff]
        %v1711 = vld [vmem:[#allocation2 + $0x58] sm:$0xff]
        %v1712 = vld [vmem:[#allocation2 + $0x60] sm:$0xff]
        %v1713 = vld [vmem:[#allocation2 + $0x68] sm:$0xff]
        %v1714 = vld [vmem:[#allocation2 + $0x70] sm:$0xff]
        %v1715 = vld [vmem:[#allocation2 + $0x78] sm:$0xff]
        %v1716 = vld [vmem:[#allocation2 + $0x80] sm:$0xff]
        %v1717 = vld [vmem:[#allocation2 + $0x88] sm:$0xff]
        %v1718 = vld [vmem:[#allocation2 + $0x90] sm:$0xff]
        %v1719 = vld [vmem:[#allocation2 + $0x98] sm:$0xff]
        %v1720 = vld [vmem:[#allocation2 + $0xa0] sm:$0xff]
        %v1721 = vld [vmem:[#allocation2 + $0xa8] sm:$0xff]
        %v1722 = vld [vmem:[#allocation2 + $0xb0] sm:$0xff]
        %v1723 = vld [vmem:[#allocation2 + $0xb8] sm:$0xff]
        %v1724 = vld [vmem:[#allocation2 + $0xc0] sm:$0xff]
        %v1725 = vld [vmem:[#allocation2 + $0xc8] sm:$0xff]
        %v1726 = vld [vmem:[#allocation2 + $0xd0] sm:$0xff]
        %v1727 = vld [vmem:[#allocation2 + $0xd8] sm:$0xff]
        %v1728 = vld [vmem:[#allocation2 + $0xe0] sm:$0xff]
        %v1729 = vld [vmem:[#allocation2 + $0xe8] sm:$0xff]
        %v1730 = vld [vmem:[#allocation2 + $0xf0] sm:$0xff]
        %v1731 = vld [vmem:[#allocation2 + $0xf8] sm:$0xff]
        %v1732 = vmax.f32 %v1700, 0.0
        %v1733 = vmax.f32 %v1701, 0.0
        %v1734 = vmax.f32 %v1702, 0.0
        %v1735 = vmax.f32 %v1703, 0.0
        %v1736 = vmax.f32 %v1704, 0.0
        %v1737 = vmax.f32 %v1705, 0.0
        %v1738 = vmax.f32 %v1706, 0.0
        %v1739 = vmax.f32 %v1707, 0.0
        %v1740 = vmax.f32 %v1708, 0.0
        %v1741 = vmax.f32 %v1709, 0.0
        %v1742 = vmax.f32 %v1710, 0.0
        %v1743 = vmax.f32 %v1711, 0.0
        %v1744 = vmax.f32 %v1712, 0.0
        %v1745 = vmax.f32 %v1713, 0.0
        %v1746 = vmax.f32 %v1714, 0.0
        %v1747 = vmax.f32 %v1715, 0.0
        %v1748 = vmax.f32 %v1716, 0.0
        %v1749 = vmax.f32 %v1717, 0.0
        %v1750 = vmax.f32 %v1718, 0.0
        %v1751 = vmax.f32 %v1719, 0.0
        %v1752 = vmax.f32 %v1720, 0.0
        %v1753 = vmax.f32 %v1721, 0.0
        %v1754 = vmax.f32 %v1722, 0.0
        %v1755 = vmax.f32 %v1723, 0.0
        %v1756 = vmax.f32 %v1724, 0.0
        %v1757 = vmax.f32 %v1725, 0.0
        %v1758 = vmax.f32 %v1726, 0.0
        %v1759 = vmax.f32 %v1727, 0.0
        %v1760 = vmax.f32 %v1728, 0.0
        %v1761 = vmax.f32 %v1729, 0.0
        %v1762 = vmax.f32 %v1730, 0.0
        %v1763 = vmax.f32 %v1731, 0.0
        %v1764 = vpack.c.bf16 %v1732, %v1732
        %v1765 = vpack.c.bf16 %v1733, %v1733
        %v1766 = vpack.c.bf16 %v1734, %v1734
        %v1767 = vpack.c.bf16 %v1735, %v1735
        %v1768 = vpack.c.bf16 %v1736, %v1736
        %v1769 = vpack.c.bf16 %v1737, %v1737
        %v1770 = vpack.c.bf16 %v1738, %v1738
        %v1771 = vpack.c.bf16 %v1739, %v1739
        %v1772 = vpack.c.bf16 %v1740, %v1740
        %v1773 = vpack.c.bf16 %v1741, %v1741
        %v1774 = vpack.c.bf16 %v1742, %v1742
        %v1775 = vpack.c.bf16 %v1743, %v1743
        %v1776 = vpack.c.bf16 %v1744, %v1744
        %v1777 = vpack.c.bf16 %v1745, %v1745
        %v1778 = vpack.c.bf16 %v1746, %v1746
        %v1779 = vpack.c.bf16 %v1747, %v1747
        %v1780 = vpack.c.bf16 %v1748, %v1748
        %v1781 = vpack.c.bf16 %v1749, %v1749
        %v1782 = vpack.c.bf16 %v1750, %v1750
        %v1783 = vpack.c.bf16 %v1751, %v1751
        %v1784 = vpack.c.bf16 %v1752, %v1752
        %v1785 = vpack.c.bf16 %v1753, %v1753
        %v1786 = vpack.c.bf16 %v1754, %v1754
        %v1787 = vpack.c.bf16 %v1755, %v1755
        %v1788 = vpack.c.bf16 %v1756, %v1756
        %v1789 = vpack.c.bf16 %v1757, %v1757
        %v1790 = vpack.c.bf16 %v1758, %v1758
        %v1791 = vpack.c.bf16 %v1759, %v1759
        %v1792 = vpack.c.bf16 %v1760, %v1760
        %v1793 = vpack.c.bf16 %v1761, %v1761
        %v1794 = vpack.c.bf16 %v1762, %v1762
        %v1795 = vpack.c.bf16 %v1763, %v1763
        %1796 = vst [vmem:[%s298] sm:$0xf] %v1764
        %1797 = vst [vmem:[%s298 + $0x4] sm:$0xf] %v1765
        %1798 = vst [vmem:[%s298 + $0x8] sm:$0xf] %v1766
        %1799 = vst [vmem:[%s298 + $0xc] sm:$0xf] %v1767
        %1800 = vst [vmem:[%s298 + $0x10] sm:$0xf] %v1768
        %1801 = vst [vmem:[%s298 + $0x14] sm:$0xf] %v1769
        %1802 = vst [vmem:[%s298 + $0x18] sm:$0xf] %v1770
        %1803 = vst [vmem:[%s298 + $0x1c] sm:$0xf] %v1771
        %1804 = vst [vmem:[%s298 + $0x20] sm:$0xf] %v1772
        %1805 = vst [vmem:[%s298 + $0x24] sm:$0xf] %v1773
        %1806 = vst [vmem:[%s298 + $0x28] sm:$0xf] %v1774
        %1807 = vst [vmem:[%s298 + $0x2c] sm:$0xf] %v1775
        %1808 = vst [vmem:[%s298 + $0x30] sm:$0xf] %v1776
        %1809 = vst [vmem:[%s298 + $0x34] sm:$0xf] %v1777
        %1810 = vst [vmem:[%s298 + $0x38] sm:$0xf] %v1778
        %1811 = vst [vmem:[%s298 + $0x3c] sm:$0xf] %v1779
        %1812 = vst [vmem:[%s298 + $0x40] sm:$0xf] %v1780
        %1813 = vst [vmem:[%s298 + $0x44] sm:$0xf] %v1781
        %1814 = vst [vmem:[%s298 + $0x48] sm:$0xf] %v1782
        %1815 = vst [vmem:[%s298 + $0x4c] sm:$0xf] %v1783
        %1816 = vst [vmem:[%s298 + $0x50] sm:$0xf] %v1784
        %1817 = vst [vmem:[%s298 + $0x54] sm:$0xf] %v1785
        %1818 = vst [vmem:[%s298 + $0x58] sm:$0xf] %v1786
        %1819 = vst [vmem:[%s298 + $0x5c] sm:$0xf] %v1787
        %1820 = vst [vmem:[%s298 + $0x60] sm:$0xf] %v1788
        %1821 = vst [vmem:[%s298 + $0x64] sm:$0xf] %v1789
        %1822 = vst [vmem:[%s298 + $0x68] sm:$0xf] %v1790
        %1823 = vst [vmem:[%s298 + $0x6c] sm:$0xf] %v1791
        %1824 = vst [vmem:[%s298 + $0x70] sm:$0xf] %v1792
        %1825 = vst [vmem:[%s298 + $0x74] sm:$0xf] %v1793
        %1826 = vst [vmem:[%s298 + $0x78] sm:$0xf] %v1794
        %1827 = vst [vmem:[%s298 + $0x7c] sm:$0xf] %v1795
      $region44: #{gcn1_forward.4} parent=35 // pred_fallthru
        _
      %s1828 = smul.u32 32, %s20
      %p1829 = scmp.lt.s32.totalorder %s1828, 63
      %s1830 = scalar_select %p1829, %s1828, 63
      %p1831 = scmp.lt.s32.totalorder %s21, 0
      %s1832 = scalar_select %p1831, %s21, 0
      %s1833 = sadd.s32 %s1832, %s1830
      %s1834 = smul.addr %s1833, 4
      %s1835 = scalar_lea.vmem %s4, %s1834
      // Predicated region
      $region45: #{gcn1_forward.4} parent=35 // pred_check
        %p1836 = pneg %p160
      $region46: #{gcn1_forward.4} parent=35 // pred_check_branch
        %1838 = sbr.rel (%p1836) target = $region48
      $region47: #{gcn1_forward.4} parent=35 // pred_region
        %s1839 = smul.u32 32, %s20
      $region48: #{gcn1_forward.4} parent=35 // pred_fallthru
        _
    $region36: #{gcn1_forward.4} parent=5 // pred_fallthru
      _
    %p1840 = scmp.le.s32.totalorder 2, %s10
    // Predicated region
    $region49: #{gcn1_forward.4} parent=5 // pred_check
      %p1841 = pneg %p1840
    $region50: #{gcn1_forward.4} parent=5 // pred_check_branch
      %1843 = sbr.rel (%p1841) target = $region52
    $region51: #{gcn1_forward.4} parent=5 // pred_region
      %s1844 = ssub.s32 %s10, 2
      // Predicated region
      $region53: #{gcn1_forward.4} parent=51 // pred_check
        %p1845 = pneg %p166
      $region54: #{gcn1_forward.4} parent=51 // pred_check_branch
        %1847 = sbr.rel (%p1845) target = $region56
      $region55: #{gcn1_forward.4} parent=51 // pred_region
        %s1848 = smul.u32 32, %s23
        %p1849 = scmp.lt.s32.totalorder %s1848, 63
        %s1850 = scalar_select %p1849, %s1848, 63
        %p1851 = scmp.lt.s32.totalorder %s24, 0
        %s1852 = scalar_select %p1851, %s24, 0
        %s1853 = sadd.s32 %s1852, %s1850
        %s1854 = smul.addr %s1853, 4
        %s1855 = scalar_lea.vmem %s4, %s1854
      $region56: #{gcn1_forward.4} parent=51 // pred_fallthru
        _
    $region52: #{gcn1_forward.4} parent=5 // pred_fallthru
      _
  $region6: #{gcn1_forward.4} parent=0 // loop_footer
    %s14 = sadd.s32 1, %s10
  $region7: #{gcn1_forward.4} parent=0 // loop_footer_branch
    %9 = sbr.rel target = $region3
  $region8: #{gcn1_forward.4} parent=0 // loop_exit
    _

// kernel: gcn1_forward.3
$region0: #{gcn1_forward.3}
  #allocation0 [shape = 'u32[]', space=smem, size = 0x4, offset = 0x4, fixed_abs, tag = 'smem constant byte address 0x4 - core index']
  #allocation1 [shape = 'u32[72,128]{1,0:T(1,128)}', space=vmem, size = 0x9000, scoped, tag = 'internal scratch']
  #allocation2 [shape = 'f32[256,128]{1,0:T(8,128)}', space=vmem, size = 0x20000, scoped, tag = 'scratch operand']
  %s0 = inlined_call_operand.hbm [shape: bf16[512,512], index: 0, kind: input, shape index: {}]
  %s1 = inlined_call_operand.vmem [shape: bf16[512,128], index: 1, kind: input, shape index: {}]
  %s2 = inlined_call_operand.vmem [shape: bf16[128,128], index: 2, kind: input, shape index: {}]
  %s3 = inlined_call_operand.vmem [shape: f32[1,128], index: 3, kind: input, shape index: {}]
  %s4 = inlined_call_operand.vmem [shape: bf16[512,128], index: 4, kind: output, shape index: {}]
  %s5 = sld [smem:[#allocation0]]
  $region61: #{gcn1_forward.3} parent=0
    _
  %s7 = ssub.s32 1, %s5
  %s8 = scalar_select 0, %s7, %s5
  $region1: #{gcn1_forward.3} parent=0
    #allocation3 [shape = 'u8[524288]{0}', space=vmem, size = 0x80000, scoped, tag = 'input window, operand 0']
    #allocation4 [shape = 's32[2]{0}', space=sflag, size = 0x8, scoped, tag = 'scoped memory for gcn1_forward.3']
    %9 = vsyncpa [#allocation4], 0
    %s10 = scalar_lea.sflag [#allocation4], 1
    %11 = vsyncpa %s10, 0
    loop: start=0, step=1, limit=4
    $region2: #{gcn1_forward.3} parent=1 // loop_pre_header
      _
    $region3: #{gcn1_forward.3} parent=1 // loop_header
      %s13 = sphi 0, %s17
      %p14 = scmp.ge.s32.totalorder %s13, 4
      %s20 = sphi 0, %s39
      %s21 = sphi 0, %s35
      %s22 = sphi 0, %s31
      %s23 = sphi 0, %s20
      %s24 = sphi 0, %s21
      %s25 = sphi 0, %s22
      %s26 = sphi 0, %s23
      %s27 = sphi 0, %s24
      %s28 = sphi 0, %s25
      %s44 = sphi 0, %s46
      %s47 = sphi 0, %s44
      %s48 = sphi 0, %s47
      %s64 = sphi 0, %s48
      %s70 = sphi 0, %s72
      %s73 = sphi 0, %s70
      %s74 = sphi 0, %s73
      %s90 = sphi 0, %s74
      %s96 = sphi 0, %s98
      %s99 = sphi 0, %s96
      %s100 = sphi 0, %s99
      %s116 = sphi 0, %s100
      %s122 = sphi 0, %s124
      %s125 = sphi 0, %s122
      %s126 = sphi 0, %s125
      %s142 = sphi 0, %s126
      %s150 = sphi 0, %s152
      %s153 = sphi 0, %s150
      %s154 = sphi 0, %s153
      %s170 = sphi 0, %s154
    $region4: #{gcn1_forward.3} parent=1 // loop_header_branch
      %16 = sbr.rel (%p14) target = $region8
    $region5: #{gcn1_forward.3} parent=1 // loop_body
      %s18 = ssub.s32 %s13, 1
      %s19 = ssub.s32 %s13, 2
      %s29 = sadd.s32 1, %s22
      %p30 = scmp.ge.s32.totalorder %s29, 1
      %s31 = scalar_select %p30, 0, %s29
      %s32 = sadd.s32 1, %s21
      %s33 = scalar_select %p30, %s32, %s21
      %p34 = scmp.ge.s32.totalorder %s33, 1
      %s35 = scalar_select %p34, 0, %s33
      %s36 = sadd.s32 1, %s20
      %s37 = scalar_select %p34, %s36, %s20
      %p38 = scmp.ge.s32.totalorder %s37, 2
      %s39 = scalar_select %p38, 0, %s37
      %s40 = ssub.s32 %s20, %s39
      %s41 = ssub.s32 %s22, %s31
      %s42 = sor.u32 %s40, %s41
      %p43 = scmp.eq.s32.totalorder %s42, 0
      %s45 = sadd.s32 %s44, 1
      %s46 = scalar_select %p43, %s44, %s45
      %p49 = pneg %p43
      %p50 = scmp.eq.s32.totalorder %s13, 1
      %p51 = por %p49, %p50
      %p52 = scmp.ne.s32.totalorder %s44, %s47
      %p53 = scmp.eq.s32.totalorder %s13, 0
      %p54 = por %p52, %p53
      %p55 = scmp.ne.s32.totalorder %s44, %s47
      %p56 = scmp.eq.s32.totalorder %s18, 1
      %p57 = por %p55, %p56
      %p58 = scmp.ne.s32.totalorder %s47, %s48
      %p59 = scmp.eq.s32.totalorder %s18, 0
      %p60 = por %p58, %p59
      %p61 = scmp.ne.s32.totalorder %s47, %s48
      %p62 = scmp.eq.s32.totalorder %s19, 1
      %p63 = por %p61, %p62
      %p65 = scmp.ne.s32.totalorder %s48, %s64
      %p66 = scmp.eq.s32.totalorder %s19, 0
      %p67 = por %p65, %p66
      %s68 = ssub.s32 %s22, %s31
      %p69 = scmp.eq.s32.totalorder %s68, 0
      %s71 = sadd.s32 %s70, 1
      %s72 = scalar_select %p69, %s70, %s71
      %p75 = pneg %p69
      %p76 = scmp.eq.s32.totalorder %s13, 1
      %p77 = por %p75, %p76
      %p78 = scmp.ne.s32.totalorder %s70, %s73
      %p79 = scmp.eq.s32.totalorder %s13, 0
      %p80 = por %p78, %p79
      %p81 = scmp.ne.s32.totalorder %s70, %s73
      %p82 = scmp.eq.s32.totalorder %s18, 1
      %p83 = por %p81, %p82
      %p84 = scmp.ne.s32.totalorder %s73, %s74
      %p85 = scmp.eq.s32.totalorder %s18, 0
      %p86 = por %p84, %p85
      %p87 = scmp.ne.s32.totalorder %s73, %s74
      %p88 = scmp.eq.s32.totalorder %s19, 1
      %p89 = por %p87, %p88
      %p91 = scmp.ne.s32.totalorder %s74, %s90
      %p92 = scmp.eq.s32.totalorder %s19, 0
      %p93 = por %p91, %p92
      %s94 = ssub.s32 %s21, %s35
      %p95 = scmp.eq.s32.totalorder %s94, 0
      %s97 = sadd.s32 %s96, 1
      %s98 = scalar_select %p95, %s96, %s97
      %p101 = pneg %p95
      %p102 = scmp.eq.s32.totalorder %s13, 1
      %p103 = por %p101, %p102
      %p104 = scmp.ne.s32.totalorder %s96, %s99
      %p105 = scmp.eq.s32.totalorder %s13, 0
      %p106 = por %p104, %p105
      %p107 = scmp.ne.s32.totalorder %s96, %s99
      %p108 = scmp.eq.s32.totalorder %s18, 1
      %p109 = por %p107, %p108
      %p110 = scmp.ne.s32.totalorder %s99, %s100
      %p111 = scmp.eq.s32.totalorder %s18, 0
      %p112 = por %p110, %p111
      %p113 = scmp.ne.s32.totalorder %s99, %s100
      %p114 = scmp.eq.s32.totalorder %s19, 1
      %p115 = por %p113, %p114
      %p117 = scmp.ne.s32.totalorder %s100, %s116
      %p118 = scmp.eq.s32.totalorder %s19, 0
      %p119 = por %p117, %p118
      %s120 = ssub.s32 %s21, %s35
      %p121 = scmp.eq.s32.totalorder %s120, 0
      %s123 = sadd.s32 %s122, 1
      %s124 = scalar_select %p121, %s122, %s123
      %p127 = pneg %p121
      %p128 = scmp.eq.s32.totalorder %s13, 1
      %p129 = por %p127, %p128
      %p130 = scmp.ne.s32.totalorder %s122, %s125
      %p131 = scmp.eq.s32.totalorder %s13, 0
      %p132 = por %p130, %p131
      %p133 = scmp.ne.s32.totalorder %s122, %s125
      %p134 = scmp.eq.s32.totalorder %s18, 1
      %p135 = por %p133, %p134
      %p136 = scmp.ne.s32.totalorder %s125, %s126
      %p137 = scmp.eq.s32.totalorder %s18, 0
      %p138 = por %p136, %p137
      %p139 = scmp.ne.s32.totalorder %s125, %s126
      %p140 = scmp.eq.s32.totalorder %s19, 1
      %p141 = por %p139, %p140
      %p143 = scmp.ne.s32.totalorder %s126, %s142
      %p144 = scmp.eq.s32.totalorder %s19, 0
      %p145 = por %p143, %p144
      %s146 = ssub.s32 %s20, %s39
      %s147 = ssub.s32 %s21, %s35
      %s148 = sor.u32 %s146, %s147
      %p149 = scmp.eq.s32.totalorder %s148, 0
      %s151 = sadd.s32 %s150, 1
      %s152 = scalar_select %p149, %s150, %s151
      %p155 = pneg %p149
      %p156 = scmp.eq.s32.totalorder %s13, 1
      %p157 = por %p155, %p156
      %p158 = scmp.ne.s32.totalorder %s150, %s153
      %p159 = scmp.eq.s32.totalorder %s13, 0
      %p160 = por %p158, %p159
      %p161 = scmp.ne.s32.totalorder %s150, %s153
      %p162 = scmp.eq.s32.totalorder %s18, 1
      %p163 = por %p161, %p162
      %p164 = scmp.ne.s32.totalorder %s153, %s154
      %p165 = scmp.eq.s32.totalorder %s18, 0
      %p166 = por %p164, %p165
      %p167 = scmp.ne.s32.totalorder %s153, %s154
      %p168 = scmp.eq.s32.totalorder %s19, 1
      %p169 = por %p167, %p168
      %p171 = scmp.ne.s32.totalorder %s154, %s170
      %p172 = scmp.eq.s32.totalorder %s19, 0
      %p173 = por %p171, %p172
      %p174 = scmp.le.s32.totalorder 1, %s13
      %p175 = scmp.lt.s32.totalorder %s13, 3
      %p176 = pnand %p174, %p175
      %p177 = pneg %p176
      // Predicated region
      $region9: #{gcn1_forward.3} parent=5 // pred_check
        _
      $region10: #{gcn1_forward.3} parent=5 // pred_check_branch
        %179 = sbr.rel (%p176) target = $region12
      $region11: #{gcn1_forward.3} parent=5 // pred_region
        %s180 = ssub.s32 %s13, 1
        // Predicated region
        $region13: #{gcn1_forward.3} parent=11 // pred_check
          %p181 = pneg %p86
        $region14: #{gcn1_forward.3} parent=11 // pred_check_branch
          %183 = sbr.rel (%p181) target = $region16
        $region15: #{gcn1_forward.3} parent=11 // pred_region
          %s184 = smul.u32 64, %s25
          %p185 = scmp.lt.s32.totalorder %s184, 63
          %s186 = scalar_select %p185, %s184, 63
          %s187 = smul.addr %s186, 4
          %s188 = scalar_lea.vmem %s1, %s187
          %s189 = smul.u32 64, %s25
        $region16: #{gcn1_forward.3} parent=11 // pred_fallthru
          _
        // Predicated region
        $region17: #{gcn1_forward.3} parent=11 // pred_check
          %p190 = pneg %p112
        $region18: #{gcn1_forward.3} parent=11 // pred_check_branch
          %192 = sbr.rel (%p190) target = $region20
        $region19: #{gcn1_forward.3} parent=11 // pred_region
          %p193 = scmp.lt.s32.totalorder %s24, 0
          %s194 = scalar_select %p193, %s24, 0
          %s195 = smul.addr %s194, 4
          %s196 = scalar_lea.vmem %s2, %s195
        $region20: #{gcn1_forward.3} parent=11 // pred_fallthru
          _
        // Predicated region
        $region21: #{gcn1_forward.3} parent=11 // pred_check
          %p197 = pneg %p138
        $region22: #{gcn1_forward.3} parent=11 // pred_check_branch
          %199 = sbr.rel (%p197) target = $region24
        $region23: #{gcn1_forward.3} parent=11 // pred_region
          %p200 = scmp.lt.s32.totalorder %s24, 0
          %s201 = scalar_select %p200, %s24, 0
          %s202 = scalar_lea.vmem %s3, %s201
        $region24: #{gcn1_forward.3} parent=11 // pred_fallthru
          _
      $region12: #{gcn1_forward.3} parent=5 // pred_fallthru
        _
      %p203 = scmp.lt.s32.totalorder %s13, 2
      // Predicated region
      $region25: #{gcn1_forward.3} parent=5 // pred_check
        %p204 = pneg %p203
      $region26: #{gcn1_forward.3} parent=5 // pred_check_branch
        %206 = sbr.rel (%p204) target = $region28
      $region27: #{gcn1_forward.3} parent=5 // pred_region
        // Predicated region
        $region29: #{gcn1_forward.3} parent=27 // pred_check
          %p207 = pneg %p54
        $region30: #{gcn1_forward.3} parent=27 // pred_check_branch
          %209 = sbr.rel (%p207) target = $region32
        $region31: #{gcn1_forward.3} parent=27 // pred_region
          %s210 = sand.u32 %s44, 1
          %s211 = scalar_lea.sflag [#allocation4], %s210
          %s212 = sand.u32 %s44, 1
          %s213 = smul.addr %s212, 512
          %s214 = scalar_lea.vmem [#allocation3], %s213
          %s215 = smul.u32 32, %s20
          %s216 = smul.u32 4, %s22
          %218 = vsyncadd %s211, 0
          %s219 = smul.addr %s215, 4
          %s220 = sadd.s32 %s216, %s219
          %s221 = smul.addr %s220, 4
          %s222 = scalar_lea.hbm %s0, %s221
          %s223 = sshll.u32 %s222, 4
          %s224 = int_to_ptr.hbm [resolvable:$true] %s223
          %s225 = sshll.u32 %s214, 4
          %s226 = int_to_ptr.vmem [resolvable:$true] %s225
          %231 = dma.hbm_to_vmem [thread:$0]  %s224, 8192, %s226, %s211, 256, 256, 16
        $region32: #{gcn1_forward.3} parent=27 // pred_fallthru
          _
      $region28: #{gcn1_forward.3} parent=5 // pred_fallthru
        _
      %p232 = scmp.le.s32.totalorder 1, %s13
      %p233 = scmp.lt.s32.totalorder %s13, 3
      %p234 = pnand %p232, %p233
      %p235 = pneg %p234
      // Predicated region
      $region33: #{gcn1_forward.3} parent=5 // pred_check
        _
      $region34: #{gcn1_forward.3} parent=5 // pred_check_branch
        %237 = sbr.rel (%p234) target = $region36
      $region35: #{gcn1_forward.3} parent=5 // pred_region
        %s238 = ssub.s32 %s13, 1
        %s239 = sand.u32 %s47, 1
        %s240 = scalar_lea.sflag [#allocation4], %s239
        %s241 = sand.u32 %s47, 1
        %s242 = smul.addr %s241, 512
        %s243 = scalar_lea.vmem [#allocation3], %s242
        // Predicated region
        $region37: #{gcn1_forward.3} parent=35 // pred_check
          %p244 = pneg %p60
        $region38: #{gcn1_forward.3} parent=35 // pred_check_branch
          %246 = sbr.rel (%p244) target = $region40
        $region39: #{gcn1_forward.3} parent=35 // pred_region
          %248 = dma.done %s240, 8192
        $region40: #{gcn1_forward.3} parent=35 // pred_fallthru
          _
        %s249 = sand.u32 %s47, 1
        %s250 = scalar_lea.sflag [#allocation4], %s249
        %s251 = sand.u32 %s47, 1
        %s252 = smul.addr %s251, 512
        %s253 = scalar_lea.vmem [#allocation3], %s252
        %p254 = pneg %p60
        %p255 = pneg %p57
        %s256 = smul.u32 64, %s25
        %p257 = scmp.lt.s32.totalorder %s256, 63
        %s258 = scalar_select %p257, %s256, 63
        %s259 = smul.addr %s258, 4
        %s260 = scalar_lea.vmem %s1, %s259
        %p261 = pneg %p86
        %p262 = pneg %p83
        %p263 = scmp.lt.s32.totalorder %s24, 0
        %s264 = scalar_select %p263, %s24, 0
        %s265 = smul.addr %s264, 4
        %s266 = scalar_lea.vmem %s2, %s265
        %p267 = pneg %p112
        %p268 = pneg %p109
        %p269 = scmp.lt.s32.totalorder %s24, 0
        %s270 = scalar_select %p269, %s24, 0
        %s271 = scalar_lea.vmem %s3, %s270
        %p272 = pneg %p138
        %p273 = pneg %p135
        %p274 = pneg %p166
        %p275 = pneg %p163
        %s276 = smul.u32 32, %s23
        %p277 = scmp.lt.s32.totalorder %s276, 63
        %s278 = scalar_select %p277, %s276, 63
        %p279 = scmp.lt.s32.totalorder %s24, 0
        %s280 = scalar_select %p279, %s24, 0
        %s281 = sadd.s32 %s280, %s278
        %s282 = smul.addr %s281, 4
        %s283 = scalar_lea.vmem %s4, %s282
        %s284 = smul.u32 32, %s23
        %s285 = smul.u32 4, %s25
        %s286 = smul.u32 64, %s25
        %p287 = scmp.lt.s32.totalorder %s286, 63
        %s288 = scalar_select %p287, %s286, 63
        %s289 = smul.addr %s288, 4
        %s290 = scalar_lea.vmem %s1, %s289
        %s291 = smul.u32 64, %s25
        %p292 = scmp.lt.s32.totalorder %s24, 0
        %s293 = scalar_select %p292, %s24, 0
        %s294 = smul.addr %s293, 4
        %s295 = scalar_lea.vmem %s2, %s294
        %p296 = scmp.lt.s32.totalorder %s24, 0
        %s297 = scalar_select %p296, %s24, 0
        %s298 = scalar_lea.vmem %s3, %s297
        %s299 = smul.u32 32, %s23
        %p300 = scmp.lt.s32.totalorder %s299, 63
        %s301 = scalar_select %p300, %s299, 63
        %p302 = scmp.lt.s32.totalorder %s24, 0
        %s303 = scalar_select %p302, %s24, 0
        %s304 = sadd.s32 %s303, %s301
        %s305 = smul.addr %s304, 4
        %s306 = scalar_lea.vmem %s4, %s305
        %s307 = smul.u32 32, %s23
        %p308 = scmp.eq.s32.totalorder %s25, 0
        // Predicated region
        $region41: #{gcn1_forward.3} parent=35 // pred_check
          %p309 = pneg %p308
        $region42: #{gcn1_forward.3} parent=35 // pred_check_branch
          %311 = sbr.rel (%p309) target = $region44
        $region43: #{gcn1_forward.3} parent=35 // pred_region
          %312 = vst [vmem:[#allocation2] sm:$0xff] 0.0
          %313 = vst [vmem:[#allocation2 + $0x8] sm:$0xff] 0.0
          %314 = vst [vmem:[#allocation2 + $0x10] sm:$0xff] 0.0
          %315 = vst [vmem:[#allocation2 + $0x18] sm:$0xff] 0.0
          %316 = vst [vmem:[#allocation2 + $0x20] sm:$0xff] 0.0
          %317 = vst [vmem:[#allocation2 + $0x28] sm:$0xff] 0.0
          %318 = vst [vmem:[#allocation2 + $0x30] sm:$0xff] 0.0
          %319 = vst [vmem:[#allocation2 + $0x38] sm:$0xff] 0.0
          %320 = vst [vmem:[#allocation2 + $0x40] sm:$0xff] 0.0
          %321 = vst [vmem:[#allocation2 + $0x48] sm:$0xff] 0.0
          %322 = vst [vmem:[#allocation2 + $0x50] sm:$0xff] 0.0
          %323 = vst [vmem:[#allocation2 + $0x58] sm:$0xff] 0.0
          %324 = vst [vmem:[#allocation2 + $0x60] sm:$0xff] 0.0
          %325 = vst [vmem:[#allocation2 + $0x68] sm:$0xff] 0.0
          %326 = vst [vmem:[#allocation2 + $0x70] sm:$0xff] 0.0
          %327 = vst [vmem:[#allocation2 + $0x78] sm:$0xff] 0.0
          %328 = vst [vmem:[#allocation2 + $0x80] sm:$0xff] 0.0
          %329 = vst [vmem:[#allocation2 + $0x88] sm:$0xff] 0.0
          %330 = vst [vmem:[#allocation2 + $0x90] sm:$0xff] 0.0
          %331 = vst [vmem:[#allocation2 + $0x98] sm:$0xff] 0.0
          %332 = vst [vmem:[#allocation2 + $0xa0] sm:$0xff] 0.0
          %333 = vst [vmem:[#allocation2 + $0xa8] sm:$0xff] 0.0
          %334 = vst [vmem:[#allocation2 + $0xb0] sm:$0xff] 0.0
          %335 = vst [vmem:[#allocation2 + $0xb8] sm:$0xff] 0.0
          %336 = vst [vmem:[#allocation2 + $0xc0] sm:$0xff] 0.0
          %337 = vst [vmem:[#allocation2 + $0xc8] sm:$0xff] 0.0
          %338 = vst [vmem:[#allocation2 + $0xd0] sm:$0xff] 0.0
          %339 = vst [vmem:[#allocation2 + $0xd8] sm:$0xff] 0.0
          %340 = vst [vmem:[#allocation2 + $0xe0] sm:$0xff] 0.0
          %341 = vst [vmem:[#allocation2 + $0xe8] sm:$0xff] 0.0
          %342 = vst [vmem:[#allocation2 + $0xf0] sm:$0xff] 0.0
          %343 = vst [vmem:[#allocation2 + $0xf8] sm:$0xff] 0.0
        $region44: #{gcn1_forward.3} parent=35 // pred_fallthru
          _
        %v344 = vld [vmem:[%s290] sm:$0xf]
        %v345 = vld [vmem:[%s290 + $0x4] sm:$0xf]
        %v346 = vld [vmem:[%s290 + $0x8] sm:$0xf]
        %v347 = vld [vmem:[%s290 + $0xc] sm:$0xf]
        %v348 = vld [vmem:[%s290 + $0x10] sm:$0xf]
        %v349 = vld [vmem:[%s290 + $0x14] sm:$0xf]
        %v350 = vld [vmem:[%s290 + $0x18] sm:$0xf]
        %v351 = vld [vmem:[%s290 + $0x1c] sm:$0xf]
        %v352 = vld [vmem:[%s290 + $0x20] sm:$0xf]
        %v353 = vld [vmem:[%s290 + $0x24] sm:$0xf]
        %v354 = vld [vmem:[%s290 + $0x28] sm:$0xf]
        %v355 = vld [vmem:[%s290 + $0x2c] sm:$0xf]
        %v356 = vld [vmem:[%s290 + $0x30] sm:$0xf]
        %v357 = vld [vmem:[%s290 + $0x34] sm:$0xf]
        %v358 = vld [vmem:[%s290 + $0x38] sm:$0xf]
        %v359 = vld [vmem:[%s290 + $0x3c] sm:$0xf]
        %v360 = vld [vmem:[%s290 + $0x40] sm:$0xf]
        %v361 = vld [vmem:[%s290 + $0x44] sm:$0xf]
        %v362 = vld [vmem:[%s290 + $0x48] sm:$0xf]
        %v363 = vld [vmem:[%s290 + $0x4c] sm:$0xf]
        %v364 = vld [vmem:[%s290 + $0x50] sm:$0xf]
        %v365 = vld [vmem:[%s290 + $0x54] sm:$0xf]
        %v366 = vld [vmem:[%s290 + $0x58] sm:$0xf]
        %v367 = vld [vmem:[%s290 + $0x5c] sm:$0xf]
        %v368 = vld [vmem:[%s290 + $0x60] sm:$0xf]
        %v369 = vld [vmem:[%s290 + $0x64] sm:$0xf]
        %v370 = vld [vmem:[%s290 + $0x68] sm:$0xf]
        %v371 = vld [vmem:[%s290 + $0x6c] sm:$0xf]
        %v372 = vld [vmem:[%s290 + $0x70] sm:$0xf]
        %v373 = vld [vmem:[%s290 + $0x74] sm:$0xf]
        %v374 = vld [vmem:[%s290 + $0x78] sm:$0xf]
        %v375 = vld [vmem:[%s290 + $0x7c] sm:$0xf]
        %v376 = vld [vmem:[%s290 + $0x80] sm:$0xf]
        %v377 = vld [vmem:[%s290 + $0x84] sm:$0xf]
        %v378 = vld [vmem:[%s290 + $0x88] sm:$0xf]
        %v379 = vld [vmem:[%s290 + $0x8c] sm:$0xf]
        %v380 = vld [vmem:[%s290 + $0x90] sm:$0xf]
        %v381 = vld [vmem:[%s290 + $0x94] sm:$0xf]
        %v382 = vld [vmem:[%s290 + $0x98] sm:$0xf]
        %v383 = vld [vmem:[%s290 + $0x9c] sm:$0xf]
        %v384 = vld [vmem:[%s290 + $0xa0] sm:$0xf]
        %v385 = vld [vmem:[%s290 + $0xa4] sm:$0xf]
        %v386 = vld [vmem:[%s290 + $0xa8] sm:$0xf]
        %v387 = vld [vmem:[%s290 + $0xac] sm:$0xf]
        %v388 = vld [vmem:[%s290 + $0xb0] sm:$0xf]
        %v389 = vld [vmem:[%s290 + $0xb4] sm:$0xf]
        %v390 = vld [vmem:[%s290 + $0xb8] sm:$0xf]
        %v391 = vld [vmem:[%s290 + $0xbc] sm:$0xf]
        %v392 = vld [vmem:[%s290 + $0xc0] sm:$0xf]
        %v393 = vld [vmem:[%s290 + $0xc4] sm:$0xf]
        %v394 = vld [vmem:[%s290 + $0xc8] sm:$0xf]
        %v395 = vld [vmem:[%s290 + $0xcc] sm:$0xf]
        %v396 = vld [vmem:[%s290 + $0xd0] sm:$0xf]
        %v397 = vld [vmem:[%s290 + $0xd4] sm:$0xf]
        %v398 = vld [vmem:[%s290 + $0xd8] sm:$0xf]
        %v399 = vld [vmem:[%s290 + $0xdc] sm:$0xf]
        %v400 = vld [vmem:[%s290 + $0xe0] sm:$0xf]
        %v401 = vld [vmem:[%s290 + $0xe4] sm:$0xf]
        %v402 = vld [vmem:[%s290 + $0xe8] sm:$0xf]
        %v403 = vld [vmem:[%s290 + $0xec] sm:$0xf]
        %v404 = vld [vmem:[%s290 + $0xf0] sm:$0xf]
        %v405 = vld [vmem:[%s290 + $0xf4] sm:$0xf]
        %v406 = vld [vmem:[%s290 + $0xf8] sm:$0xf]
        %v407 = vld [vmem:[%s290 + $0xfc] sm:$0xf]
        %v408 = vld [vmem:[%s295] sm:$0xf]
        %v409 = vld [vmem:[%s295 + $0x4] sm:$0xf]
        %v410 = vld [vmem:[%s295 + $0x8] sm:$0xf]
        %v411 = vld [vmem:[%s295 + $0xc] sm:$0xf]
        %v412 = vld [vmem:[%s295 + $0x10] sm:$0xf]
        %v413 = vld [vmem:[%s295 + $0x14] sm:$0xf]
        %v414 = vld [vmem:[%s295 + $0x18] sm:$0xf]
        %v415 = vld [vmem:[%s295 + $0x1c] sm:$0xf]
        %v416 = vld [vmem:[%s295 + $0x20] sm:$0xf]
        %v417 = vld [vmem:[%s295 + $0x24] sm:$0xf]
        %v418 = vld [vmem:[%s295 + $0x28] sm:$0xf]
        %v419 = vld [vmem:[%s295 + $0x2c] sm:$0xf]
        %v420 = vld [vmem:[%s295 + $0x30] sm:$0xf]
        %v421 = vld [vmem:[%s295 + $0x34] sm:$0xf]
        %v422 = vld [vmem:[%s295 + $0x38] sm:$0xf]
        %v423 = vld [vmem:[%s295 + $0x3c] sm:$0xf]
        %v424 = vld [vmem:[%s298] sm:$0x1]
        %v426 = vperm.slane %v424, 0
        %v492 = vunpack.c.l.b16 %v344
        %v493 = vunpack.c.l.b16 %v345
        %v494 = vunpack.c.l.b16 %v346
        %v495 = vunpack.c.l.b16 %v347
        %v496 = vunpack.c.l.b16 %v348
        %v497 = vunpack.c.l.b16 %v349
        %v498 = vunpack.c.l.b16 %v350
        %v499 = vunpack.c.l.b16 %v351
        %v500 = vunpack.c.l.b16 %v352
        %v501 = vunpack.c.l.b16 %v353
        %v502 = vunpack.c.l.b16 %v354
        %v503 = vunpack.c.l.b16 %v355
        %v504 = vunpack.c.l.b16 %v356
        %v505 = vunpack.c.l.b16 %v357
        %v506 = vunpack.c.l.b16 %v358
        %v507 = vunpack.c.l.b16 %v359
        %v508 = vunpack.c.l.b16 %v360
        %v509 = vunpack.c.l.b16 %v361
        %v510 = vunpack.c.l.b16 %v362
        %v511 = vunpack.c.l.b16 %v363
        %v512 = vunpack.c.l.b16 %v364
        %v513 = vunpack.c.l.b16 %v365
        %v514 = vunpack.c.l.b16 %v366
        %v515 = vunpack.c.l.b16 %v367
        %v516 = vunpack.c.l.b16 %v368
        %v517 = vunpack.c.l.b16 %v369
        %v518 = vunpack.c.l.b16 %v370
        %v519 = vunpack.c.l.b16 %v371
        %v520 = vunpack.c.l.b16 %v372
        %v521 = vunpack.c.l.b16 %v373
        %v522 = vunpack.c.l.b16 %v374
        %v523 = vunpack.c.l.b16 %v375
        %v524 = vunpack.c.l.b16 %v376
        %v525 = vunpack.c.l.b16 %v377
        %v526 = vunpack.c.l.b16 %v378
        %v527 = vunpack.c.l.b16 %v379
        %v528 = vunpack.c.l.b16 %v380
        %v529 = vunpack.c.l.b16 %v381
        %v530 = vunpack.c.l.b16 %v382
        %v531 = vunpack.c.l.b16 %v383
        %v532 = vunpack.c.l.b16 %v384
        %v533 = vunpack.c.l.b16 %v385
        %v534 = vunpack.c.l.b16 %v386
        %v535 = vunpack.c.l.b16 %v387
        %v536 = vunpack.c.l.b16 %v388
        %v537 = vunpack.c.l.b16 %v389
        %v538 = vunpack.c.l.b16 %v390
        %v539 = vunpack.c.l.b16 %v391
        %v540 = vunpack.c.l.b16 %v392
        %v541 = vunpack.c.l.b16 %v393
        %v542 = vunpack.c.l.b16 %v394
        %v543 = vunpack.c.l.b16 %v395
        %v544 = vunpack.c.l.b16 %v396
        %v545 = vunpack.c.l.b16 %v397
        %v546 = vunpack.c.l.b16 %v398
        %v547 = vunpack.c.l.b16 %v399
        %v548 = vunpack.c.l.b16 %v400
        %v549 = vunpack.c.l.b16 %v401
        %v550 = vunpack.c.l.b16 %v402
        %v551 = vunpack.c.l.b16 %v403
        %v552 = vunpack.c.l.b16 %v404
        %v553 = vunpack.c.l.b16 %v405
        %v554 = vunpack.c.l.b16 %v406
        %v555 = vunpack.c.l.b16 %v407
        %v556 = vpack.c.b16 %v493, %v492
        %v557 = vpack.c.b16 %v495, %v494
        %v558 = vpack.c.b16 %v497, %v496
        %v559 = vpack.c.b16 %v499, %v498
        %v560 = vpack.c.b16 %v501, %v500
        %v561 = vpack.c.b16 %v503, %v502
        %v562 = vpack.c.b16 %v505, %v504
        %v563 = vpack.c.b16 %v507, %v506
        %v564 = vpack.c.b16 %v509, %v508
        %v565 = vpack.c.b16 %v511, %v510
        %v566 = vpack.c.b16 %v513, %v512
        %v567 = vpack.c.b16 %v515, %v514
        %v568 = vpack.c.b16 %v517, %v516
        %v569 = vpack.c.b16 %v519, %v518
        %v570 = vpack.c.b16 %v521, %v520
        %v571 = vpack.c.b16 %v523, %v522
        %v572 = vpack.c.b16 %v525, %v524
        %v573 = vpack.c.b16 %v527, %v526
        %v574 = vpack.c.b16 %v529, %v528
        %v575 = vpack.c.b16 %v531, %v530
        %v576 = vpack.c.b16 %v533, %v532
        %v577 = vpack.c.b16 %v535, %v534
        %v578 = vpack.c.b16 %v537, %v536
        %v579 = vpack.c.b16 %v539, %v538
        %v580 = vpack.c.b16 %v541, %v540
        %v581 = vpack.c.b16 %v543, %v542
        %v582 = vpack.c.b16 %v545, %v544
        %v583 = vpack.c.b16 %v547, %v546
        %v584 = vpack.c.b16 %v549, %v548
        %v585 = vpack.c.b16 %v551, %v550
        %v586 = vpack.c.b16 %v553, %v552
        %v587 = vpack.c.b16 %v555, %v554
        %v636 = vunpack.c.l.b16 %v408
        %v637 = vunpack.c.l.b16 %v409
        %v638 = vunpack.c.l.b16 %v410
        %v639 = vunpack.c.l.b16 %v411
        %v640 = vunpack.c.l.b16 %v412
        %v641 = vunpack.c.l.b16 %v413
        %v642 = vunpack.c.l.b16 %v414
        %v643 = vunpack.c.l.b16 %v415
        %v644 = vunpack.c.l.b16 %v416
        %v645 = vunpack.c.l.b16 %v417
        %v646 = vunpack.c.l.b16 %v418
        %v647 = vunpack.c.l.b16 %v419
        %v648 = vunpack.c.l.b16 %v420
        %v649 = vunpack.c.l.b16 %v421
        %v650 = vunpack.c.l.b16 %v422
        %v651 = vunpack.c.l.b16 %v423
        %v652 = vpack.c.b16 %v637, %v636
        %v653 = vpack.c.b16 %v639, %v638
        %v654 = vpack.c.b16 %v641, %v640
        %v655 = vpack.c.b16 %v643, %v642
        %v656 = vpack.c.b16 %v645, %v644
        %v657 = vpack.c.b16 %v647, %v646
        %v658 = vpack.c.b16 %v649, %v648
        %v659 = vpack.c.b16 %v651, %v650
        %668 = vmatpush.bf16.msra.mxu0 %v659
        %669 = vmatpush.bf16.msra.mxu0 %v658
        %670 = vmatpush.bf16.msra.mxu0 %v657
        %671 = vmatpush.bf16.msra.mxu0 %v656
        %672 = vmatpush.bf16.msra.mxu0 %v655
        %673 = vmatpush.bf16.msra.mxu0 %v654
        %674 = vmatpush.bf16.msra.mxu0 %v653
        %675 = vmatpush.bf16.msra.mxu0 %v652
        %676 = vmatmul.bf16.gmra.mxu0 %v556
        %v677 = vpop.f32.mrf.mxu0
        %v678 = vadd.f32 %v426, %v677
        %v679 = vpop.f32.mrf.mxu0
        %v680 = vadd.f32 %v426, %v679
        %681 = vmatmul.bf16.gmra.mxu0 %v557
        %v682 = vpop.f32.mrf.mxu0
        %v683 = vadd.f32 %v426, %v682
        %v684 = vpop.f32.mrf.mxu0
        %v685 = vadd.f32 %v426, %v684
        %686 = vmatmul.bf16.gmra.mxu0 %v558
        %v687 = vpop.f32.mrf.mxu0
        %v688 = vadd.f32 %v426, %v687
        %v689 = vpop.f32.mrf.mxu0
        %v690 = vadd.f32 %v426, %v689
        %691 = vmatmul.bf16.gmra.mxu0 %v559
        %v692 = vpop.f32.mrf.mxu0
        %v693 = vadd.f32 %v426, %v692
        %v694 = vpop.f32.mrf.mxu0
        %v695 = vadd.f32 %v426, %v694
        %696 = vmatmul.bf16.gmra.mxu0 %v560
        %v697 = vpop.f32.mrf.mxu0
        %v698 = vadd.f32 %v426, %v697
        %v699 = vpop.f32.mrf.mxu0
        %v700 = vadd.f32 %v426, %v699
        %701 = vmatmul.bf16.gmra.mxu0 %v561
        %v702 = vpop.f32.mrf.mxu0
        %v703 = vadd.f32 %v426, %v702
        %v704 = vpop.f32.mrf.mxu0
        %v705 = vadd.f32 %v426, %v704
        %706 = vmatmul.bf16.gmra.mxu0 %v562
        %v707 = vpop.f32.mrf.mxu0
        %v708 = vadd.f32 %v426, %v707
        %v709 = vpop.f32.mrf.mxu0
        %v710 = vadd.f32 %v426, %v709
        %711 = vmatmul.bf16.gmra.mxu0 %v563
        %v712 = vpop.f32.mrf.mxu0
        %v713 = vadd.f32 %v426, %v712
        %v714 = vpop.f32.mrf.mxu0
        %v715 = vadd.f32 %v426, %v714
        %716 = vmatmul.bf16.gmra.mxu0 %v564
        %v717 = vpop.f32.mrf.mxu0
        %v718 = vadd.f32 %v426, %v717
        %v719 = vpop.f32.mrf.mxu0
        %v720 = vadd.f32 %v426, %v719
        %721 = vmatmul.bf16.gmra.mxu0 %v565
        %v722 = vpop.f32.mrf.mxu0
        %v723 = vadd.f32 %v426, %v722
        %v724 = vpop.f32.mrf.mxu0
        %v725 = vadd.f32 %v426, %v724
        %726 = vmatmul.bf16.gmra.mxu0 %v566
        %v727 = vpop.f32.mrf.mxu0
        %v728 = vadd.f32 %v426, %v727
        %v729 = vpop.f32.mrf.mxu0
        %v730 = vadd.f32 %v426, %v729
        %731 = vmatmul.bf16.gmra.mxu0 %v567
        %v732 = vpop.f32.mrf.mxu0
        %v733 = vadd.f32 %v426, %v732
        %v734 = vpop.f32.mrf.mxu0
        %v735 = vadd.f32 %v426, %v734
        %736 = vmatmul.bf16.gmra.mxu0 %v568
        %v737 = vpop.f32.mrf.mxu0
        %v738 = vadd.f32 %v426, %v737
        %v739 = vpop.f32.mrf.mxu0
        %v740 = vadd.f32 %v426, %v739
        %741 = vmatmul.bf16.gmra.mxu0 %v569
        %v742 = vpop.f32.mrf.mxu0
        %v743 = vadd.f32 %v426, %v742
        %v744 = vpop.f32.mrf.mxu0
        %v745 = vadd.f32 %v426, %v744
        %746 = vmatmul.bf16.gmra.mxu0 %v570
        %v747 = vpop.f32.mrf.mxu0
        %v748 = vadd.f32 %v426, %v747
        %v749 = vpop.f32.mrf.mxu0
        %v750 = vadd.f32 %v426, %v749
        %751 = vmatmul.bf16.gmra.mxu0 %v571
        %v752 = vpop.f32.mrf.mxu0
        %v753 = vadd.f32 %v426, %v752
        %v754 = vpop.f32.mrf.mxu0
        %v755 = vadd.f32 %v426, %v754
        %756 = vmatmul.bf16.gmra.mxu0 %v572
        %v757 = vpop.f32.mrf.mxu0
        %v758 = vadd.f32 %v426, %v757
        %v759 = vpop.f32.mrf.mxu0
        %v760 = vadd.f32 %v426, %v759
        %761 = vmatmul.bf16.gmra.mxu0 %v573
        %v762 = vpop.f32.mrf.mxu0
        %v763 = vadd.f32 %v426, %v762
        %v764 = vpop.f32.mrf.mxu0
        %v765 = vadd.f32 %v426, %v764
        %766 = vmatmul.bf16.gmra.mxu0 %v574
        %v767 = vpop.f32.mrf.mxu0
        %v768 = vadd.f32 %v426, %v767
        %v769 = vpop.f32.mrf.mxu0
        %v770 = vadd.f32 %v426, %v769
        %771 = vmatmul.bf16.gmra.mxu0 %v575
        %v772 = vpop.f32.mrf.mxu0
        %v773 = vadd.f32 %v426, %v772
        %v774 = vpop.f32.mrf.mxu0
        %v775 = vadd.f32 %v426, %v774
        %776 = vmatmul.bf16.gmra.mxu0 %v576
        %v777 = vpop.f32.mrf.mxu0
        %v778 = vadd.f32 %v426, %v777
        %v779 = vpop.f32.mrf.mxu0
        %v780 = vadd.f32 %v426, %v779
        %781 = vmatmul.bf16.gmra.mxu0 %v577
        %v782 = vpop.f32.mrf.mxu0
        %v783 = vadd.f32 %v426, %v782
        %v784 = vpop.f32.mrf.mxu0
        %v785 = vadd.f32 %v426, %v784
        %786 = vmatmul.bf16.gmra.mxu0 %v578
        %v787 = vpop.f32.mrf.mxu0
        %v788 = vadd.f32 %v426, %v787
        %v789 = vpop.f32.mrf.mxu0
        %v790 = vadd.f32 %v426, %v789
        %791 = vmatmul.bf16.gmra.mxu0 %v579
        %v792 = vpop.f32.mrf.mxu0
        %v793 = vadd.f32 %v426, %v792
        %v794 = vpop.f32.mrf.mxu0
        %v795 = vadd.f32 %v426, %v794
        %796 = vmatmul.bf16.gmra.mxu0 %v580
        %v797 = vpop.f32.mrf.mxu0
        %v798 = vadd.f32 %v426, %v797
        %v799 = vpop.f32.mrf.mxu0
        %v800 = vadd.f32 %v426, %v799
        %801 = vmatmul.bf16.gmra.mxu0 %v581
        %v802 = vpop.f32.mrf.mxu0
        %v803 = vadd.f32 %v426, %v802
        %v804 = vpop.f32.mrf.mxu0
        %v805 = vadd.f32 %v426, %v804
        %806 = vmatmul.bf16.gmra.mxu0 %v582
        %v807 = vpop.f32.mrf.mxu0
        %v808 = vadd.f32 %v426, %v807
        %v809 = vpop.f32.mrf.mxu0
        %v810 = vadd.f32 %v426, %v809
        %811 = vmatmul.bf16.gmra.mxu0 %v583
        %v812 = vpop.f32.mrf.mxu0
        %v813 = vadd.f32 %v426, %v812
        %v814 = vpop.f32.mrf.mxu0
        %v815 = vadd.f32 %v426, %v814
        %816 = vmatmul.bf16.gmra.mxu0 %v584
        %v817 = vpop.f32.mrf.mxu0
        %v818 = vadd.f32 %v426, %v817
        %v819 = vpop.f32.mrf.mxu0
        %v820 = vadd.f32 %v426, %v819
        %821 = vmatmul.bf16.gmra.mxu0 %v585
        %v822 = vpop.f32.mrf.mxu0
        %v823 = vadd.f32 %v426, %v822
        %v824 = vpop.f32.mrf.mxu0
        %v825 = vadd.f32 %v426, %v824
        %826 = vmatmul.bf16.gmra.mxu0 %v586
        %v827 = vpop.f32.mrf.mxu0
        %v828 = vadd.f32 %v426, %v827
        %v829 = vpop.f32.mrf.mxu0
        %v830 = vadd.f32 %v426, %v829
        %831 = vmatmul.bf16.gmra.mxu0 %v587
        %v832 = vpop.f32.mrf.mxu0
        %v833 = vadd.f32 %v426, %v832
        %v834 = vpop.f32.mrf.mxu0
        %v835 = vadd.f32 %v426, %v834
        %836 = vdwg.mxu0
        %v837 = vld [vmem:[#allocation2] sm:$0xff]
        %v838 = vld [vmem:[#allocation2 + $0x8] sm:$0xff]
        %v839 = vld [vmem:[#allocation2 + $0x10] sm:$0xff]
        %v840 = vld [vmem:[#allocation2 + $0x18] sm:$0xff]
        %v841 = vld [vmem:[#allocation2 + $0x20] sm:$0xff]
        %v842 = vld [vmem:[#allocation2 + $0x28] sm:$0xff]
        %v843 = vld [vmem:[#allocation2 + $0x30] sm:$0xff]
        %v844 = vld [vmem:[#allocation2 + $0x38] sm:$0xff]
        %v845 = vld [vmem:[#allocation2 + $0x40] sm:$0xff]
        %v846 = vld [vmem:[#allocation2 + $0x48] sm:$0xff]
        %v847 = vld [vmem:[#allocation2 + $0x50] sm:$0xff]
        %v848 = vld [vmem:[#allocation2 + $0x58] sm:$0xff]
        %v849 = vld [vmem:[#allocation2 + $0x60] sm:$0xff]
        %v850 = vld [vmem:[#allocation2 + $0x68] sm:$0xff]
        %v851 = vld [vmem:[#allocation2 + $0x70] sm:$0xff]
        %v852 = vld [vmem:[#allocation2 + $0x78] sm:$0xff]
        %v853 = vld [vmem:[#allocation2 + $0x80] sm:$0xff]
        %v854 = vld [vmem:[#allocation2 + $0x88] sm:$0xff]
        %v855 = vld [vmem:[#allocation2 + $0x90] sm:$0xff]
        %v856 = vld [vmem:[#allocation2 + $0x98] sm:$0xff]
        %v857 = vld [vmem:[#allocation2 + $0xa0] sm:$0xff]
        %v858 = vld [vmem:[#allocation2 + $0xa8] sm:$0xff]
        %v859 = vld [vmem:[#allocation2 + $0xb0] sm:$0xff]
        %v860 = vld [vmem:[#allocation2 + $0xb8] sm:$0xff]
        %v861 = vld [vmem:[#allocation2 + $0xc0] sm:$0xff]
        %v862 = vld [vmem:[#allocation2 + $0xc8] sm:$0xff]
        %v863 = vld [vmem:[#allocation2 + $0xd0] sm:$0xff]
        %v864 = vld [vmem:[#allocation2 + $0xd8] sm:$0xff]
        %v865 = vld [vmem:[#allocation2 + $0xe0] sm:$0xff]
        %v866 = vld [vmem:[#allocation2 + $0xe8] sm:$0xff]
        %v867 = vld [vmem:[#allocation2 + $0xf0] sm:$0xff]
        %v868 = vld [vmem:[#allocation2 + $0xf8] sm:$0xff]
        %v869 = vld [vmem:[%s243] sm:$0xff]
        %v870 = vld [vmem:[%s243 + $0x8] sm:$0xff]
        %v871 = vld [vmem:[%s243 + $0x10] sm:$0xff]
        %v872 = vld [vmem:[%s243 + $0x18] sm:$0xff]
        %v873 = vld [vmem:[%s243 + $0x20] sm:$0xff]
        %v874 = vld [vmem:[%s243 + $0x28] sm:$0xff]
        %v875 = vld [vmem:[%s243 + $0x30] sm:$0xff]
        %v876 = vld [vmem:[%s243 + $0x38] sm:$0xff]
        %v877 = vld [vmem:[%s243 + $0x40] sm:$0xff]
        %v878 = vld [vmem:[%s243 + $0x48] sm:$0xff]
        %v879 = vld [vmem:[%s243 + $0x50] sm:$0xff]
        %v880 = vld [vmem:[%s243 + $0x58] sm:$0xff]
        %v881 = vld [vmem:[%s243 + $0x60] sm:$0xff]
        %v882 = vld [vmem:[%s243 + $0x68] sm:$0xff]
        %v883 = vld [vmem:[%s243 + $0x70] sm:$0xff]
        %v884 = vld [vmem:[%s243 + $0x78] sm:$0xff]
        %v885 = vld [vmem:[%s243 + $0x80] sm:$0xff]
        %v886 = vld [vmem:[%s243 + $0x88] sm:$0xff]
        %v887 = vld [vmem:[%s243 + $0x90] sm:$0xff]
        %v888 = vld [vmem:[%s243 + $0x98] sm:$0xff]
        %v889 = vld [vmem:[%s243 + $0xa0] sm:$0xff]
        %v890 = vld [vmem:[%s243 + $0xa8] sm:$0xff]
        %v891 = vld [vmem:[%s243 + $0xb0] sm:$0xff]
        %v892 = vld [vmem:[%s243 + $0xb8] sm:$0xff]
        %v893 = vld [vmem:[%s243 + $0xc0] sm:$0xff]
        %v894 = vld [vmem:[%s243 + $0xc8] sm:$0xff]
        %v895 = vld [vmem:[%s243 + $0xd0] sm:$0xff]
        %v896 = vld [vmem:[%s243 + $0xd8] sm:$0xff]
        %v897 = vld [vmem:[%s243 + $0xe0] sm:$0xff]
        %v898 = vld [vmem:[%s243 + $0xe8] sm:$0xff]
        %v899 = vld [vmem:[%s243 + $0xf0] sm:$0xff]
        %v900 = vld [vmem:[%s243 + $0xf8] sm:$0xff]
        %v901 = vld [vmem:[%s243 + $0x100] sm:$0xff]
        %v902 = vld [vmem:[%s243 + $0x108] sm:$0xff]
        %v903 = vld [vmem:[%s243 + $0x110] sm:$0xff]
        %v904 = vld [vmem:[%s243 + $0x118] sm:$0xff]
        %v905 = vld [vmem:[%s243 + $0x120] sm:$0xff]
        %v906 = vld [vmem:[%s243 + $0x128] sm:$0xff]
        %v907 = vld [vmem:[%s243 + $0x130] sm:$0xff]
        %v908 = vld [vmem:[%s243 + $0x138] sm:$0xff]
        %v909 = vld [vmem:[%s243 + $0x140] sm:$0xff]
        %v910 = vld [vmem:[%s243 + $0x148] sm:$0xff]
        %v911 = vld [vmem:[%s243 + $0x150] sm:$0xff]
        %v912 = vld [vmem:[%s243 + $0x158] sm:$0xff]
        %v913 = vld [vmem:[%s243 + $0x160] sm:$0xff]
        %v914 = vld [vmem:[%s243 + $0x168] sm:$0xff]
        %v915 = vld [vmem:[%s243 + $0x170] sm:$0xff]
        %v916 = vld [vmem:[%s243 + $0x178] sm:$0xff]
        %v917 = vld [vmem:[%s243 + $0x180] sm:$0xff]
        %v918 = vld [vmem:[%s243 + $0x188] sm:$0xff]
        %v919 = vld [vmem:[%s243 + $0x190] sm:$0xff]
        %v920 = vld [vmem:[%s243 + $0x198] sm:$0xff]
        %v921 = vld [vmem:[%s243 + $0x1a0] sm:$0xff]
        %v922 = vld [vmem:[%s243 + $0x1a8] sm:$0xff]
        %v923 = vld [vmem:[%s243 + $0x1b0] sm:$0xff]
        %v924 = vld [vmem:[%s243 + $0x1b8] sm:$0xff]
        %v925 = vld [vmem:[%s243 + $0x1c0] sm:$0xff]
        %v926 = vld [vmem:[%s243 + $0x1c8] sm:$0xff]
        %v927 = vld [vmem:[%s243 + $0x1d0] sm:$0xff]
        %v928 = vld [vmem:[%s243 + $0x1d8] sm:$0xff]
        %v929 = vld [vmem:[%s243 + $0x1e0] sm:$0xff]
        %v930 = vld [vmem:[%s243 + $0x1e8] sm:$0xff]
        %v931 = vld [vmem:[%s243 + $0x1f0] sm:$0xff]
        %v932 = vld [vmem:[%s243 + $0x1f8] sm:$0xff]
        %v933 = vpack.c.bf16 %v680, %v678
        %v934 = vpack.c.bf16 %v685, %v683
        %v935 = vpack.c.bf16 %v690, %v688
        %v936 = vpack.c.bf16 %v695, %v693
        %v937 = vpack.c.bf16 %v700, %v698
        %v938 = vpack.c.bf16 %v705, %v703
        %v939 = vpack.c.bf16 %v710, %v708
        %v940 = vpack.c.bf16 %v715, %v713
        %v941 = vpack.c.bf16 %v720, %v718
        %v942 = vpack.c.bf16 %v725, %v723
        %v943 = vpack.c.bf16 %v730, %v728
        %v944 = vpack.c.bf16 %v735, %v733
        %v945 = vpack.c.bf16 %v740, %v738
        %v946 = vpack.c.bf16 %v745, %v743
        %v947 = vpack.c.bf16 %v750, %v748
        %v948 = vpack.c.bf16 %v755, %v753
        %v949 = vpack.c.bf16 %v760, %v758
        %v950 = vpack.c.bf16 %v765, %v763
        %v951 = vpack.c.bf16 %v770, %v768
        %v952 = vpack.c.bf16 %v775, %v773
        %v953 = vpack.c.bf16 %v780, %v778
        %v954 = vpack.c.bf16 %v785, %v783
        %v955 = vpack.c.bf16 %v790, %v788
        %v956 = vpack.c.bf16 %v795, %v793
        %v957 = vpack.c.bf16 %v800, %v798
        %v958 = vpack.c.bf16 %v805, %v803
        %v959 = vpack.c.bf16 %v810, %v808
        %v960 = vpack.c.bf16 %v815, %v813
        %v961 = vpack.c.bf16 %v820, %v818
        %v962 = vpack.c.bf16 %v825, %v823
        %v963 = vpack.c.bf16 %v830, %v828
        %v964 = vpack.c.bf16 %v835, %v833
        %v1029 = vunpack.c.l.b16 %v869
        %v1030 = vunpack.c.h.b16 %v869
        %v1031 = vunpack.c.l.b16 %v870
        %v1032 = vunpack.c.h.b16 %v870
        %v1033 = vunpack.c.l.b16 %v871
        %v1034 = vunpack.c.h.b16 %v871
        %v1035 = vunpack.c.l.b16 %v872
        %v1036 = vunpack.c.h.b16 %v872
        %v1037 = vunpack.c.l.b16 %v873
        %v1038 = vunpack.c.h.b16 %v873
        %v1039 = vunpack.c.l.b16 %v874
        %v1040 = vunpack.c.h.b16 %v874
        %v1041 = vunpack.c.l.b16 %v875
        %v1042 = vunpack.c.h.b16 %v875
        %v1043 = vunpack.c.l.b16 %v876
        %v1044 = vunpack.c.h.b16 %v876
        %v1045 = vunpack.c.l.b16 %v877
        %v1046 = vunpack.c.h.b16 %v877
        %v1047 = vunpack.c.l.b16 %v878
        %v1048 = vunpack.c.h.b16 %v878
        %v1049 = vunpack.c.l.b16 %v879
        %v1050 = vunpack.c.h.b16 %v879
        %v1051 = vunpack.c.l.b16 %v880
        %v1052 = vunpack.c.h.b16 %v880
        %v1053 = vunpack.c.l.b16 %v881
        %v1054 = vunpack.c.h.b16 %v881
        %v1055 = vunpack.c.l.b16 %v882
        %v1056 = vunpack.c.h.b16 %v882
        %v1057 = vunpack.c.l.b16 %v883
        %v1058 = vunpack.c.h.b16 %v883
        %v1059 = vunpack.c.l.b16 %v884
        %v1060 = vunpack.c.h.b16 %v884
        %v1061 = vunpack.c.l.b16 %v885
        %v1062 = vunpack.c.h.b16 %v885
        %v1063 = vunpack.c.l.b16 %v886
        %v1064 = vunpack.c.h.b16 %v886
        %v1065 = vunpack.c.l.b16 %v887
        %v1066 = vunpack.c.h.b16 %v887
        %v1067 = vunpack.c.l.b16 %v888
        %v1068 = vunpack.c.h.b16 %v888
        %v1069 = vunpack.c.l.b16 %v889
        %v1070 = vunpack.c.h.b16 %v889
        %v1071 = vunpack.c.l.b16 %v890
        %v1072 = vunpack.c.h.b16 %v890
        %v1073 = vunpack.c.l.b16 %v891
        %v1074 = vunpack.c.h.b16 %v891
        %v1075 = vunpack.c.l.b16 %v892
        %v1076 = vunpack.c.h.b16 %v892
        %v1077 = vunpack.c.l.b16 %v893
        %v1078 = vunpack.c.h.b16 %v893
        %v1079 = vunpack.c.l.b16 %v894
        %v1080 = vunpack.c.h.b16 %v894
        %v1081 = vunpack.c.l.b16 %v895
        %v1082 = vunpack.c.h.b16 %v895
        %v1083 = vunpack.c.l.b16 %v896
        %v1084 = vunpack.c.h.b16 %v896
        %v1085 = vunpack.c.l.b16 %v897
        %v1086 = vunpack.c.h.b16 %v897
        %v1087 = vunpack.c.l.b16 %v898
        %v1088 = vunpack.c.h.b16 %v898
        %v1089 = vunpack.c.l.b16 %v899
        %v1090 = vunpack.c.h.b16 %v899
        %v1091 = vunpack.c.l.b16 %v900
        %v1092 = vunpack.c.h.b16 %v900
        %v1093 = vunpack.c.l.b16 %v901
        %v1094 = vunpack.c.h.b16 %v901
        %v1095 = vunpack.c.l.b16 %v902
        %v1096 = vunpack.c.h.b16 %v902
        %v1097 = vunpack.c.l.b16 %v903
        %v1098 = vunpack.c.h.b16 %v903
        %v1099 = vunpack.c.l.b16 %v904
        %v1100 = vunpack.c.h.b16 %v904
        %v1101 = vunpack.c.l.b16 %v905
        %v1102 = vunpack.c.h.b16 %v905
        %v1103 = vunpack.c.l.b16 %v906
        %v1104 = vunpack.c.h.b16 %v906
        %v1105 = vunpack.c.l.b16 %v907
        %v1106 = vunpack.c.h.b16 %v907
        %v1107 = vunpack.c.l.b16 %v908
        %v1108 = vunpack.c.h.b16 %v908
        %v1109 = vunpack.c.l.b16 %v909
        %v1110 = vunpack.c.h.b16 %v909
        %v1111 = vunpack.c.l.b16 %v910
        %v1112 = vunpack.c.h.b16 %v910
        %v1113 = vunpack.c.l.b16 %v911
        %v1114 = vunpack.c.h.b16 %v911
        %v1115 = vunpack.c.l.b16 %v912
        %v1116 = vunpack.c.h.b16 %v912
        %v1117 = vunpack.c.l.b16 %v913
        %v1118 = vunpack.c.h.b16 %v913
        %v1119 = vunpack.c.l.b16 %v914
        %v1120 = vunpack.c.h.b16 %v914
        %v1121 = vunpack.c.l.b16 %v915
        %v1122 = vunpack.c.h.b16 %v915
        %v1123 = vunpack.c.l.b16 %v916
        %v1124 = vunpack.c.h.b16 %v916
        %v1125 = vunpack.c.l.b16 %v917
        %v1126 = vunpack.c.h.b16 %v917
        %v1127 = vunpack.c.l.b16 %v918
        %v1128 = vunpack.c.h.b16 %v918
        %v1129 = vunpack.c.l.b16 %v919
        %v1130 = vunpack.c.h.b16 %v919
        %v1131 = vunpack.c.l.b16 %v920
        %v1132 = vunpack.c.h.b16 %v920
        %v1133 = vunpack.c.l.b16 %v921
        %v1134 = vunpack.c.h.b16 %v921
        %v1135 = vunpack.c.l.b16 %v922
        %v1136 = vunpack.c.h.b16 %v922
        %v1137 = vunpack.c.l.b16 %v923
        %v1138 = vunpack.c.h.b16 %v923
        %v1139 = vunpack.c.l.b16 %v924
        %v1140 = vunpack.c.h.b16 %v924
        %v1141 = vunpack.c.l.b16 %v925
        %v1142 = vunpack.c.h.b16 %v925
        %v1143 = vunpack.c.l.b16 %v926
        %v1144 = vunpack.c.h.b16 %v926
        %v1145 = vunpack.c.l.b16 %v927
        %v1146 = vunpack.c.h.b16 %v927
        %v1147 = vunpack.c.l.b16 %v928
        %v1148 = vunpack.c.h.b16 %v928
        %v1149 = vunpack.c.l.b16 %v929
        %v1150 = vunpack.c.h.b16 %v929
        %v1151 = vunpack.c.l.b16 %v930
        %v1152 = vunpack.c.h.b16 %v930
        %v1153 = vunpack.c.l.b16 %v931
        %v1154 = vunpack.c.h.b16 %v931
        %v1155 = vunpack.c.l.b16 %v932
        %v1156 = vunpack.c.h.b16 %v932
        %v1157 = vpack.c.b16 %v1033, %v1029
        %v1158 = vpack.c.b16 %v1034, %v1030
        %v1159 = vpack.c.b16 %v1035, %v1031
        %v1160 = vpack.c.b16 %v1036, %v1032
        %v1161 = vpack.c.b16 %v1041, %v1037
        %v1162 = vpack.c.b16 %v1042, %v1038
        %v1163 = vpack.c.b16 %v1043, %v1039
        %v1164 = vpack.c.b16 %v1044, %v1040
        %v1165 = vpack.c.b16 %v1049, %v1045
        %v1166 = vpack.c.b16 %v1050, %v1046
        %v1167 = vpack.c.b16 %v1051, %v1047
        %v1168 = vpack.c.b16 %v1052, %v1048
        %v1169 = vpack.c.b16 %v1057, %v1053
        %v1170 = vpack.c.b16 %v1058, %v1054
        %v1171 = vpack.c.b16 %v1059, %v1055
        %v1172 = vpack.c.b16 %v1060, %v1056
        %v1173 = vpack.c.b16 %v1065, %v1061
        %v1174 = vpack.c.b16 %v1066, %v1062
        %v1175 = vpack.c.b16 %v1067, %v1063
        %v1176 = vpack.c.b16 %v1068, %v1064
        %v1177 = vpack.c.b16 %v1073, %v1069
        %v1178 = vpack.c.b16 %v1074, %v1070
        %v1179 = vpack.c.b16 %v1075, %v1071
        %v1180 = vpack.c.b16 %v1076, %v1072
        %v1181 = vpack.c.b16 %v1081, %v1077
        %v1182 = vpack.c.b16 %v1082, %v1078
        %v1183 = vpack.c.b16 %v1083, %v1079
        %v1184 = vpack.c.b16 %v1084, %v1080
        %v1185 = vpack.c.b16 %v1089, %v1085
        %v1186 = vpack.c.b16 %v1090, %v1086
        %v1187 = vpack.c.b16 %v1091, %v1087
        %v1188 = vpack.c.b16 %v1092, %v1088
        %v1189 = vpack.c.b16 %v1097, %v1093
        %v1190 = vpack.c.b16 %v1098, %v1094
        %v1191 = vpack.c.b16 %v1099, %v1095
        %v1192 = vpack.c.b16 %v1100, %v1096
        %v1193 = vpack.c.b16 %v1105, %v1101
        %v1194 = vpack.c.b16 %v1106, %v1102
        %v1195 = vpack.c.b16 %v1107, %v1103
        %v1196 = vpack.c.b16 %v1108, %v1104
        %v1197 = vpack.c.b16 %v1113, %v1109
        %v1198 = vpack.c.b16 %v1114, %v1110
        %v1199 = vpack.c.b16 %v1115, %v1111
        %v1200 = vpack.c.b16 %v1116, %v1112
        %v1201 = vpack.c.b16 %v1121, %v1117
        %v1202 = vpack.c.b16 %v1122, %v1118
        %v1203 = vpack.c.b16 %v1123, %v1119
        %v1204 = vpack.c.b16 %v1124, %v1120
        %v1205 = vpack.c.b16 %v1129, %v1125
        %v1206 = vpack.c.b16 %v1130, %v1126
        %v1207 = vpack.c.b16 %v1131, %v1127
        %v1208 = vpack.c.b16 %v1132, %v1128
        %v1209 = vpack.c.b16 %v1137, %v1133
        %v1210 = vpack.c.b16 %v1138, %v1134
        %v1211 = vpack.c.b16 %v1139, %v1135
        %v1212 = vpack.c.b16 %v1140, %v1136
        %v1213 = vpack.c.b16 %v1145, %v1141
        %v1214 = vpack.c.b16 %v1146, %v1142
        %v1215 = vpack.c.b16 %v1147, %v1143
        %v1216 = vpack.c.b16 %v1148, %v1144
        %v1217 = vpack.c.b16 %v1153, %v1149
        %v1218 = vpack.c.b16 %v1154, %v1150
        %v1219 = vpack.c.b16 %v1155, %v1151
        %v1220 = vpack.c.b16 %v1156, %v1152
        %1285 = vmatpush.bf16.msra.mxu0 %v940
        %1286 = vmatpush.bf16.msra.mxu0 %v939
        %1287 = vmatpush.bf16.msra.mxu0 %v938
        %1288 = vmatpush.bf16.msra.mxu0 %v937
        %1289 = vmatpush.bf16.msra.mxu0 %v936
        %1290 = vmatpush.bf16.msra.mxu0 %v935
        %1291 = vmatpush.bf16.msra.mxu0 %v934
        %1292 = vmatpush.bf16.msra.mxu0 %v933
        %1293 = vmatmul.bf16.gmra.mxu0 %v1157
        %v1294 = vpop.f32.mrf.mxu0
        %v1295 = vadd.f32 0.0, %v1294
        %v1296 = vpop.f32.mrf.mxu0
        %v1297 = vadd.f32 0.0, %v1296
        %1298 = vmatmul.bf16.gmra.mxu0 %v1161
        %v1299 = vpop.f32.mrf.mxu0
        %v1300 = vadd.f32 0.0, %v1299
        %v1301 = vpop.f32.mrf.mxu0
        %v1302 = vadd.f32 0.0, %v1301
        %1303 = vmatmul.bf16.gmra.mxu0 %v1165
        %v1304 = vpop.f32.mrf.mxu0
        %v1305 = vadd.f32 0.0, %v1304
        %v1306 = vpop.f32.mrf.mxu0
        %v1307 = vadd.f32 0.0, %v1306
        %1308 = vmatmul.bf16.gmra.mxu0 %v1169
        %v1309 = vpop.f32.mrf.mxu0
        %v1310 = vadd.f32 0.0, %v1309
        %v1311 = vpop.f32.mrf.mxu0
        %v1312 = vadd.f32 0.0, %v1311
        %1313 = vmatmul.bf16.gmra.mxu0 %v1173
        %v1314 = vpop.f32.mrf.mxu0
        %v1315 = vadd.f32 0.0, %v1314
        %v1316 = vpop.f32.mrf.mxu0
        %v1317 = vadd.f32 0.0, %v1316
        %1318 = vmatmul.bf16.gmra.mxu0 %v1177
        %v1319 = vpop.f32.mrf.mxu0
        %v1320 = vadd.f32 0.0, %v1319
        %v1321 = vpop.f32.mrf.mxu0
        %v1322 = vadd.f32 0.0, %v1321
        %1323 = vmatmul.bf16.gmra.mxu0 %v1181
        %v1324 = vpop.f32.mrf.mxu0
        %v1325 = vadd.f32 0.0, %v1324
        %v1326 = vpop.f32.mrf.mxu0
        %v1327 = vadd.f32 0.0, %v1326
        %1328 = vmatmul.bf16.gmra.mxu0 %v1185
        %v1329 = vpop.f32.mrf.mxu0
        %v1330 = vadd.f32 0.0, %v1329
        %v1331 = vpop.f32.mrf.mxu0
        %v1332 = vadd.f32 0.0, %v1331
        %1333 = vmatmul.bf16.gmra.mxu0 %v1189
        %v1334 = vpop.f32.mrf.mxu0
        %v1335 = vadd.f32 0.0, %v1334
        %v1336 = vpop.f32.mrf.mxu0
        %v1337 = vadd.f32 0.0, %v1336
        %1338 = vmatmul.bf16.gmra.mxu0 %v1193
        %v1339 = vpop.f32.mrf.mxu0
        %v1340 = vadd.f32 0.0, %v1339
        %v1341 = vpop.f32.mrf.mxu0
        %v1342 = vadd.f32 0.0, %v1341
        %1343 = vmatmul.bf16.gmra.mxu0 %v1197
        %v1344 = vpop.f32.mrf.mxu0
        %v1345 = vadd.f32 0.0, %v1344
        %v1346 = vpop.f32.mrf.mxu0
        %v1347 = vadd.f32 0.0, %v1346
        %1348 = vmatmul.bf16.gmra.mxu0 %v1201
        %v1349 = vpop.f32.mrf.mxu0
        %v1350 = vadd.f32 0.0, %v1349
        %v1351 = vpop.f32.mrf.mxu0
        %v1352 = vadd.f32 0.0, %v1351
        %1353 = vmatmul.bf16.gmra.mxu0 %v1205
        %v1354 = vpop.f32.mrf.mxu0
        %v1355 = vadd.f32 0.0, %v1354
        %v1356 = vpop.f32.mrf.mxu0
        %v1357 = vadd.f32 0.0, %v1356
        %1358 = vmatmul.bf16.gmra.mxu0 %v1209
        %v1359 = vpop.f32.mrf.mxu0
        %v1360 = vadd.f32 0.0, %v1359
        %v1361 = vpop.f32.mrf.mxu0
        %v1362 = vadd.f32 0.0, %v1361
        %1363 = vmatmul.bf16.gmra.mxu0 %v1213
        %v1364 = vpop.f32.mrf.mxu0
        %v1365 = vadd.f32 0.0, %v1364
        %v1366 = vpop.f32.mrf.mxu0
        %v1367 = vadd.f32 0.0, %v1366
        %1368 = vmatmul.bf16.gmra.mxu0 %v1217
        %v1369 = vpop.f32.mrf.mxu0
        %v1370 = vadd.f32 0.0, %v1369
        %v1371 = vpop.f32.mrf.mxu0
        %v1372 = vadd.f32 0.0, %v1371
        %1373 = vdwg.mxu0
        %1374 = vmatpush.bf16.msra.mxu0 %v948
        %1375 = vmatpush.bf16.msra.mxu0 %v947
        %1376 = vmatpush.bf16.msra.mxu0 %v946
        %1377 = vmatpush.bf16.msra.mxu0 %v945
        %1378 = vmatpush.bf16.msra.mxu0 %v944
        %1379 = vmatpush.bf16.msra.mxu0 %v943
        %1380 = vmatpush.bf16.msra.mxu0 %v942
        %1381 = vmatpush.bf16.msra.mxu0 %v941
        %1382 = vmatmul.bf16.gmra.mxu0 %v1158
        %v1383 = vpop.f32.mrf.mxu0
        %v1384 = vadd.f32 %v1295, %v1383
        %v1385 = vpop.f32.mrf.mxu0
        %v1386 = vadd.f32 %v1297, %v1385
        %1387 = vmatmul.bf16.gmra.mxu0 %v1162
        %v1388 = vpop.f32.mrf.mxu0
        %v1389 = vadd.f32 %v1300, %v1388
        %v1390 = vpop.f32.mrf.mxu0
        %v1391 = vadd.f32 %v1302, %v1390
        %1392 = vmatmul.bf16.gmra.mxu0 %v1166
        %v1393 = vpop.f32.mrf.mxu0
        %v1394 = vadd.f32 %v1305, %v1393
        %v1395 = vpop.f32.mrf.mxu0
        %v1396 = vadd.f32 %v1307, %v1395
        %1397 = vmatmul.bf16.gmra.mxu0 %v1170
        %v1398 = vpop.f32.mrf.mxu0
        %v1399 = vadd.f32 %v1310, %v1398
        %v1400 = vpop.f32.mrf.mxu0
        %v1401 = vadd.f32 %v1312, %v1400
        %1402 = vmatmul.bf16.gmra.mxu0 %v1174
        %v1403 = vpop.f32.mrf.mxu0
        %v1404 = vadd.f32 %v1315, %v1403
        %v1405 = vpop.f32.mrf.mxu0
        %v1406 = vadd.f32 %v1317, %v1405
        %1407 = vmatmul.bf16.gmra.mxu0 %v1178
        %v1408 = vpop.f32.mrf.mxu0
        %v1409 = vadd.f32 %v1320, %v1408
        %v1410 = vpop.f32.mrf.mxu0
        %v1411 = vadd.f32 %v1322, %v1410
        %1412 = vmatmul.bf16.gmra.mxu0 %v1182
        %v1413 = vpop.f32.mrf.mxu0
        %v1414 = vadd.f32 %v1325, %v1413
        %v1415 = vpop.f32.mrf.mxu0
        %v1416 = vadd.f32 %v1327, %v1415
        %1417 = vmatmul.bf16.gmra.mxu0 %v1186
        %v1418 = vpop.f32.mrf.mxu0
        %v1419 = vadd.f32 %v1330, %v1418
        %v1420 = vpop.f32.mrf.mxu0
        %v1421 = vadd.f32 %v1332, %v1420
        %1422 = vmatmul.bf16.gmra.mxu0 %v1190
        %v1423 = vpop.f32.mrf.mxu0
        %v1424 = vadd.f32 %v1335, %v1423
        %v1425 = vpop.f32.mrf.mxu0
        %v1426 = vadd.f32 %v1337, %v1425
        %1427 = vmatmul.bf16.gmra.mxu0 %v1194
        %v1428 = vpop.f32.mrf.mxu0
        %v1429 = vadd.f32 %v1340, %v1428
        %v1430 = vpop.f32.mrf.mxu0
        %v1431 = vadd.f32 %v1342, %v1430
        %1432 = vmatmul.bf16.gmra.mxu0 %v1198
        %v1433 = vpop.f32.mrf.mxu0
        %v1434 = vadd.f32 %v1345, %v1433
        %v1435 = vpop.f32.mrf.mxu0
        %v1436 = vadd.f32 %v1347, %v1435
        %1437 = vmatmul.bf16.gmra.mxu0 %v1202
        %v1438 = vpop.f32.mrf.mxu0
        %v1439 = vadd.f32 %v1350, %v1438
        %v1440 = vpop.f32.mrf.mxu0
        %v1441 = vadd.f32 %v1352, %v1440
        %1442 = vmatmul.bf16.gmra.mxu0 %v1206
        %v1443 = vpop.f32.mrf.mxu0
        %v1444 = vadd.f32 %v1355, %v1443
        %v1445 = vpop.f32.mrf.mxu0
        %v1446 = vadd.f32 %v1357, %v1445
        %1447 = vmatmul.bf16.gmra.mxu0 %v1210
        %v1448 = vpop.f32.mrf.mxu0
        %v1449 = vadd.f32 %v1360, %v1448
        %v1450 = vpop.f32.mrf.mxu0
        %v1451 = vadd.f32 %v1362, %v1450
        %1452 = vmatmul.bf16.gmra.mxu0 %v1214
        %v1453 = vpop.f32.mrf.mxu0
        %v1454 = vadd.f32 %v1365, %v1453
        %v1455 = vpop.f32.mrf.mxu0
        %v1456 = vadd.f32 %v1367, %v1455
        %1457 = vmatmul.bf16.gmra.mxu0 %v1218
        %v1458 = vpop.f32.mrf.mxu0
        %v1459 = vadd.f32 %v1370, %v1458
        %v1460 = vpop.f32.mrf.mxu0
        %v1461 = vadd.f32 %v1372, %v1460
        %1462 = vdwg.mxu0
        %1463 = vmatpush.bf16.msra.mxu0 %v956
        %1464 = vmatpush.bf16.msra.mxu0 %v955
        %1465 = vmatpush.bf16.msra.mxu0 %v954
        %1466 = vmatpush.bf16.msra.mxu0 %v953
        %1467 = vmatpush.bf16.msra.mxu0 %v952
        %1468 = vmatpush.bf16.msra.mxu0 %v951
        %1469 = vmatpush.bf16.msra.mxu0 %v950
        %1470 = vmatpush.bf16.msra.mxu0 %v949
        %1471 = vmatmul.bf16.gmra.mxu0 %v1159
        %v1472 = vpop.f32.mrf.mxu0
        %v1473 = vadd.f32 %v1384, %v1472
        %v1474 = vpop.f32.mrf.mxu0
        %v1475 = vadd.f32 %v1386, %v1474
        %1476 = vmatmul.bf16.gmra.mxu0 %v1163
        %v1477 = vpop.f32.mrf.mxu0
        %v1478 = vadd.f32 %v1389, %v1477
        %v1479 = vpop.f32.mrf.mxu0
        %v1480 = vadd.f32 %v1391, %v1479
        %1481 = vmatmul.bf16.gmra.mxu0 %v1167
        %v1482 = vpop.f32.mrf.mxu0
        %v1483 = vadd.f32 %v1394, %v1482
        %v1484 = vpop.f32.mrf.mxu0
        %v1485 = vadd.f32 %v1396, %v1484
        %1486 = vmatmul.bf16.gmra.mxu0 %v1171
        %v1487 = vpop.f32.mrf.mxu0
        %v1488 = vadd.f32 %v1399, %v1487
        %v1489 = vpop.f32.mrf.mxu0
        %v1490 = vadd.f32 %v1401, %v1489
        %1491 = vmatmul.bf16.gmra.mxu0 %v1175
        %v1492 = vpop.f32.mrf.mxu0
        %v1493 = vadd.f32 %v1404, %v1492
        %v1494 = vpop.f32.mrf.mxu0
        %v1495 = vadd.f32 %v1406, %v1494
        %1496 = vmatmul.bf16.gmra.mxu0 %v1179
        %v1497 = vpop.f32.mrf.mxu0
        %v1498 = vadd.f32 %v1409, %v1497
        %v1499 = vpop.f32.mrf.mxu0
        %v1500 = vadd.f32 %v1411, %v1499
        %1501 = vmatmul.bf16.gmra.mxu0 %v1183
        %v1502 = vpop.f32.mrf.mxu0
        %v1503 = vadd.f32 %v1414, %v1502
        %v1504 = vpop.f32.mrf.mxu0
        %v1505 = vadd.f32 %v1416, %v1504
        %1506 = vmatmul.bf16.gmra.mxu0 %v1187
        %v1507 = vpop.f32.mrf.mxu0
        %v1508 = vadd.f32 %v1419, %v1507
        %v1509 = vpop.f32.mrf.mxu0
        %v1510 = vadd.f32 %v1421, %v1509
        %1511 = vmatmul.bf16.gmra.mxu0 %v1191
        %v1512 = vpop.f32.mrf.mxu0
        %v1513 = vadd.f32 %v1424, %v1512
        %v1514 = vpop.f32.mrf.mxu0
        %v1515 = vadd.f32 %v1426, %v1514
        %1516 = vmatmul.bf16.gmra.mxu0 %v1195
        %v1517 = vpop.f32.mrf.mxu0
        %v1518 = vadd.f32 %v1429, %v1517
        %v1519 = vpop.f32.mrf.mxu0
        %v1520 = vadd.f32 %v1431, %v1519
        %1521 = vmatmul.bf16.gmra.mxu0 %v1199
        %v1522 = vpop.f32.mrf.mxu0
        %v1523 = vadd.f32 %v1434, %v1522
        %v1524 = vpop.f32.mrf.mxu0
        %v1525 = vadd.f32 %v1436, %v1524
        %1526 = vmatmul.bf16.gmra.mxu0 %v1203
        %v1527 = vpop.f32.mrf.mxu0
        %v1528 = vadd.f32 %v1439, %v1527
        %v1529 = vpop.f32.mrf.mxu0
        %v1530 = vadd.f32 %v1441, %v1529
        %1531 = vmatmul.bf16.gmra.mxu0 %v1207
        %v1532 = vpop.f32.mrf.mxu0
        %v1533 = vadd.f32 %v1444, %v1532
        %v1534 = vpop.f32.mrf.mxu0
        %v1535 = vadd.f32 %v1446, %v1534
        %1536 = vmatmul.bf16.gmra.mxu0 %v1211
        %v1537 = vpop.f32.mrf.mxu0
        %v1538 = vadd.f32 %v1449, %v1537
        %v1539 = vpop.f32.mrf.mxu0
        %v1540 = vadd.f32 %v1451, %v1539
        %1541 = vmatmul.bf16.gmra.mxu0 %v1215
        %v1542 = vpop.f32.mrf.mxu0
        %v1543 = vadd.f32 %v1454, %v1542
        %v1544 = vpop.f32.mrf.mxu0
        %v1545 = vadd.f32 %v1456, %v1544
        %1546 = vmatmul.bf16.gmra.mxu0 %v1219
        %v1547 = vpop.f32.mrf.mxu0
        %v1548 = vadd.f32 %v1459, %v1547
        %v1549 = vpop.f32.mrf.mxu0
        %v1550 = vadd.f32 %v1461, %v1549
        %1551 = vdwg.mxu0
        %1552 = vmatpush.bf16.msra.mxu0 %v964
        %1553 = vmatpush.bf16.msra.mxu0 %v963
        %1554 = vmatpush.bf16.msra.mxu0 %v962
        %1555 = vmatpush.bf16.msra.mxu0 %v961
        %1556 = vmatpush.bf16.msra.mxu0 %v960
        %1557 = vmatpush.bf16.msra.mxu0 %v959
        %1558 = vmatpush.bf16.msra.mxu0 %v958
        %1559 = vmatpush.bf16.msra.mxu0 %v957
        %1560 = vmatmul.bf16.gmra.mxu0 %v1160
        %v1561 = vpop.f32.mrf.mxu0
        %v1562 = vadd.f32 %v1473, %v1561
        %v1563 = vpop.f32.mrf.mxu0
        %v1564 = vadd.f32 %v1475, %v1563
        %1565 = vmatmul.bf16.gmra.mxu0 %v1164
        %v1566 = vpop.f32.mrf.mxu0
        %v1567 = vadd.f32 %v1478, %v1566
        %v1568 = vpop.f32.mrf.mxu0
        %v1569 = vadd.f32 %v1480, %v1568
        %1570 = vmatmul.bf16.gmra.mxu0 %v1168
        %v1571 = vpop.f32.mrf.mxu0
        %v1572 = vadd.f32 %v1483, %v1571
        %v1573 = vpop.f32.mrf.mxu0
        %v1574 = vadd.f32 %v1485, %v1573
        %1575 = vmatmul.bf16.gmra.mxu0 %v1172
        %v1576 = vpop.f32.mrf.mxu0
        %v1577 = vadd.f32 %v1488, %v1576
        %v1578 = vpop.f32.mrf.mxu0
        %v1579 = vadd.f32 %v1490, %v1578
        %1580 = vmatmul.bf16.gmra.mxu0 %v1176
        %v1581 = vpop.f32.mrf.mxu0
        %v1582 = vadd.f32 %v1493, %v1581
        %v1583 = vpop.f32.mrf.mxu0
        %v1584 = vadd.f32 %v1495, %v1583
        %1585 = vmatmul.bf16.gmra.mxu0 %v1180
        %v1586 = vpop.f32.mrf.mxu0
        %v1587 = vadd.f32 %v1498, %v1586
        %v1588 = vpop.f32.mrf.mxu0
        %v1589 = vadd.f32 %v1500, %v1588
        %1590 = vmatmul.bf16.gmra.mxu0 %v1184
        %v1591 = vpop.f32.mrf.mxu0
        %v1592 = vadd.f32 %v1503, %v1591
        %v1593 = vpop.f32.mrf.mxu0
        %v1594 = vadd.f32 %v1505, %v1593
        %1595 = vmatmul.bf16.gmra.mxu0 %v1188
        %v1596 = vpop.f32.mrf.mxu0
        %v1597 = vadd.f32 %v1508, %v1596
        %v1598 = vpop.f32.mrf.mxu0
        %v1599 = vadd.f32 %v1510, %v1598
        %1600 = vmatmul.bf16.gmra.mxu0 %v1192
        %v1601 = vpop.f32.mrf.mxu0
        %v1602 = vadd.f32 %v1513, %v1601
        %v1603 = vpop.f32.mrf.mxu0
        %v1604 = vadd.f32 %v1515, %v1603
        %1605 = vmatmul.bf16.gmra.mxu0 %v1196
        %v1606 = vpop.f32.mrf.mxu0
        %v1607 = vadd.f32 %v1518, %v1606
        %v1608 = vpop.f32.mrf.mxu0
        %v1609 = vadd.f32 %v1520, %v1608
        %1610 = vmatmul.bf16.gmra.mxu0 %v1200
        %v1611 = vpop.f32.mrf.mxu0
        %v1612 = vadd.f32 %v1523, %v1611
        %v1613 = vpop.f32.mrf.mxu0
        %v1614 = vadd.f32 %v1525, %v1613
        %1615 = vmatmul.bf16.gmra.mxu0 %v1204
        %v1616 = vpop.f32.mrf.mxu0
        %v1617 = vadd.f32 %v1528, %v1616
        %v1618 = vpop.f32.mrf.mxu0
        %v1619 = vadd.f32 %v1530, %v1618
        %1620 = vmatmul.bf16.gmra.mxu0 %v1208
        %v1621 = vpop.f32.mrf.mxu0
        %v1622 = vadd.f32 %v1533, %v1621
        %v1623 = vpop.f32.mrf.mxu0
        %v1624 = vadd.f32 %v1535, %v1623
        %1625 = vmatmul.bf16.gmra.mxu0 %v1212
        %v1626 = vpop.f32.mrf.mxu0
        %v1627 = vadd.f32 %v1538, %v1626
        %v1628 = vpop.f32.mrf.mxu0
        %v1629 = vadd.f32 %v1540, %v1628
        %1630 = vmatmul.bf16.gmra.mxu0 %v1216
        %v1631 = vpop.f32.mrf.mxu0
        %v1632 = vadd.f32 %v1543, %v1631
        %v1633 = vpop.f32.mrf.mxu0
        %v1634 = vadd.f32 %v1545, %v1633
        %1635 = vmatmul.bf16.gmra.mxu0 %v1220
        %v1636 = vpop.f32.mrf.mxu0
        %v1637 = vadd.f32 %v1548, %v1636
        %v1638 = vpop.f32.mrf.mxu0
        %v1639 = vadd.f32 %v1550, %v1638
        %1640 = vdwg.mxu0
        %v1641 = vadd.f32 %v837, %v1562
        %v1642 = vadd.f32 %v838, %v1564
        %v1643 = vadd.f32 %v839, %v1567
        %v1644 = vadd.f32 %v840, %v1569
        %v1645 = vadd.f32 %v841, %v1572
        %v1646 = vadd.f32 %v842, %v1574
        %v1647 = vadd.f32 %v843, %v1577
        %v1648 = vadd.f32 %v844, %v1579
        %v1649 = vadd.f32 %v845, %v1582
        %v1650 = vadd.f32 %v846, %v1584
        %v1651 = vadd.f32 %v847, %v1587
        %v1652 = vadd.f32 %v848, %v1589
        %v1653 = vadd.f32 %v849, %v1592
        %v1654 = vadd.f32 %v850, %v1594
        %v1655 = vadd.f32 %v851, %v1597
        %v1656 = vadd.f32 %v852, %v1599
        %v1657 = vadd.f32 %v853, %v1602
        %v1658 = vadd.f32 %v854, %v1604
        %v1659 = vadd.f32 %v855, %v1607
        %v1660 = vadd.f32 %v856, %v1609
        %v1661 = vadd.f32 %v857, %v1612
        %v1662 = vadd.f32 %v858, %v1614
        %v1663 = vadd.f32 %v859, %v1617
        %v1664 = vadd.f32 %v860, %v1619
        %v1665 = vadd.f32 %v861, %v1622
        %v1666 = vadd.f32 %v862, %v1624
        %v1667 = vadd.f32 %v863, %v1627
        %v1668 = vadd.f32 %v864, %v1629
        %v1669 = vadd.f32 %v865, %v1632
        %v1670 = vadd.f32 %v866, %v1634
        %v1671 = vadd.f32 %v867, %v1637
        %v1672 = vadd.f32 %v868, %v1639
        %1673 = vst [vmem:[#allocation2] sm:$0xff] %v1641
        %1674 = vst [vmem:[#allocation2 + $0x8] sm:$0xff] %v1642
        %1675 = vst [vmem:[#allocation2 + $0x10] sm:$0xff] %v1643
        %1676 = vst [vmem:[#allocation2 + $0x18] sm:$0xff] %v1644
        %1677 = vst [vmem:[#allocation2 + $0x20] sm:$0xff] %v1645
        %1678 = vst [vmem:[#allocation2 + $0x28] sm:$0xff] %v1646
        %1679 = vst [vmem:[#allocation2 + $0x30] sm:$0xff] %v1647
        %1680 = vst [vmem:[#allocation2 + $0x38] sm:$0xff] %v1648
        %1681 = vst [vmem:[#allocation2 + $0x40] sm:$0xff] %v1649
        %1682 = vst [vmem:[#allocation2 + $0x48] sm:$0xff] %v1650
        %1683 = vst [vmem:[#allocation2 + $0x50] sm:$0xff] %v1651
        %1684 = vst [vmem:[#allocation2 + $0x58] sm:$0xff] %v1652
        %1685 = vst [vmem:[#allocation2 + $0x60] sm:$0xff] %v1653
        %1686 = vst [vmem:[#allocation2 + $0x68] sm:$0xff] %v1654
        %1687 = vst [vmem:[#allocation2 + $0x70] sm:$0xff] %v1655
        %1688 = vst [vmem:[#allocation2 + $0x78] sm:$0xff] %v1656
        %1689 = vst [vmem:[#allocation2 + $0x80] sm:$0xff] %v1657
        %1690 = vst [vmem:[#allocation2 + $0x88] sm:$0xff] %v1658
        %1691 = vst [vmem:[#allocation2 + $0x90] sm:$0xff] %v1659
        %1692 = vst [vmem:[#allocation2 + $0x98] sm:$0xff] %v1660
        %1693 = vst [vmem:[#allocation2 + $0xa0] sm:$0xff] %v1661
        %1694 = vst [vmem:[#allocation2 + $0xa8] sm:$0xff] %v1662
        %1695 = vst [vmem:[#allocation2 + $0xb0] sm:$0xff] %v1663
        %1696 = vst [vmem:[#allocation2 + $0xb8] sm:$0xff] %v1664
        %1697 = vst [vmem:[#allocation2 + $0xc0] sm:$0xff] %v1665
        %1698 = vst [vmem:[#allocation2 + $0xc8] sm:$0xff] %v1666
        %1699 = vst [vmem:[#allocation2 + $0xd0] sm:$0xff] %v1667
        %1700 = vst [vmem:[#allocation2 + $0xd8] sm:$0xff] %v1668
        %1701 = vst [vmem:[#allocation2 + $0xe0] sm:$0xff] %v1669
        %1702 = vst [vmem:[#allocation2 + $0xe8] sm:$0xff] %v1670
        %1703 = vst [vmem:[#allocation2 + $0xf0] sm:$0xff] %v1671
        %1704 = vst [vmem:[#allocation2 + $0xf8] sm:$0xff] %v1672
        // Predicated region
        $region45: #{gcn1_forward.3} parent=35 // pred_check
          %p1705 = pneg %p308
        $region46: #{gcn1_forward.3} parent=35 // pred_check_branch
          %1707 = sbr.rel (%p1705) target = $region48
        $region47: #{gcn1_forward.3} parent=35 // pred_region
          %v1708 = vld [vmem:[#allocation2] sm:$0xff]
          %v1709 = vld [vmem:[#allocation2 + $0x8] sm:$0xff]
          %v1710 = vld [vmem:[#allocation2 + $0x10] sm:$0xff]
          %v1711 = vld [vmem:[#allocation2 + $0x18] sm:$0xff]
          %v1712 = vld [vmem:[#allocation2 + $0x20] sm:$0xff]
          %v1713 = vld [vmem:[#allocation2 + $0x28] sm:$0xff]
          %v1714 = vld [vmem:[#allocation2 + $0x30] sm:$0xff]
          %v1715 = vld [vmem:[#allocation2 + $0x38] sm:$0xff]
          %v1716 = vld [vmem:[#allocation2 + $0x40] sm:$0xff]
          %v1717 = vld [vmem:[#allocation2 + $0x48] sm:$0xff]
          %v1718 = vld [vmem:[#allocation2 + $0x50] sm:$0xff]
          %v1719 = vld [vmem:[#allocation2 + $0x58] sm:$0xff]
          %v1720 = vld [vmem:[#allocation2 + $0x60] sm:$0xff]
          %v1721 = vld [vmem:[#allocation2 + $0x68] sm:$0xff]
          %v1722 = vld [vmem:[#allocation2 + $0x70] sm:$0xff]
          %v1723 = vld [vmem:[#allocation2 + $0x78] sm:$0xff]
          %v1724 = vld [vmem:[#allocation2 + $0x80] sm:$0xff]
          %v1725 = vld [vmem:[#allocation2 + $0x88] sm:$0xff]
          %v1726 = vld [vmem:[#allocation2 + $0x90] sm:$0xff]
          %v1727 = vld [vmem:[#allocation2 + $0x98] sm:$0xff]
          %v1728 = vld [vmem:[#allocation2 + $0xa0] sm:$0xff]
          %v1729 = vld [vmem:[#allocation2 + $0xa8] sm:$0xff]
          %v1730 = vld [vmem:[#allocation2 + $0xb0] sm:$0xff]
          %v1731 = vld [vmem:[#allocation2 + $0xb8] sm:$0xff]
          %v1732 = vld [vmem:[#allocation2 + $0xc0] sm:$0xff]
          %v1733 = vld [vmem:[#allocation2 + $0xc8] sm:$0xff]
          %v1734 = vld [vmem:[#allocation2 + $0xd0] sm:$0xff]
          %v1735 = vld [vmem:[#allocation2 + $0xd8] sm:$0xff]
          %v1736 = vld [vmem:[#allocation2 + $0xe0] sm:$0xff]
          %v1737 = vld [vmem:[#allocation2 + $0xe8] sm:$0xff]
          %v1738 = vld [vmem:[#allocation2 + $0xf0] sm:$0xff]
          %v1739 = vld [vmem:[#allocation2 + $0xf8] sm:$0xff]
          %v1740 = vmax.f32 %v1708, 0.0
          %v1741 = vmax.f32 %v1709, 0.0
          %v1742 = vmax.f32 %v1710, 0.0
          %v1743 = vmax.f32 %v1711, 0.0
          %v1744 = vmax.f32 %v1712, 0.0
          %v1745 = vmax.f32 %v1713, 0.0
          %v1746 = vmax.f32 %v1714, 0.0
          %v1747 = vmax.f32 %v1715, 0.0
          %v1748 = vmax.f32 %v1716, 0.0
          %v1749 = vmax.f32 %v1717, 0.0
          %v1750 = vmax.f32 %v1718, 0.0
          %v1751 = vmax.f32 %v1719, 0.0
          %v1752 = vmax.f32 %v1720, 0.0
          %v1753 = vmax.f32 %v1721, 0.0
          %v1754 = vmax.f32 %v1722, 0.0
          %v1755 = vmax.f32 %v1723, 0.0
          %v1756 = vmax.f32 %v1724, 0.0
          %v1757 = vmax.f32 %v1725, 0.0
          %v1758 = vmax.f32 %v1726, 0.0
          %v1759 = vmax.f32 %v1727, 0.0
          %v1760 = vmax.f32 %v1728, 0.0
          %v1761 = vmax.f32 %v1729, 0.0
          %v1762 = vmax.f32 %v1730, 0.0
          %v1763 = vmax.f32 %v1731, 0.0
          %v1764 = vmax.f32 %v1732, 0.0
          %v1765 = vmax.f32 %v1733, 0.0
          %v1766 = vmax.f32 %v1734, 0.0
          %v1767 = vmax.f32 %v1735, 0.0
          %v1768 = vmax.f32 %v1736, 0.0
          %v1769 = vmax.f32 %v1737, 0.0
          %v1770 = vmax.f32 %v1738, 0.0
          %v1771 = vmax.f32 %v1739, 0.0
          %v1772 = vpack.c.bf16 %v1740, %v1740
          %v1773 = vpack.c.bf16 %v1741, %v1741
          %v1774 = vpack.c.bf16 %v1742, %v1742
          %v1775 = vpack.c.bf16 %v1743, %v1743
          %v1776 = vpack.c.bf16 %v1744, %v1744
          %v1777 = vpack.c.bf16 %v1745, %v1745
          %v1778 = vpack.c.bf16 %v1746, %v1746
          %v1779 = vpack.c.bf16 %v1747, %v1747
          %v1780 = vpack.c.bf16 %v1748, %v1748
          %v1781 = vpack.c.bf16 %v1749, %v1749
          %v1782 = vpack.c.bf16 %v1750, %v1750
          %v1783 = vpack.c.bf16 %v1751, %v1751
          %v1784 = vpack.c.bf16 %v1752, %v1752
          %v1785 = vpack.c.bf16 %v1753, %v1753
          %v1786 = vpack.c.bf16 %v1754, %v1754
          %v1787 = vpack.c.bf16 %v1755, %v1755
          %v1788 = vpack.c.bf16 %v1756, %v1756
          %v1789 = vpack.c.bf16 %v1757, %v1757
          %v1790 = vpack.c.bf16 %v1758, %v1758
          %v1791 = vpack.c.bf16 %v1759, %v1759
          %v1792 = vpack.c.bf16 %v1760, %v1760
          %v1793 = vpack.c.bf16 %v1761, %v1761
          %v1794 = vpack.c.bf16 %v1762, %v1762
          %v1795 = vpack.c.bf16 %v1763, %v1763
          %v1796 = vpack.c.bf16 %v1764, %v1764
          %v1797 = vpack.c.bf16 %v1765, %v1765
          %v1798 = vpack.c.bf16 %v1766, %v1766
          %v1799 = vpack.c.bf16 %v1767, %v1767
          %v1800 = vpack.c.bf16 %v1768, %v1768
          %v1801 = vpack.c.bf16 %v1769, %v1769
          %v1802 = vpack.c.bf16 %v1770, %v1770
          %v1803 = vpack.c.bf16 %v1771, %v1771
          %1804 = vst [vmem:[%s306] sm:$0xf] %v1772
          %1805 = vst [vmem:[%s306 + $0x4] sm:$0xf] %v1773
          %1806 = vst [vmem:[%s306 + $0x8] sm:$0xf] %v1774
          %1807 = vst [vmem:[%s306 + $0xc] sm:$0xf] %v1775
          %1808 = vst [vmem:[%s306 + $0x10] sm:$0xf] %v1776
          %1809 = vst [vmem:[%s306 + $0x14] sm:$0xf] %v1777
          %1810 = vst [vmem:[%s306 + $0x18] sm:$0xf] %v1778
          %1811 = vst [vmem:[%s306 + $0x1c] sm:$0xf] %v1779
          %1812 = vst [vmem:[%s306 + $0x20] sm:$0xf] %v1780
          %1813 = vst [vmem:[%s306 + $0x24] sm:$0xf] %v1781
          %1814 = vst [vmem:[%s306 + $0x28] sm:$0xf] %v1782
          %1815 = vst [vmem:[%s306 + $0x2c] sm:$0xf] %v1783
          %1816 = vst [vmem:[%s306 + $0x30] sm:$0xf] %v1784
          %1817 = vst [vmem:[%s306 + $0x34] sm:$0xf] %v1785
          %1818 = vst [vmem:[%s306 + $0x38] sm:$0xf] %v1786
          %1819 = vst [vmem:[%s306 + $0x3c] sm:$0xf] %v1787
          %1820 = vst [vmem:[%s306 + $0x40] sm:$0xf] %v1788
          %1821 = vst [vmem:[%s306 + $0x44] sm:$0xf] %v1789
          %1822 = vst [vmem:[%s306 + $0x48] sm:$0xf] %v1790
          %1823 = vst [vmem:[%s306 + $0x4c] sm:$0xf] %v1791
          %1824 = vst [vmem:[%s306 + $0x50] sm:$0xf] %v1792
          %1825 = vst [vmem:[%s306 + $0x54] sm:$0xf] %v1793
          %1826 = vst [vmem:[%s306 + $0x58] sm:$0xf] %v1794
          %1827 = vst [vmem:[%s306 + $0x5c] sm:$0xf] %v1795
          %1828 = vst [vmem:[%s306 + $0x60] sm:$0xf] %v1796
          %1829 = vst [vmem:[%s306 + $0x64] sm:$0xf] %v1797
          %1830 = vst [vmem:[%s306 + $0x68] sm:$0xf] %v1798
          %1831 = vst [vmem:[%s306 + $0x6c] sm:$0xf] %v1799
          %1832 = vst [vmem:[%s306 + $0x70] sm:$0xf] %v1800
          %1833 = vst [vmem:[%s306 + $0x74] sm:$0xf] %v1801
          %1834 = vst [vmem:[%s306 + $0x78] sm:$0xf] %v1802
          %1835 = vst [vmem:[%s306 + $0x7c] sm:$0xf] %v1803
        $region48: #{gcn1_forward.3} parent=35 // pred_fallthru
          _
        %s1836 = smul.u32 32, %s23
        %p1837 = scmp.lt.s32.totalorder %s1836, 63
        %s1838 = scalar_select %p1837, %s1836, 63
        %p1839 = scmp.lt.s32.totalorder %s24, 0
        %s1840 = scalar_select %p1839, %s24, 0
        %s1841 = sadd.s32 %s1840, %s1838
        %s1842 = smul.addr %s1841, 4
        %s1843 = scalar_lea.vmem %s4, %s1842
        // Predicated region
        $region49: #{gcn1_forward.3} parent=35 // pred_check
          %p1844 = pneg %p163
        $region50: #{gcn1_forward.3} parent=35 // pred_check_branch
          %1846 = sbr.rel (%p1844) target = $region52
        $region51: #{gcn1_forward.3} parent=35 // pred_region
          %s1847 = smul.u32 32, %s23
        $region52: #{gcn1_forward.3} parent=35 // pred_fallthru
          _
      $region36: #{gcn1_forward.3} parent=5 // pred_fallthru
        _
      %p1848 = scmp.le.s32.totalorder 2, %s13
      // Predicated region
      $region53: #{gcn1_forward.3} parent=5 // pred_check
        %p1849 = pneg %p1848
      $region54: #{gcn1_forward.3} parent=5 // pred_check_branch
        %1851 = sbr.rel (%p1849) target = $region56
      $region55: #{gcn1_forward.3} parent=5 // pred_region
        %s1852 = ssub.s32 %s13, 2
        // Predicated region
        $region57: #{gcn1_forward.3} parent=55 // pred_check
          %p1853 = pneg %p169
        $region58: #{gcn1_forward.3} parent=55 // pred_check_branch
          %1855 = sbr.rel (%p1853) target = $region60
        $region59: #{gcn1_forward.3} parent=55 // pred_region
          %s1856 = smul.u32 32, %s26
          %p1857 = scmp.lt.s32.totalorder %s1856, 63
          %s1858 = scalar_select %p1857, %s1856, 63
          %p1859 = scmp.lt.s32.totalorder %s27, 0
          %s1860 = scalar_select %p1859, %s27, 0
          %s1861 = sadd.s32 %s1860, %s1858
          %s1862 = smul.addr %s1861, 4
          %s1863 = scalar_lea.vmem %s4, %s1862
        $region60: #{gcn1_forward.3} parent=55 // pred_fallthru
          _
      $region56: #{gcn1_forward.3} parent=5 // pred_fallthru
        _
    $region6: #{gcn1_forward.3} parent=1 // loop_footer
      %s17 = sadd.s32 1, %s13
    $region7: #{gcn1_forward.3} parent=1 // loop_footer_branch
      %12 = sbr.rel target = $region3
    $region8: #{gcn1_forward.3} parent=1 // loop_exit
      _
    %1864 = vsyncpa [#allocation4], 1
    %s1865 = scalar_lea.sflag [#allocation4], 1
    %1866 = vsyncpa %s1865, 1

// kernel: gcn1_forward.5
$region0: #{gcn1_forward.5}
  #allocation0 [shape = 'u32[]', space=smem, size = 0x4, offset = 0x4, fixed_abs, tag = 'smem constant byte address 0x4 - core index']
  #allocation1 [shape = 'u32[72,128]{1,0:T(1,128)}', space=vmem, size = 0x9000, scoped, tag = 'internal scratch']
  #allocation2 [shape = 'f32[256,128]{1,0:T(8,128)}', space=vmem, size = 0x20000, scoped, tag = 'scratch operand']
  %s0 = inlined_call_operand.vmem [shape: bf16[512,512], index: 0, kind: input, shape index: {}]
  %s1 = inlined_call_operand.vmem [shape: bf16[512,128], index: 1, kind: input, shape index: {}]
  %s2 = inlined_call_operand.vmem [shape: bf16[128,128], index: 2, kind: input, shape index: {}]
  %s3 = inlined_call_operand.vmem [shape: f32[1,128], index: 3, kind: input, shape index: {}]
  %s4 = inlined_call_operand.vmem [shape: f32[512,128], index: 4, kind: output, shape index: {}]
  %s5 = sld [smem:[#allocation0]]
  $region57: #{gcn1_forward.5} parent=0
    _
  %s7 = ssub.s32 1, %s5
  %s8 = scalar_select 0, %s7, %s5
  loop: start=0, step=1, limit=4
  $region2: #{gcn1_forward.5} parent=0 // loop_pre_header
    _
  $region3: #{gcn1_forward.5} parent=0 // loop_header
    %s10 = sphi 0, %s14
    %p11 = scmp.ge.s32.totalorder %s10, 4
    %s17 = sphi 0, %s36
    %s18 = sphi 0, %s32
    %s19 = sphi 0, %s28
    %s20 = sphi 0, %s17
    %s21 = sphi 0, %s18
    %s22 = sphi 0, %s19
    %s23 = sphi 0, %s20
    %s24 = sphi 0, %s21
    %s25 = sphi 0, %s22
    %s41 = sphi 0, %s43
    %s44 = sphi 0, %s41
    %s45 = sphi 0, %s44
    %s61 = sphi 0, %s45
    %s67 = sphi 0, %s69
    %s70 = sphi 0, %s67
    %s71 = sphi 0, %s70
    %s87 = sphi 0, %s71
    %s93 = sphi 0, %s95
    %s96 = sphi 0, %s93
    %s97 = sphi 0, %s96
    %s113 = sphi 0, %s97
    %s119 = sphi 0, %s121
    %s122 = sphi 0, %s119
    %s123 = sphi 0, %s122
    %s139 = sphi 0, %s123
    %s147 = sphi 0, %s149
    %s150 = sphi 0, %s147
    %s151 = sphi 0, %s150
    %s167 = sphi 0, %s151
  $region4: #{gcn1_forward.5} parent=0 // loop_header_branch
    %13 = sbr.rel (%p11) target = $region8
  $region5: #{gcn1_forward.5} parent=0 // loop_body
    %s15 = ssub.s32 %s10, 1
    %s16 = ssub.s32 %s10, 2
    %s26 = sadd.s32 1, %s19
    %p27 = scmp.ge.s32.totalorder %s26, 1
    %s28 = scalar_select %p27, 0, %s26
    %s29 = sadd.s32 1, %s18
    %s30 = scalar_select %p27, %s29, %s18
    %p31 = scmp.ge.s32.totalorder %s30, 1
    %s32 = scalar_select %p31, 0, %s30
    %s33 = sadd.s32 1, %s17
    %s34 = scalar_select %p31, %s33, %s17
    %p35 = scmp.ge.s32.totalorder %s34, 2
    %s36 = scalar_select %p35, 0, %s34
    %s37 = ssub.s32 %s17, %s36
    %s38 = ssub.s32 %s19, %s28
    %s39 = sor.u32 %s37, %s38
    %p40 = scmp.eq.s32.totalorder %s39, 0
    %s42 = sadd.s32 %s41, 1
    %s43 = scalar_select %p40, %s41, %s42
    %p46 = pneg %p40
    %p47 = scmp.eq.s32.totalorder %s10, 1
    %p48 = por %p46, %p47
    %p49 = scmp.ne.s32.totalorder %s41, %s44
    %p50 = scmp.eq.s32.totalorder %s10, 0
    %p51 = por %p49, %p50
    %p52 = scmp.ne.s32.totalorder %s41, %s44
    %p53 = scmp.eq.s32.totalorder %s15, 1
    %p54 = por %p52, %p53
    %p55 = scmp.ne.s32.totalorder %s44, %s45
    %p56 = scmp.eq.s32.totalorder %s15, 0
    %p57 = por %p55, %p56
    %p58 = scmp.ne.s32.totalorder %s44, %s45
    %p59 = scmp.eq.s32.totalorder %s16, 1
    %p60 = por %p58, %p59
    %p62 = scmp.ne.s32.totalorder %s45, %s61
    %p63 = scmp.eq.s32.totalorder %s16, 0
    %p64 = por %p62, %p63
    %s65 = ssub.s32 %s19, %s28
    %p66 = scmp.eq.s32.totalorder %s65, 0
    %s68 = sadd.s32 %s67, 1
    %s69 = scalar_select %p66, %s67, %s68
    %p72 = pneg %p66
    %p73 = scmp.eq.s32.totalorder %s10, 1
    %p74 = por %p72, %p73
    %p75 = scmp.ne.s32.totalorder %s67, %s70
    %p76 = scmp.eq.s32.totalorder %s10, 0
    %p77 = por %p75, %p76
    %p78 = scmp.ne.s32.totalorder %s67, %s70
    %p79 = scmp.eq.s32.totalorder %s15, 1
    %p80 = por %p78, %p79
    %p81 = scmp.ne.s32.totalorder %s70, %s71
    %p82 = scmp.eq.s32.totalorder %s15, 0
    %p83 = por %p81, %p82
    %p84 = scmp.ne.s32.totalorder %s70, %s71
    %p85 = scmp.eq.s32.totalorder %s16, 1
    %p86 = por %p84, %p85
    %p88 = scmp.ne.s32.totalorder %s71, %s87
    %p89 = scmp.eq.s32.totalorder %s16, 0
    %p90 = por %p88, %p89
    %s91 = ssub.s32 %s18, %s32
    %p92 = scmp.eq.s32.totalorder %s91, 0
    %s94 = sadd.s32 %s93, 1
    %s95 = scalar_select %p92, %s93, %s94
    %p98 = pneg %p92
    %p99 = scmp.eq.s32.totalorder %s10, 1
    %p100 = por %p98, %p99
    %p101 = scmp.ne.s32.totalorder %s93, %s96
    %p102 = scmp.eq.s32.totalorder %s10, 0
    %p103 = por %p101, %p102
    %p104 = scmp.ne.s32.totalorder %s93, %s96
    %p105 = scmp.eq.s32.totalorder %s15, 1
    %p106 = por %p104, %p105
    %p107 = scmp.ne.s32.totalorder %s96, %s97
    %p108 = scmp.eq.s32.totalorder %s15, 0
    %p109 = por %p107, %p108
    %p110 = scmp.ne.s32.totalorder %s96, %s97
    %p111 = scmp.eq.s32.totalorder %s16, 1
    %p112 = por %p110, %p111
    %p114 = scmp.ne.s32.totalorder %s97, %s113
    %p115 = scmp.eq.s32.totalorder %s16, 0
    %p116 = por %p114, %p115
    %s117 = ssub.s32 %s18, %s32
    %p118 = scmp.eq.s32.totalorder %s117, 0
    %s120 = sadd.s32 %s119, 1
    %s121 = scalar_select %p118, %s119, %s120
    %p124 = pneg %p118
    %p125 = scmp.eq.s32.totalorder %s10, 1
    %p126 = por %p124, %p125
    %p127 = scmp.ne.s32.totalorder %s119, %s122
    %p128 = scmp.eq.s32.totalorder %s10, 0
    %p129 = por %p127, %p128
    %p130 = scmp.ne.s32.totalorder %s119, %s122
    %p131 = scmp.eq.s32.totalorder %s15, 1
    %p132 = por %p130, %p131
    %p133 = scmp.ne.s32.totalorder %s122, %s123
    %p134 = scmp.eq.s32.totalorder %s15, 0
    %p135 = por %p133, %p134
    %p136 = scmp.ne.s32.totalorder %s122, %s123
    %p137 = scmp.eq.s32.totalorder %s16, 1
    %p138 = por %p136, %p137
    %p140 = scmp.ne.s32.totalorder %s123, %s139
    %p141 = scmp.eq.s32.totalorder %s16, 0
    %p142 = por %p140, %p141
    %s143 = ssub.s32 %s17, %s36
    %s144 = ssub.s32 %s18, %s32
    %s145 = sor.u32 %s143, %s144
    %p146 = scmp.eq.s32.totalorder %s145, 0
    %s148 = sadd.s32 %s147, 1
    %s149 = scalar_select %p146, %s147, %s148
    %p152 = pneg %p146
    %p153 = scmp.eq.s32.totalorder %s10, 1
    %p154 = por %p152, %p153
    %p155 = scmp.ne.s32.totalorder %s147, %s150
    %p156 = scmp.eq.s32.totalorder %s10, 0
    %p157 = por %p155, %p156
    %p158 = scmp.ne.s32.totalorder %s147, %s150
    %p159 = scmp.eq.s32.totalorder %s15, 1
    %p160 = por %p158, %p159
    %p161 = scmp.ne.s32.totalorder %s150, %s151
    %p162 = scmp.eq.s32.totalorder %s15, 0
    %p163 = por %p161, %p162
    %p164 = scmp.ne.s32.totalorder %s150, %s151
    %p165 = scmp.eq.s32.totalorder %s16, 1
    %p166 = por %p164, %p165
    %p168 = scmp.ne.s32.totalorder %s151, %s167
    %p169 = scmp.eq.s32.totalorder %s16, 0
    %p170 = por %p168, %p169
    %p171 = scmp.le.s32.totalorder 1, %s10
    %p172 = scmp.lt.s32.totalorder %s10, 3
    %p173 = pnand %p171, %p172
    %p174 = pneg %p173
    // Predicated region
    $region9: #{gcn1_forward.5} parent=5 // pred_check
      _
    $region10: #{gcn1_forward.5} parent=5 // pred_check_branch
      %176 = sbr.rel (%p173) target = $region12
    $region11: #{gcn1_forward.5} parent=5 // pred_region
      %s177 = ssub.s32 %s10, 1
      // Predicated region
      $region13: #{gcn1_forward.5} parent=11 // pred_check
        %p178 = pneg %p83
      $region14: #{gcn1_forward.5} parent=11 // pred_check_branch
        %180 = sbr.rel (%p178) target = $region16
      $region15: #{gcn1_forward.5} parent=11 // pred_region
        %s181 = smul.u32 64, %s22
        %p182 = scmp.lt.s32.totalorder %s181, 63
        %s183 = scalar_select %p182, %s181, 63
        %s184 = smul.addr %s183, 4
        %s185 = scalar_lea.vmem %s1, %s184
        %s186 = smul.u32 64, %s22
      $region16: #{gcn1_forward.5} parent=11 // pred_fallthru
        _
      // Predicated region
      $region17: #{gcn1_forward.5} parent=11 // pred_check
        %p187 = pneg %p109
      $region18: #{gcn1_forward.5} parent=11 // pred_check_branch
        %189 = sbr.rel (%p187) target = $region20
      $region19: #{gcn1_forward.5} parent=11 // pred_region
        %p190 = scmp.lt.s32.totalorder %s21, 0
        %s191 = scalar_select %p190, %s21, 0
        %s192 = smul.addr %s191, 4
        %s193 = scalar_lea.vmem %s2, %s192
      $region20: #{gcn1_forward.5} parent=11 // pred_fallthru
        _
      // Predicated region
      $region21: #{gcn1_forward.5} parent=11 // pred_check
        %p194 = pneg %p135
      $region22: #{gcn1_forward.5} parent=11 // pred_check_branch
        %196 = sbr.rel (%p194) target = $region24
      $region23: #{gcn1_forward.5} parent=11 // pred_region
        %p197 = scmp.lt.s32.totalorder %s21, 0
        %s198 = scalar_select %p197, %s21, 0
        %s199 = scalar_lea.vmem %s3, %s198
      $region24: #{gcn1_forward.5} parent=11 // pred_fallthru
        _
    $region12: #{gcn1_forward.5} parent=5 // pred_fallthru
      _
    %p200 = scmp.lt.s32.totalorder %s10, 2
    // Predicated region
    $region25: #{gcn1_forward.5} parent=5 // pred_check
      %p201 = pneg %p200
    $region26: #{gcn1_forward.5} parent=5 // pred_check_branch
      %203 = sbr.rel (%p201) target = $region28
    $region27: #{gcn1_forward.5} parent=5 // pred_region
      // Predicated region
      $region29: #{gcn1_forward.5} parent=27 // pred_check
        %p204 = pneg %p51
      $region30: #{gcn1_forward.5} parent=27 // pred_check_branch
        %206 = sbr.rel (%p204) target = $region32
      $region31: #{gcn1_forward.5} parent=27 // pred_region
        %s207 = smul.u32 32, %s17
        %s208 = smul.u32 4, %s19
        %p209 = scmp.lt.s32.totalorder %s207, 63
        %s210 = scalar_select %p209, %s207, 63
        %p211 = scmp.lt.s32.totalorder %s208, 3
        %s212 = scalar_select %p211, %s208, 3
        %s213 = smul.addr %s210, 4
        %s214 = sadd.s32 %s212, %s213
        %s215 = smul.addr %s214, 4
        %s216 = scalar_lea.vmem %s0, %s215
        %s217 = smul.u32 32, %s17
        %s218 = smul.u32 4, %s19
      $region32: #{gcn1_forward.5} parent=27 // pred_fallthru
        _
    $region28: #{gcn1_forward.5} parent=5 // pred_fallthru
      _
    %p219 = scmp.le.s32.totalorder 1, %s10
    %p220 = scmp.lt.s32.totalorder %s10, 3
    %p221 = pnand %p219, %p220
    %p222 = pneg %p221
    // Predicated region
    $region33: #{gcn1_forward.5} parent=5 // pred_check
      _
    $region34: #{gcn1_forward.5} parent=5 // pred_check_branch
      %224 = sbr.rel (%p221) target = $region36
    $region35: #{gcn1_forward.5} parent=5 // pred_region
      %s225 = ssub.s32 %s10, 1
      %s226 = smul.u32 32, %s20
      %s227 = smul.u32 4, %s22
      %p228 = scmp.lt.s32.totalorder %s226, 63
      %s229 = scalar_select %p228, %s226, 63
      %p230 = scmp.lt.s32.totalorder %s227, 3
      %s231 = scalar_select %p230, %s227, 3
      %s232 = smul.addr %s229, 4
      %s233 = sadd.s32 %s231, %s232
      %s234 = smul.addr %s233, 4
      %s235 = scalar_lea.vmem %s0, %s234
      %p236 = pneg %p57
      %p237 = pneg %p54
      %s238 = smul.u32 64, %s22
      %p239 = scmp.lt.s32.totalorder %s238, 63
      %s240 = scalar_select %p239, %s238, 63
      %s241 = smul.addr %s240, 4
      %s242 = scalar_lea.vmem %s1, %s241
      %p243 = pneg %p83
      %p244 = pneg %p80
      %p245 = scmp.lt.s32.totalorder %s21, 0
      %s246 = scalar_select %p245, %s21, 0
      %s247 = smul.addr %s246, 4
      %s248 = scalar_lea.vmem %s2, %s247
      %p249 = pneg %p109
      %p250 = pneg %p106
      %p251 = scmp.lt.s32.totalorder %s21, 0
      %s252 = scalar_select %p251, %s21, 0
      %s253 = scalar_lea.vmem %s3, %s252
      %p254 = pneg %p135
      %p255 = pneg %p132
      %p256 = pneg %p163
      %p257 = pneg %p160
      %s258 = smul.u32 32, %s20
      %p259 = scmp.lt.s32.totalorder %s258, 63
      %s260 = scalar_select %p259, %s258, 63
      %p261 = scmp.lt.s32.totalorder %s21, 0
      %s262 = scalar_select %p261, %s21, 0
      %s263 = sadd.s32 %s262, %s260
      %s264 = smul.addr %s263, 8
      %s265 = scalar_lea.vmem %s4, %s264
      %s266 = smul.u32 32, %s20
      %s267 = smul.u32 4, %s22
      %p268 = scmp.lt.s32.totalorder %s266, 63
      %s269 = scalar_select %p268, %s266, 63
      %p270 = scmp.lt.s32.totalorder %s267, 3
      %s271 = scalar_select %p270, %s267, 3
      %s272 = smul.addr %s269, 4
      %s273 = sadd.s32 %s271, %s272
      %s274 = smul.addr %s273, 4
      %s275 = scalar_lea.vmem %s0, %s274
      %s276 = smul.u32 32, %s20
      %s277 = smul.u32 4, %s22
      %s278 = smul.u32 64, %s22
      %p279 = scmp.lt.s32.totalorder %s278, 63
      %s280 = scalar_select %p279, %s278, 63
      %s281 = smul.addr %s280, 4
      %s282 = scalar_lea.vmem %s1, %s281
      %s283 = smul.u32 64, %s22
      %p284 = scmp.lt.s32.totalorder %s21, 0
      %s285 = scalar_select %p284, %s21, 0
      %s286 = smul.addr %s285, 4
      %s287 = scalar_lea.vmem %s2, %s286
      %p288 = scmp.lt.s32.totalorder %s21, 0
      %s289 = scalar_select %p288, %s21, 0
      %s290 = scalar_lea.vmem %s3, %s289
      %s291 = smul.u32 32, %s20
      %p292 = scmp.lt.s32.totalorder %s291, 63
      %s293 = scalar_select %p292, %s291, 63
      %p294 = scmp.lt.s32.totalorder %s21, 0
      %s295 = scalar_select %p294, %s21, 0
      %s296 = sadd.s32 %s295, %s293
      %s297 = smul.addr %s296, 8
      %s298 = scalar_lea.vmem %s4, %s297
      %s299 = smul.u32 32, %s20
      %p300 = scmp.eq.s32.totalorder %s22, 0
      // Predicated region
      $region37: #{gcn1_forward.5} parent=35 // pred_check
        %p301 = pneg %p300
      $region38: #{gcn1_forward.5} parent=35 // pred_check_branch
        %303 = sbr.rel (%p301) target = $region40
      $region39: #{gcn1_forward.5} parent=35 // pred_region
        %304 = vst [vmem:[#allocation2] sm:$0xff] 0.0
        %305 = vst [vmem:[#allocation2 + $0x8] sm:$0xff] 0.0
        %306 = vst [vmem:[#allocation2 + $0x10] sm:$0xff] 0.0
        %307 = vst [vmem:[#allocation2 + $0x18] sm:$0xff] 0.0
        %308 = vst [vmem:[#allocation2 + $0x20] sm:$0xff] 0.0
        %309 = vst [vmem:[#allocation2 + $0x28] sm:$0xff] 0.0
        %310 = vst [vmem:[#allocation2 + $0x30] sm:$0xff] 0.0
        %311 = vst [vmem:[#allocation2 + $0x38] sm:$0xff] 0.0
        %312 = vst [vmem:[#allocation2 + $0x40] sm:$0xff] 0.0
        %313 = vst [vmem:[#allocation2 + $0x48] sm:$0xff] 0.0
        %314 = vst [vmem:[#allocation2 + $0x50] sm:$0xff] 0.0
        %315 = vst [vmem:[#allocation2 + $0x58] sm:$0xff] 0.0
        %316 = vst [vmem:[#allocation2 + $0x60] sm:$0xff] 0.0
        %317 = vst [vmem:[#allocation2 + $0x68] sm:$0xff] 0.0
        %318 = vst [vmem:[#allocation2 + $0x70] sm:$0xff] 0.0
        %319 = vst [vmem:[#allocation2 + $0x78] sm:$0xff] 0.0
        %320 = vst [vmem:[#allocation2 + $0x80] sm:$0xff] 0.0
        %321 = vst [vmem:[#allocation2 + $0x88] sm:$0xff] 0.0
        %322 = vst [vmem:[#allocation2 + $0x90] sm:$0xff] 0.0
        %323 = vst [vmem:[#allocation2 + $0x98] sm:$0xff] 0.0
        %324 = vst [vmem:[#allocation2 + $0xa0] sm:$0xff] 0.0
        %325 = vst [vmem:[#allocation2 + $0xa8] sm:$0xff] 0.0
        %326 = vst [vmem:[#allocation2 + $0xb0] sm:$0xff] 0.0
        %327 = vst [vmem:[#allocation2 + $0xb8] sm:$0xff] 0.0
        %328 = vst [vmem:[#allocation2 + $0xc0] sm:$0xff] 0.0
        %329 = vst [vmem:[#allocation2 + $0xc8] sm:$0xff] 0.0
        %330 = vst [vmem:[#allocation2 + $0xd0] sm:$0xff] 0.0
        %331 = vst [vmem:[#allocation2 + $0xd8] sm:$0xff] 0.0
        %332 = vst [vmem:[#allocation2 + $0xe0] sm:$0xff] 0.0
        %333 = vst [vmem:[#allocation2 + $0xe8] sm:$0xff] 0.0
        %334 = vst [vmem:[#allocation2 + $0xf0] sm:$0xff] 0.0
        %335 = vst [vmem:[#allocation2 + $0xf8] sm:$0xff] 0.0
      $region40: #{gcn1_forward.5} parent=35 // pred_fallthru
        _
      %v336 = vld [vmem:[%s282] sm:$0xf]
      %v337 = vld [vmem:[%s282 + $0x4] sm:$0xf]
      %v338 = vld [vmem:[%s282 + $0x8] sm:$0xf]
      %v339 = vld [vmem:[%s282 + $0xc] sm:$0xf]
      %v340 = vld [vmem:[%s282 + $0x10] sm:$0xf]
      %v341 = vld [vmem:[%s282 + $0x14] sm:$0xf]
      %v342 = vld [vmem:[%s282 + $0x18] sm:$0xf]
      %v343 = vld [vmem:[%s282 + $0x1c] sm:$0xf]
      %v344 = vld [vmem:[%s282 + $0x20] sm:$0xf]
      %v345 = vld [vmem:[%s282 + $0x24] sm:$0xf]
      %v346 = vld [vmem:[%s282 + $0x28] sm:$0xf]
      %v347 = vld [vmem:[%s282 + $0x2c] sm:$0xf]
      %v348 = vld [vmem:[%s282 + $0x30] sm:$0xf]
      %v349 = vld [vmem:[%s282 + $0x34] sm:$0xf]
      %v350 = vld [vmem:[%s282 + $0x38] sm:$0xf]
      %v351 = vld [vmem:[%s282 + $0x3c] sm:$0xf]
      %v352 = vld [vmem:[%s282 + $0x40] sm:$0xf]
      %v353 = vld [vmem:[%s282 + $0x44] sm:$0xf]
      %v354 = vld [vmem:[%s282 + $0x48] sm:$0xf]
      %v355 = vld [vmem:[%s282 + $0x4c] sm:$0xf]
      %v356 = vld [vmem:[%s282 + $0x50] sm:$0xf]
      %v357 = vld [vmem:[%s282 + $0x54] sm:$0xf]
      %v358 = vld [vmem:[%s282 + $0x58] sm:$0xf]
      %v359 = vld [vmem:[%s282 + $0x5c] sm:$0xf]
      %v360 = vld [vmem:[%s282 + $0x60] sm:$0xf]
      %v361 = vld [vmem:[%s282 + $0x64] sm:$0xf]
      %v362 = vld [vmem:[%s282 + $0x68] sm:$0xf]
      %v363 = vld [vmem:[%s282 + $0x6c] sm:$0xf]
      %v364 = vld [vmem:[%s282 + $0x70] sm:$0xf]
      %v365 = vld [vmem:[%s282 + $0x74] sm:$0xf]
      %v366 = vld [vmem:[%s282 + $0x78] sm:$0xf]
      %v367 = vld [vmem:[%s282 + $0x7c] sm:$0xf]
      %v368 = vld [vmem:[%s282 + $0x80] sm:$0xf]
      %v369 = vld [vmem:[%s282 + $0x84] sm:$0xf]
      %v370 = vld [vmem:[%s282 + $0x88] sm:$0xf]
      %v371 = vld [vmem:[%s282 + $0x8c] sm:$0xf]
      %v372 = vld [vmem:[%s282 + $0x90] sm:$0xf]
      %v373 = vld [vmem:[%s282 + $0x94] sm:$0xf]
      %v374 = vld [vmem:[%s282 + $0x98] sm:$0xf]
      %v375 = vld [vmem:[%s282 + $0x9c] sm:$0xf]
      %v376 = vld [vmem:[%s282 + $0xa0] sm:$0xf]
      %v377 = vld [vmem:[%s282 + $0xa4] sm:$0xf]
      %v378 = vld [vmem:[%s282 + $0xa8] sm:$0xf]
      %v379 = vld [vmem:[%s282 + $0xac] sm:$0xf]
      %v380 = vld [vmem:[%s282 + $0xb0] sm:$0xf]
      %v381 = vld [vmem:[%s282 + $0xb4] sm:$0xf]
      %v382 = vld [vmem:[%s282 + $0xb8] sm:$0xf]
      %v383 = vld [vmem:[%s282 + $0xbc] sm:$0xf]
      %v384 = vld [vmem:[%s282 + $0xc0] sm:$0xf]
      %v385 = vld [vmem:[%s282 + $0xc4] sm:$0xf]
      %v386 = vld [vmem:[%s282 + $0xc8] sm:$0xf]
      %v387 = vld [vmem:[%s282 + $0xcc] sm:$0xf]
      %v388 = vld [vmem:[%s282 + $0xd0] sm:$0xf]
      %v389 = vld [vmem:[%s282 + $0xd4] sm:$0xf]
      %v390 = vld [vmem:[%s282 + $0xd8] sm:$0xf]
      %v391 = vld [vmem:[%s282 + $0xdc] sm:$0xf]
      %v392 = vld [vmem:[%s282 + $0xe0] sm:$0xf]
      %v393 = vld [vmem:[%s282 + $0xe4] sm:$0xf]
      %v394 = vld [vmem:[%s282 + $0xe8] sm:$0xf]
      %v395 = vld [vmem:[%s282 + $0xec] sm:$0xf]
      %v396 = vld [vmem:[%s282 + $0xf0] sm:$0xf]
      %v397 = vld [vmem:[%s282 + $0xf4] sm:$0xf]
      %v398 = vld [vmem:[%s282 + $0xf8] sm:$0xf]
      %v399 = vld [vmem:[%s282 + $0xfc] sm:$0xf]
      %v400 = vld [vmem:[%s287] sm:$0xf]
      %v401 = vld [vmem:[%s287 + $0x4] sm:$0xf]
      %v402 = vld [vmem:[%s287 + $0x8] sm:$0xf]
      %v403 = vld [vmem:[%s287 + $0xc] sm:$0xf]
      %v404 = vld [vmem:[%s287 + $0x10] sm:$0xf]
      %v405 = vld [vmem:[%s287 + $0x14] sm:$0xf]
      %v406 = vld [vmem:[%s287 + $0x18] sm:$0xf]
      %v407 = vld [vmem:[%s287 + $0x1c] sm:$0xf]
      %v408 = vld [vmem:[%s287 + $0x20] sm:$0xf]
      %v409 = vld [vmem:[%s287 + $0x24] sm:$0xf]
      %v410 = vld [vmem:[%s287 + $0x28] sm:$0xf]
      %v411 = vld [vmem:[%s287 + $0x2c] sm:$0xf]
      %v412 = vld [vmem:[%s287 + $0x30] sm:$0xf]
      %v413 = vld [vmem:[%s287 + $0x34] sm:$0xf]
      %v414 = vld [vmem:[%s287 + $0x38] sm:$0xf]
      %v415 = vld [vmem:[%s287 + $0x3c] sm:$0xf]
      %v416 = vld [vmem:[%s290] sm:$0x1]
      %v418 = vperm.slane %v416, 0
      %v484 = vunpack.c.l.b16 %v336
      %v485 = vunpack.c.l.b16 %v337
      %v486 = vunpack.c.l.b16 %v338
      %v487 = vunpack.c.l.b16 %v339
      %v488 = vunpack.c.l.b16 %v340
      %v489 = vunpack.c.l.b16 %v341
      %v490 = vunpack.c.l.b16 %v342
      %v491 = vunpack.c.l.b16 %v343
      %v492 = vunpack.c.l.b16 %v344
      %v493 = vunpack.c.l.b16 %v345
      %v494 = vunpack.c.l.b16 %v346
      %v495 = vunpack.c.l.b16 %v347
      %v496 = vunpack.c.l.b16 %v348
      %v497 = vunpack.c.l.b16 %v349
      %v498 = vunpack.c.l.b16 %v350
      %v499 = vunpack.c.l.b16 %v351
      %v500 = vunpack.c.l.b16 %v352
      %v501 = vunpack.c.l.b16 %v353
      %v502 = vunpack.c.l.b16 %v354
      %v503 = vunpack.c.l.b16 %v355
      %v504 = vunpack.c.l.b16 %v356
      %v505 = vunpack.c.l.b16 %v357
      %v506 = vunpack.c.l.b16 %v358
      %v507 = vunpack.c.l.b16 %v359
      %v508 = vunpack.c.l.b16 %v360
      %v509 = vunpack.c.l.b16 %v361
      %v510 = vunpack.c.l.b16 %v362
      %v511 = vunpack.c.l.b16 %v363
      %v512 = vunpack.c.l.b16 %v364
      %v513 = vunpack.c.l.b16 %v365
      %v514 = vunpack.c.l.b16 %v366
      %v515 = vunpack.c.l.b16 %v367
      %v516 = vunpack.c.l.b16 %v368
      %v517 = vunpack.c.l.b16 %v369
      %v518 = vunpack.c.l.b16 %v370
      %v519 = vunpack.c.l.b16 %v371
      %v520 = vunpack.c.l.b16 %v372
      %v521 = vunpack.c.l.b16 %v373
      %v522 = vunpack.c.l.b16 %v374
      %v523 = vunpack.c.l.b16 %v375
      %v524 = vunpack.c.l.b16 %v376
      %v525 = vunpack.c.l.b16 %v377
      %v526 = vunpack.c.l.b16 %v378
      %v527 = vunpack.c.l.b16 %v379
      %v528 = vunpack.c.l.b16 %v380
      %v529 = vunpack.c.l.b16 %v381
      %v530 = vunpack.c.l.b16 %v382
      %v531 = vunpack.c.l.b16 %v383
      %v532 = vunpack.c.l.b16 %v384
      %v533 = vunpack.c.l.b16 %v385
      %v534 = vunpack.c.l.b16 %v386
      %v535 = vunpack.c.l.b16 %v387
      %v536 = vunpack.c.l.b16 %v388
      %v537 = vunpack.c.l.b16 %v389
      %v538 = vunpack.c.l.b16 %v390
      %v539 = vunpack.c.l.b16 %v391
      %v540 = vunpack.c.l.b16 %v392
      %v541 = vunpack.c.l.b16 %v393
      %v542 = vunpack.c.l.b16 %v394
      %v543 = vunpack.c.l.b16 %v395
      %v544 = vunpack.c.l.b16 %v396
      %v545 = vunpack.c.l.b16 %v397
      %v546 = vunpack.c.l.b16 %v398
      %v547 = vunpack.c.l.b16 %v399
      %v548 = vpack.c.b16 %v485, %v484
      %v549 = vpack.c.b16 %v487, %v486
      %v550 = vpack.c.b16 %v489, %v488
      %v551 = vpack.c.b16 %v491, %v490
      %v552 = vpack.c.b16 %v493, %v492
      %v553 = vpack.c.b16 %v495, %v494
      %v554 = vpack.c.b16 %v497, %v496
      %v555 = vpack.c.b16 %v499, %v498
      %v556 = vpack.c.b16 %v501, %v500
      %v557 = vpack.c.b16 %v503, %v502
      %v558 = vpack.c.b16 %v505, %v504
      %v559 = vpack.c.b16 %v507, %v506
      %v560 = vpack.c.b16 %v509, %v508
      %v561 = vpack.c.b16 %v511, %v510
      %v562 = vpack.c.b16 %v513, %v512
      %v563 = vpack.c.b16 %v515, %v514
      %v564 = vpack.c.b16 %v517, %v516
      %v565 = vpack.c.b16 %v519, %v518
      %v566 = vpack.c.b16 %v521, %v520
      %v567 = vpack.c.b16 %v523, %v522
      %v568 = vpack.c.b16 %v525, %v524
      %v569 = vpack.c.b16 %v527, %v526
      %v570 = vpack.c.b16 %v529, %v528
      %v571 = vpack.c.b16 %v531, %v530
      %v572 = vpack.c.b16 %v533, %v532
      %v573 = vpack.c.b16 %v535, %v534
      %v574 = vpack.c.b16 %v537, %v536
      %v575 = vpack.c.b16 %v539, %v538
      %v576 = vpack.c.b16 %v541, %v540
      %v577 = vpack.c.b16 %v543, %v542
      %v578 = vpack.c.b16 %v545, %v544
      %v579 = vpack.c.b16 %v547, %v546
      %v628 = vunpack.c.l.b16 %v400
      %v629 = vunpack.c.l.b16 %v401
      %v630 = vunpack.c.l.b16 %v402
      %v631 = vunpack.c.l.b16 %v403
      %v632 = vunpack.c.l.b16 %v404
      %v633 = vunpack.c.l.b16 %v405
      %v634 = vunpack.c.l.b16 %v406
      %v635 = vunpack.c.l.b16 %v407
      %v636 = vunpack.c.l.b16 %v408
      %v637 = vunpack.c.l.b16 %v409
      %v638 = vunpack.c.l.b16 %v410
      %v639 = vunpack.c.l.b16 %v411
      %v640 = vunpack.c.l.b16 %v412
      %v641 = vunpack.c.l.b16 %v413
      %v642 = vunpack.c.l.b16 %v414
      %v643 = vunpack.c.l.b16 %v415
      %v644 = vpack.c.b16 %v629, %v628
      %v645 = vpack.c.b16 %v631, %v630
      %v646 = vpack.c.b16 %v633, %v632
      %v647 = vpack.c.b16 %v635, %v634
      %v648 = vpack.c.b16 %v637, %v636
      %v649 = vpack.c.b16 %v639, %v638
      %v650 = vpack.c.b16 %v641, %v640
      %v651 = vpack.c.b16 %v643, %v642
      %660 = vmatpush.bf16.msra.mxu0 %v651
      %661 = vmatpush.bf16.msra.mxu0 %v650
      %662 = vmatpush.bf16.msra.mxu0 %v649
      %663 = vmatpush.bf16.msra.mxu0 %v648
      %664 = vmatpush.bf16.msra.mxu0 %v647
      %665 = vmatpush.bf16.msra.mxu0 %v646
      %666 = vmatpush.bf16.msra.mxu0 %v645
      %667 = vmatpush.bf16.msra.mxu0 %v644
      %668 = vmatmul.bf16.gmra.mxu0 %v548
      %v669 = vpop.f32.mrf.mxu0
      %v670 = vadd.f32 %v418, %v669
      %v671 = vpop.f32.mrf.mxu0
      %v672 = vadd.f32 %v418, %v671
      %673 = vmatmul.bf16.gmra.mxu0 %v549
      %v674 = vpop.f32.mrf.mxu0
      %v675 = vadd.f32 %v418, %v674
      %v676 = vpop.f32.mrf.mxu0
      %v677 = vadd.f32 %v418, %v676
      %678 = vmatmul.bf16.gmra.mxu0 %v550
      %v679 = vpop.f32.mrf.mxu0
      %v680 = vadd.f32 %v418, %v679
      %v681 = vpop.f32.mrf.mxu0
      %v682 = vadd.f32 %v418, %v681
      %683 = vmatmul.bf16.gmra.mxu0 %v551
      %v684 = vpop.f32.mrf.mxu0
      %v685 = vadd.f32 %v418, %v684
      %v686 = vpop.f32.mrf.mxu0
      %v687 = vadd.f32 %v418, %v686
      %688 = vmatmul.bf16.gmra.mxu0 %v552
      %v689 = vpop.f32.mrf.mxu0
      %v690 = vadd.f32 %v418, %v689
      %v691 = vpop.f32.mrf.mxu0
      %v692 = vadd.f32 %v418, %v691
      %693 = vmatmul.bf16.gmra.mxu0 %v553
      %v694 = vpop.f32.mrf.mxu0
      %v695 = vadd.f32 %v418, %v694
      %v696 = vpop.f32.mrf.mxu0
      %v697 = vadd.f32 %v418, %v696
      %698 = vmatmul.bf16.gmra.mxu0 %v554
      %v699 = vpop.f32.mrf.mxu0
      %v700 = vadd.f32 %v418, %v699
      %v701 = vpop.f32.mrf.mxu0
      %v702 = vadd.f32 %v418, %v701
      %703 = vmatmul.bf16.gmra.mxu0 %v555
      %v704 = vpop.f32.mrf.mxu0
      %v705 = vadd.f32 %v418, %v704
      %v706 = vpop.f32.mrf.mxu0
      %v707 = vadd.f32 %v418, %v706
      %708 = vmatmul.bf16.gmra.mxu0 %v556
      %v709 = vpop.f32.mrf.mxu0
      %v710 = vadd.f32 %v418, %v709
      %v711 = vpop.f32.mrf.mxu0
      %v712 = vadd.f32 %v418, %v711
      %713 = vmatmul.bf16.gmra.mxu0 %v557
      %v714 = vpop.f32.mrf.mxu0
      %v715 = vadd.f32 %v418, %v714
      %v716 = vpop.f32.mrf.mxu0
      %v717 = vadd.f32 %v418, %v716
      %718 = vmatmul.bf16.gmra.mxu0 %v558
      %v719 = vpop.f32.mrf.mxu0
      %v720 = vadd.f32 %v418, %v719
      %v721 = vpop.f32.mrf.mxu0
      %v722 = vadd.f32 %v418, %v721
      %723 = vmatmul.bf16.gmra.mxu0 %v559
      %v724 = vpop.f32.mrf.mxu0
      %v725 = vadd.f32 %v418, %v724
      %v726 = vpop.f32.mrf.mxu0
      %v727 = vadd.f32 %v418, %v726
      %728 = vmatmul.bf16.gmra.mxu0 %v560
      %v729 = vpop.f32.mrf.mxu0
      %v730 = vadd.f32 %v418, %v729
      %v731 = vpop.f32.mrf.mxu0
      %v732 = vadd.f32 %v418, %v731
      %733 = vmatmul.bf16.gmra.mxu0 %v561
      %v734 = vpop.f32.mrf.mxu0
      %v735 = vadd.f32 %v418, %v734
      %v736 = vpop.f32.mrf.mxu0
      %v737 = vadd.f32 %v418, %v736
      %738 = vmatmul.bf16.gmra.mxu0 %v562
      %v739 = vpop.f32.mrf.mxu0
      %v740 = vadd.f32 %v418, %v739
      %v741 = vpop.f32.mrf.mxu0
      %v742 = vadd.f32 %v418, %v741
      %743 = vmatmul.bf16.gmra.mxu0 %v563
      %v744 = vpop.f32.mrf.mxu0
      %v745 = vadd.f32 %v418, %v744
      %v746 = vpop.f32.mrf.mxu0
      %v747 = vadd.f32 %v418, %v746
      %748 = vmatmul.bf16.gmra.mxu0 %v564
      %v749 = vpop.f32.mrf.mxu0
      %v750 = vadd.f32 %v418, %v749
      %v751 = vpop.f32.mrf.mxu0
      %v752 = vadd.f32 %v418, %v751
      %753 = vmatmul.bf16.gmra.mxu0 %v565
      %v754 = vpop.f32.mrf.mxu0
      %v755 = vadd.f32 %v418, %v754
      %v756 = vpop.f32.mrf.mxu0
      %v757 = vadd.f32 %v418, %v756
      %758 = vmatmul.bf16.gmra.mxu0 %v566
      %v759 = vpop.f32.mrf.mxu0
      %v760 = vadd.f32 %v418, %v759
      %v761 = vpop.f32.mrf.mxu0
      %v762 = vadd.f32 %v418, %v761
      %763 = vmatmul.bf16.gmra.mxu0 %v567
      %v764 = vpop.f32.mrf.mxu0
      %v765 = vadd.f32 %v418, %v764
      %v766 = vpop.f32.mrf.mxu0
      %v767 = vadd.f32 %v418, %v766
      %768 = vmatmul.bf16.gmra.mxu0 %v568
      %v769 = vpop.f32.mrf.mxu0
      %v770 = vadd.f32 %v418, %v769
      %v771 = vpop.f32.mrf.mxu0
      %v772 = vadd.f32 %v418, %v771
      %773 = vmatmul.bf16.gmra.mxu0 %v569
      %v774 = vpop.f32.mrf.mxu0
      %v775 = vadd.f32 %v418, %v774
      %v776 = vpop.f32.mrf.mxu0
      %v777 = vadd.f32 %v418, %v776
      %778 = vmatmul.bf16.gmra.mxu0 %v570
      %v779 = vpop.f32.mrf.mxu0
      %v780 = vadd.f32 %v418, %v779
      %v781 = vpop.f32.mrf.mxu0
      %v782 = vadd.f32 %v418, %v781
      %783 = vmatmul.bf16.gmra.mxu0 %v571
      %v784 = vpop.f32.mrf.mxu0
      %v785 = vadd.f32 %v418, %v784
      %v786 = vpop.f32.mrf.mxu0
      %v787 = vadd.f32 %v418, %v786
      %788 = vmatmul.bf16.gmra.mxu0 %v572
      %v789 = vpop.f32.mrf.mxu0
      %v790 = vadd.f32 %v418, %v789
      %v791 = vpop.f32.mrf.mxu0
      %v792 = vadd.f32 %v418, %v791
      %793 = vmatmul.bf16.gmra.mxu0 %v573
      %v794 = vpop.f32.mrf.mxu0
      %v795 = vadd.f32 %v418, %v794
      %v796 = vpop.f32.mrf.mxu0
      %v797 = vadd.f32 %v418, %v796
      %798 = vmatmul.bf16.gmra.mxu0 %v574
      %v799 = vpop.f32.mrf.mxu0
      %v800 = vadd.f32 %v418, %v799
      %v801 = vpop.f32.mrf.mxu0
      %v802 = vadd.f32 %v418, %v801
      %803 = vmatmul.bf16.gmra.mxu0 %v575
      %v804 = vpop.f32.mrf.mxu0
      %v805 = vadd.f32 %v418, %v804
      %v806 = vpop.f32.mrf.mxu0
      %v807 = vadd.f32 %v418, %v806
      %808 = vmatmul.bf16.gmra.mxu0 %v576
      %v809 = vpop.f32.mrf.mxu0
      %v810 = vadd.f32 %v418, %v809
      %v811 = vpop.f32.mrf.mxu0
      %v812 = vadd.f32 %v418, %v811
      %813 = vmatmul.bf16.gmra.mxu0 %v577
      %v814 = vpop.f32.mrf.mxu0
      %v815 = vadd.f32 %v418, %v814
      %v816 = vpop.f32.mrf.mxu0
      %v817 = vadd.f32 %v418, %v816
      %818 = vmatmul.bf16.gmra.mxu0 %v578
      %v819 = vpop.f32.mrf.mxu0
      %v820 = vadd.f32 %v418, %v819
      %v821 = vpop.f32.mrf.mxu0
      %v822 = vadd.f32 %v418, %v821
      %823 = vmatmul.bf16.gmra.mxu0 %v579
      %v824 = vpop.f32.mrf.mxu0
      %v825 = vadd.f32 %v418, %v824
      %v826 = vpop.f32.mrf.mxu0
      %v827 = vadd.f32 %v418, %v826
      %828 = vdwg.mxu0
      %v829 = vld [vmem:[#allocation2] sm:$0xff]
      %v830 = vld [vmem:[#allocation2 + $0x8] sm:$0xff]
      %v831 = vld [vmem:[#allocation2 + $0x10] sm:$0xff]
      %v832 = vld [vmem:[#allocation2 + $0x18] sm:$0xff]
      %v833 = vld [vmem:[#allocation2 + $0x20] sm:$0xff]
      %v834 = vld [vmem:[#allocation2 + $0x28] sm:$0xff]
      %v835 = vld [vmem:[#allocation2 + $0x30] sm:$0xff]
      %v836 = vld [vmem:[#allocation2 + $0x38] sm:$0xff]
      %v837 = vld [vmem:[#allocation2 + $0x40] sm:$0xff]
      %v838 = vld [vmem:[#allocation2 + $0x48] sm:$0xff]
      %v839 = vld [vmem:[#allocation2 + $0x50] sm:$0xff]
      %v840 = vld [vmem:[#allocation2 + $0x58] sm:$0xff]
      %v841 = vld [vmem:[#allocation2 + $0x60] sm:$0xff]
      %v842 = vld [vmem:[#allocation2 + $0x68] sm:$0xff]
      %v843 = vld [vmem:[#allocation2 + $0x70] sm:$0xff]
      %v844 = vld [vmem:[#allocation2 + $0x78] sm:$0xff]
      %v845 = vld [vmem:[#allocation2 + $0x80] sm:$0xff]
      %v846 = vld [vmem:[#allocation2 + $0x88] sm:$0xff]
      %v847 = vld [vmem:[#allocation2 + $0x90] sm:$0xff]
      %v848 = vld [vmem:[#allocation2 + $0x98] sm:$0xff]
      %v849 = vld [vmem:[#allocation2 + $0xa0] sm:$0xff]
      %v850 = vld [vmem:[#allocation2 + $0xa8] sm:$0xff]
      %v851 = vld [vmem:[#allocation2 + $0xb0] sm:$0xff]
      %v852 = vld [vmem:[#allocation2 + $0xb8] sm:$0xff]
      %v853 = vld [vmem:[#allocation2 + $0xc0] sm:$0xff]
      %v854 = vld [vmem:[#allocation2 + $0xc8] sm:$0xff]
      %v855 = vld [vmem:[#allocation2 + $0xd0] sm:$0xff]
      %v856 = vld [vmem:[#allocation2 + $0xd8] sm:$0xff]
      %v857 = vld [vmem:[#allocation2 + $0xe0] sm:$0xff]
      %v858 = vld [vmem:[#allocation2 + $0xe8] sm:$0xff]
      %v859 = vld [vmem:[#allocation2 + $0xf0] sm:$0xff]
      %v860 = vld [vmem:[#allocation2 + $0xf8] sm:$0xff]
      %v861 = vld [vmem:[%s275] sm:$0xff]
      %v862 = vld [vmem:[%s275 + $0x8] sm:$0xff]
      %v863 = vld [vmem:[%s275 + $0x10] sm:$0xff]
      %v864 = vld [vmem:[%s275 + $0x18] sm:$0xff]
      %v865 = vld [vmem:[%s275 + $0x20] sm:$0xff]
      %v866 = vld [vmem:[%s275 + $0x28] sm:$0xff]
      %v867 = vld [vmem:[%s275 + $0x30] sm:$0xff]
      %v868 = vld [vmem:[%s275 + $0x38] sm:$0xff]
      %v869 = vld [vmem:[%s275 + $0x40] sm:$0xff]
      %v870 = vld [vmem:[%s275 + $0x48] sm:$0xff]
      %v871 = vld [vmem:[%s275 + $0x50] sm:$0xff]
      %v872 = vld [vmem:[%s275 + $0x58] sm:$0xff]
      %v873 = vld [vmem:[%s275 + $0x60] sm:$0xff]
      %v874 = vld [vmem:[%s275 + $0x68] sm:$0xff]
      %v875 = vld [vmem:[%s275 + $0x70] sm:$0xff]
      %v876 = vld [vmem:[%s275 + $0x78] sm:$0xff]
      %v877 = vld [vmem:[%s275 + $0x80] sm:$0xff]
      %v878 = vld [vmem:[%s275 + $0x88] sm:$0xff]
      %v879 = vld [vmem:[%s275 + $0x90] sm:$0xff]
      %v880 = vld [vmem:[%s275 + $0x98] sm:$0xff]
      %v881 = vld [vmem:[%s275 + $0xa0] sm:$0xff]
      %v882 = vld [vmem:[%s275 + $0xa8] sm:$0xff]
      %v883 = vld [vmem:[%s275 + $0xb0] sm:$0xff]
      %v884 = vld [vmem:[%s275 + $0xb8] sm:$0xff]
      %v885 = vld [vmem:[%s275 + $0xc0] sm:$0xff]
      %v886 = vld [vmem:[%s275 + $0xc8] sm:$0xff]
      %v887 = vld [vmem:[%s275 + $0xd0] sm:$0xff]
      %v888 = vld [vmem:[%s275 + $0xd8] sm:$0xff]
      %v889 = vld [vmem:[%s275 + $0xe0] sm:$0xff]
      %v890 = vld [vmem:[%s275 + $0xe8] sm:$0xff]
      %v891 = vld [vmem:[%s275 + $0xf0] sm:$0xff]
      %v892 = vld [vmem:[%s275 + $0xf8] sm:$0xff]
      %v893 = vld [vmem:[%s275 + $0x100] sm:$0xff]
      %v894 = vld [vmem:[%s275 + $0x108] sm:$0xff]
      %v895 = vld [vmem:[%s275 + $0x110] sm:$0xff]
      %v896 = vld [vmem:[%s275 + $0x118] sm:$0xff]
      %v897 = vld [vmem:[%s275 + $0x120] sm:$0xff]
      %v898 = vld [vmem:[%s275 + $0x128] sm:$0xff]
      %v899 = vld [vmem:[%s275 + $0x130] sm:$0xff]
      %v900 = vld [vmem:[%s275 + $0x138] sm:$0xff]
      %v901 = vld [vmem:[%s275 + $0x140] sm:$0xff]
      %v902 = vld [vmem:[%s275 + $0x148] sm:$0xff]
      %v903 = vld [vmem:[%s275 + $0x150] sm:$0xff]
      %v904 = vld [vmem:[%s275 + $0x158] sm:$0xff]
      %v905 = vld [vmem:[%s275 + $0x160] sm:$0xff]
      %v906 = vld [vmem:[%s275 + $0x168] sm:$0xff]
      %v907 = vld [vmem:[%s275 + $0x170] sm:$0xff]
      %v908 = vld [vmem:[%s275 + $0x178] sm:$0xff]
      %v909 = vld [vmem:[%s275 + $0x180] sm:$0xff]
      %v910 = vld [vmem:[%s275 + $0x188] sm:$0xff]
      %v911 = vld [vmem:[%s275 + $0x190] sm:$0xff]
      %v912 = vld [vmem:[%s275 + $0x198] sm:$0xff]
      %v913 = vld [vmem:[%s275 + $0x1a0] sm:$0xff]
      %v914 = vld [vmem:[%s275 + $0x1a8] sm:$0xff]
      %v915 = vld [vmem:[%s275 + $0x1b0] sm:$0xff]
      %v916 = vld [vmem:[%s275 + $0x1b8] sm:$0xff]
      %v917 = vld [vmem:[%s275 + $0x1c0] sm:$0xff]
      %v918 = vld [vmem:[%s275 + $0x1c8] sm:$0xff]
      %v919 = vld [vmem:[%s275 + $0x1d0] sm:$0xff]
      %v920 = vld [vmem:[%s275 + $0x1d8] sm:$0xff]
      %v921 = vld [vmem:[%s275 + $0x1e0] sm:$0xff]
      %v922 = vld [vmem:[%s275 + $0x1e8] sm:$0xff]
      %v923 = vld [vmem:[%s275 + $0x1f0] sm:$0xff]
      %v924 = vld [vmem:[%s275 + $0x1f8] sm:$0xff]
      %v925 = vpack.c.bf16 %v672, %v670
      %v926 = vpack.c.bf16 %v677, %v675
      %v927 = vpack.c.bf16 %v682, %v680
      %v928 = vpack.c.bf16 %v687, %v685
      %v929 = vpack.c.bf16 %v692, %v690
      %v930 = vpack.c.bf16 %v697, %v695
      %v931 = vpack.c.bf16 %v702, %v700
      %v932 = vpack.c.bf16 %v707, %v705
      %v933 = vpack.c.bf16 %v712, %v710
      %v934 = vpack.c.bf16 %v717, %v715
      %v935 = vpack.c.bf16 %v722, %v720
      %v936 = vpack.c.bf16 %v727, %v725
      %v937 = vpack.c.bf16 %v732, %v730
      %v938 = vpack.c.bf16 %v737, %v735
      %v939 = vpack.c.bf16 %v742, %v740
      %v940 = vpack.c.bf16 %v747, %v745
      %v941 = vpack.c.bf16 %v752, %v750
      %v942 = vpack.c.bf16 %v757, %v755
      %v943 = vpack.c.bf16 %v762, %v760
      %v944 = vpack.c.bf16 %v767, %v765
      %v945 = vpack.c.bf16 %v772, %v770
      %v946 = vpack.c.bf16 %v777, %v775
      %v947 = vpack.c.bf16 %v782, %v780
      %v948 = vpack.c.bf16 %v787, %v785
      %v949 = vpack.c.bf16 %v792, %v790
      %v950 = vpack.c.bf16 %v797, %v795
      %v951 = vpack.c.bf16 %v802, %v800
      %v952 = vpack.c.bf16 %v807, %v805
      %v953 = vpack.c.bf16 %v812, %v810
      %v954 = vpack.c.bf16 %v817, %v815
      %v955 = vpack.c.bf16 %v822, %v820
      %v956 = vpack.c.bf16 %v827, %v825
      %v1021 = vunpack.c.l.b16 %v861
      %v1022 = vunpack.c.h.b16 %v861
      %v1023 = vunpack.c.l.b16 %v862
      %v1024 = vunpack.c.h.b16 %v862
      %v1025 = vunpack.c.l.b16 %v863
      %v1026 = vunpack.c.h.b16 %v863
      %v1027 = vunpack.c.l.b16 %v864
      %v1028 = vunpack.c.h.b16 %v864
      %v1029 = vunpack.c.l.b16 %v865
      %v1030 = vunpack.c.h.b16 %v865
      %v1031 = vunpack.c.l.b16 %v866
      %v1032 = vunpack.c.h.b16 %v866
      %v1033 = vunpack.c.l.b16 %v867
      %v1034 = vunpack.c.h.b16 %v867
      %v1035 = vunpack.c.l.b16 %v868
      %v1036 = vunpack.c.h.b16 %v868
      %v1037 = vunpack.c.l.b16 %v869
      %v1038 = vunpack.c.h.b16 %v869
      %v1039 = vunpack.c.l.b16 %v870
      %v1040 = vunpack.c.h.b16 %v870
      %v1041 = vunpack.c.l.b16 %v871
      %v1042 = vunpack.c.h.b16 %v871
      %v1043 = vunpack.c.l.b16 %v872
      %v1044 = vunpack.c.h.b16 %v872
      %v1045 = vunpack.c.l.b16 %v873
      %v1046 = vunpack.c.h.b16 %v873
      %v1047 = vunpack.c.l.b16 %v874
      %v1048 = vunpack.c.h.b16 %v874
      %v1049 = vunpack.c.l.b16 %v875
      %v1050 = vunpack.c.h.b16 %v875
      %v1051 = vunpack.c.l.b16 %v876
      %v1052 = vunpack.c.h.b16 %v876
      %v1053 = vunpack.c.l.b16 %v877
      %v1054 = vunpack.c.h.b16 %v877
      %v1055 = vunpack.c.l.b16 %v878
      %v1056 = vunpack.c.h.b16 %v878
      %v1057 = vunpack.c.l.b16 %v879
      %v1058 = vunpack.c.h.b16 %v879
      %v1059 = vunpack.c.l.b16 %v880
      %v1060 = vunpack.c.h.b16 %v880
      %v1061 = vunpack.c.l.b16 %v881
      %v1062 = vunpack.c.h.b16 %v881
      %v1063 = vunpack.c.l.b16 %v882
      %v1064 = vunpack.c.h.b16 %v882
      %v1065 = vunpack.c.l.b16 %v883
      %v1066 = vunpack.c.h.b16 %v883
      %v1067 = vunpack.c.l.b16 %v884
      %v1068 = vunpack.c.h.b16 %v884
      %v1069 = vunpack.c.l.b16 %v885
      %v1070 = vunpack.c.h.b16 %v885
      %v1071 = vunpack.c.l.b16 %v886
      %v1072 = vunpack.c.h.b16 %v886
      %v1073 = vunpack.c.l.b16 %v887
      %v1074 = vunpack.c.h.b16 %v887
      %v1075 = vunpack.c.l.b16 %v888
      %v1076 = vunpack.c.h.b16 %v888
      %v1077 = vunpack.c.l.b16 %v889
      %v1078 = vunpack.c.h.b16 %v889
      %v1079 = vunpack.c.l.b16 %v890
      %v1080 = vunpack.c.h.b16 %v890
      %v1081 = vunpack.c.l.b16 %v891
      %v1082 = vunpack.c.h.b16 %v891
      %v1083 = vunpack.c.l.b16 %v892
      %v1084 = vunpack.c.h.b16 %v892
      %v1085 = vunpack.c.l.b16 %v893
      %v1086 = vunpack.c.h.b16 %v893
      %v1087 = vunpack.c.l.b16 %v894
      %v1088 = vunpack.c.h.b16 %v894
      %v1089 = vunpack.c.l.b16 %v895
      %v1090 = vunpack.c.h.b16 %v895
      %v1091 = vunpack.c.l.b16 %v896
      %v1092 = vunpack.c.h.b16 %v896
      %v1093 = vunpack.c.l.b16 %v897
      %v1094 = vunpack.c.h.b16 %v897
      %v1095 = vunpack.c.l.b16 %v898
      %v1096 = vunpack.c.h.b16 %v898
      %v1097 = vunpack.c.l.b16 %v899
      %v1098 = vunpack.c.h.b16 %v899
      %v1099 = vunpack.c.l.b16 %v900
      %v1100 = vunpack.c.h.b16 %v900
      %v1101 = vunpack.c.l.b16 %v901
      %v1102 = vunpack.c.h.b16 %v901
      %v1103 = vunpack.c.l.b16 %v902
      %v1104 = vunpack.c.h.b16 %v902
      %v1105 = vunpack.c.l.b16 %v903
      %v1106 = vunpack.c.h.b16 %v903
      %v1107 = vunpack.c.l.b16 %v904
      %v1108 = vunpack.c.h.b16 %v904
      %v1109 = vunpack.c.l.b16 %v905
      %v1110 = vunpack.c.h.b16 %v905
      %v1111 = vunpack.c.l.b16 %v906
      %v1112 = vunpack.c.h.b16 %v906
      %v1113 = vunpack.c.l.b16 %v907
      %v1114 = vunpack.c.h.b16 %v907
      %v1115 = vunpack.c.l.b16 %v908
      %v1116 = vunpack.c.h.b16 %v908
      %v1117 = vunpack.c.l.b16 %v909
      %v1118 = vunpack.c.h.b16 %v909
      %v1119 = vunpack.c.l.b16 %v910
      %v1120 = vunpack.c.h.b16 %v910
      %v1121 = vunpack.c.l.b16 %v911
      %v1122 = vunpack.c.h.b16 %v911
      %v1123 = vunpack.c.l.b16 %v912
      %v1124 = vunpack.c.h.b16 %v912
      %v1125 = vunpack.c.l.b16 %v913
      %v1126 = vunpack.c.h.b16 %v913
      %v1127 = vunpack.c.l.b16 %v914
      %v1128 = vunpack.c.h.b16 %v914
      %v1129 = vunpack.c.l.b16 %v915
      %v1130 = vunpack.c.h.b16 %v915
      %v1131 = vunpack.c.l.b16 %v916
      %v1132 = vunpack.c.h.b16 %v916
      %v1133 = vunpack.c.l.b16 %v917
      %v1134 = vunpack.c.h.b16 %v917
      %v1135 = vunpack.c.l.b16 %v918
      %v1136 = vunpack.c.h.b16 %v918
      %v1137 = vunpack.c.l.b16 %v919
      %v1138 = vunpack.c.h.b16 %v919
      %v1139 = vunpack.c.l.b16 %v920
      %v1140 = vunpack.c.h.b16 %v920
      %v1141 = vunpack.c.l.b16 %v921
      %v1142 = vunpack.c.h.b16 %v921
      %v1143 = vunpack.c.l.b16 %v922
      %v1144 = vunpack.c.h.b16 %v922
      %v1145 = vunpack.c.l.b16 %v923
      %v1146 = vunpack.c.h.b16 %v923
      %v1147 = vunpack.c.l.b16 %v924
      %v1148 = vunpack.c.h.b16 %v924
      %v1149 = vpack.c.b16 %v1025, %v1021
      %v1150 = vpack.c.b16 %v1026, %v1022
      %v1151 = vpack.c.b16 %v1027, %v1023
      %v1152 = vpack.c.b16 %v1028, %v1024
      %v1153 = vpack.c.b16 %v1033, %v1029
      %v1154 = vpack.c.b16 %v1034, %v1030
      %v1155 = vpack.c.b16 %v1035, %v1031
      %v1156 = vpack.c.b16 %v1036, %v1032
      %v1157 = vpack.c.b16 %v1041, %v1037
      %v1158 = vpack.c.b16 %v1042, %v1038
      %v1159 = vpack.c.b16 %v1043, %v1039
      %v1160 = vpack.c.b16 %v1044, %v1040
      %v1161 = vpack.c.b16 %v1049, %v1045
      %v1162 = vpack.c.b16 %v1050, %v1046
      %v1163 = vpack.c.b16 %v1051, %v1047
      %v1164 = vpack.c.b16 %v1052, %v1048
      %v1165 = vpack.c.b16 %v1057, %v1053
      %v1166 = vpack.c.b16 %v1058, %v1054
      %v1167 = vpack.c.b16 %v1059, %v1055
      %v1168 = vpack.c.b16 %v1060, %v1056
      %v1169 = vpack.c.b16 %v1065, %v1061
      %v1170 = vpack.c.b16 %v1066, %v1062
      %v1171 = vpack.c.b16 %v1067, %v1063
      %v1172 = vpack.c.b16 %v1068, %v1064
      %v1173 = vpack.c.b16 %v1073, %v1069
      %v1174 = vpack.c.b16 %v1074, %v1070
      %v1175 = vpack.c.b16 %v1075, %v1071
      %v1176 = vpack.c.b16 %v1076, %v1072
      %v1177 = vpack.c.b16 %v1081, %v1077
      %v1178 = vpack.c.b16 %v1082, %v1078
      %v1179 = vpack.c.b16 %v1083, %v1079
      %v1180 = vpack.c.b16 %v1084, %v1080
      %v1181 = vpack.c.b16 %v1089, %v1085
      %v1182 = vpack.c.b16 %v1090, %v1086
      %v1183 = vpack.c.b16 %v1091, %v1087
      %v1184 = vpack.c.b16 %v1092, %v1088
      %v1185 = vpack.c.b16 %v1097, %v1093
      %v1186 = vpack.c.b16 %v1098, %v1094
      %v1187 = vpack.c.b16 %v1099, %v1095
      %v1188 = vpack.c.b16 %v1100, %v1096
      %v1189 = vpack.c.b16 %v1105, %v1101
      %v1190 = vpack.c.b16 %v1106, %v1102
      %v1191 = vpack.c.b16 %v1107, %v1103
      %v1192 = vpack.c.b16 %v1108, %v1104
      %v1193 = vpack.c.b16 %v1113, %v1109
      %v1194 = vpack.c.b16 %v1114, %v1110
      %v1195 = vpack.c.b16 %v1115, %v1111
      %v1196 = vpack.c.b16 %v1116, %v1112
      %v1197 = vpack.c.b16 %v1121, %v1117
      %v1198 = vpack.c.b16 %v1122, %v1118
      %v1199 = vpack.c.b16 %v1123, %v1119
      %v1200 = vpack.c.b16 %v1124, %v1120
      %v1201 = vpack.c.b16 %v1129, %v1125
      %v1202 = vpack.c.b16 %v1130, %v1126
      %v1203 = vpack.c.b16 %v1131, %v1127
      %v1204 = vpack.c.b16 %v1132, %v1128
      %v1205 = vpack.c.b16 %v1137, %v1133
      %v1206 = vpack.c.b16 %v1138, %v1134
      %v1207 = vpack.c.b16 %v1139, %v1135
      %v1208 = vpack.c.b16 %v1140, %v1136
      %v1209 = vpack.c.b16 %v1145, %v1141
      %v1210 = vpack.c.b16 %v1146, %v1142
      %v1211 = vpack.c.b16 %v1147, %v1143
      %v1212 = vpack.c.b16 %v1148, %v1144
      %1277 = vmatpush.bf16.msra.mxu0 %v932
      %1278 = vmatpush.bf16.msra.mxu0 %v931
      %1279 = vmatpush.bf16.msra.mxu0 %v930
      %1280 = vmatpush.bf16.msra.mxu0 %v929
      %1281 = vmatpush.bf16.msra.mxu0 %v928
      %1282 = vmatpush.bf16.msra.mxu0 %v927
      %1283 = vmatpush.bf16.msra.mxu0 %v926
      %1284 = vmatpush.bf16.msra.mxu0 %v925
      %1285 = vmatmul.bf16.gmra.mxu0 %v1149
      %v1286 = vpop.f32.mrf.mxu0
      %v1287 = vadd.f32 0.0, %v1286
      %v1288 = vpop.f32.mrf.mxu0
      %v1289 = vadd.f32 0.0, %v1288
      %1290 = vmatmul.bf16.gmra.mxu0 %v1153
      %v1291 = vpop.f32.mrf.mxu0
      %v1292 = vadd.f32 0.0, %v1291
      %v1293 = vpop.f32.mrf.mxu0
      %v1294 = vadd.f32 0.0, %v1293
      %1295 = vmatmul.bf16.gmra.mxu0 %v1157
      %v1296 = vpop.f32.mrf.mxu0
      %v1297 = vadd.f32 0.0, %v1296
      %v1298 = vpop.f32.mrf.mxu0
      %v1299 = vadd.f32 0.0, %v1298
      %1300 = vmatmul.bf16.gmra.mxu0 %v1161
      %v1301 = vpop.f32.mrf.mxu0
      %v1302 = vadd.f32 0.0, %v1301
      %v1303 = vpop.f32.mrf.mxu0
      %v1304 = vadd.f32 0.0, %v1303
      %1305 = vmatmul.bf16.gmra.mxu0 %v1165
      %v1306 = vpop.f32.mrf.mxu0
      %v1307 = vadd.f32 0.0, %v1306
      %v1308 = vpop.f32.mrf.mxu0
      %v1309 = vadd.f32 0.0, %v1308
      %1310 = vmatmul.bf16.gmra.mxu0 %v1169
      %v1311 = vpop.f32.mrf.mxu0
      %v1312 = vadd.f32 0.0, %v1311
      %v1313 = vpop.f32.mrf.mxu0
      %v1314 = vadd.f32 0.0, %v1313
      %1315 = vmatmul.bf16.gmra.mxu0 %v1173
      %v1316 = vpop.f32.mrf.mxu0
      %v1317 = vadd.f32 0.0, %v1316
      %v1318 = vpop.f32.mrf.mxu0
      %v1319 = vadd.f32 0.0, %v1318
      %1320 = vmatmul.bf16.gmra.mxu0 %v1177
      %v1321 = vpop.f32.mrf.mxu0
      %v1322 = vadd.f32 0.0, %v1321
      %v1323 = vpop.f32.mrf.mxu0
      %v1324 = vadd.f32 0.0, %v1323
      %1325 = vmatmul.bf16.gmra.mxu0 %v1181
      %v1326 = vpop.f32.mrf.mxu0
      %v1327 = vadd.f32 0.0, %v1326
      %v1328 = vpop.f32.mrf.mxu0
      %v1329 = vadd.f32 0.0, %v1328
      %1330 = vmatmul.bf16.gmra.mxu0 %v1185
      %v1331 = vpop.f32.mrf.mxu0
      %v1332 = vadd.f32 0.0, %v1331
      %v1333 = vpop.f32.mrf.mxu0
      %v1334 = vadd.f32 0.0, %v1333
      %1335 = vmatmul.bf16.gmra.mxu0 %v1189
      %v1336 = vpop.f32.mrf.mxu0
      %v1337 = vadd.f32 0.0, %v1336
      %v1338 = vpop.f32.mrf.mxu0
      %v1339 = vadd.f32 0.0, %v1338
      %1340 = vmatmul.bf16.gmra.mxu0 %v1193
      %v1341 = vpop.f32.mrf.mxu0
      %v1342 = vadd.f32 0.0, %v1341
      %v1343 = vpop.f32.mrf.mxu0
      %v1344 = vadd.f32 0.0, %v1343
      %1345 = vmatmul.bf16.gmra.mxu0 %v1197
      %v1346 = vpop.f32.mrf.mxu0
      %v1347 = vadd.f32 0.0, %v1346
      %v1348 = vpop.f32.mrf.mxu0
      %v1349 = vadd.f32 0.0, %v1348
      %1350 = vmatmul.bf16.gmra.mxu0 %v1201
      %v1351 = vpop.f32.mrf.mxu0
      %v1352 = vadd.f32 0.0, %v1351
      %v1353 = vpop.f32.mrf.mxu0
      %v1354 = vadd.f32 0.0, %v1353
      %1355 = vmatmul.bf16.gmra.mxu0 %v1205
      %v1356 = vpop.f32.mrf.mxu0
      %v1357 = vadd.f32 0.0, %v1356
      %v1358 = vpop.f32.mrf.mxu0
      %v1359 = vadd.f32 0.0, %v1358
      %1360 = vmatmul.bf16.gmra.mxu0 %v1209
      %v1361 = vpop.f32.mrf.mxu0
      %v1362 = vadd.f32 0.0, %v1361
      %v1363 = vpop.f32.mrf.mxu0
      %v1364 = vadd.f32 0.0, %v1363
      %1365 = vdwg.mxu0
      %1366 = vmatpush.bf16.msra.mxu0 %v940
      %1367 = vmatpush.bf16.msra.mxu0 %v939
      %1368 = vmatpush.bf16.msra.mxu0 %v938
      %1369 = vmatpush.bf16.msra.mxu0 %v937
      %1370 = vmatpush.bf16.msra.mxu0 %v936
      %1371 = vmatpush.bf16.msra.mxu0 %v935
      %1372 = vmatpush.bf16.msra.mxu0 %v934
      %1373 = vmatpush.bf16.msra.mxu0 %v933
      %1374 = vmatmul.bf16.gmra.mxu0 %v1150
      %v1375 = vpop.f32.mrf.mxu0
      %v1376 = vadd.f32 %v1287, %v1375
      %v1377 = vpop.f32.mrf.mxu0
      %v1378 = vadd.f32 %v1289, %v1377
      %1379 = vmatmul.bf16.gmra.mxu0 %v1154
      %v1380 = vpop.f32.mrf.mxu0
      %v1381 = vadd.f32 %v1292, %v1380
      %v1382 = vpop.f32.mrf.mxu0
      %v1383 = vadd.f32 %v1294, %v1382
      %1384 = vmatmul.bf16.gmra.mxu0 %v1158
      %v1385 = vpop.f32.mrf.mxu0
      %v1386 = vadd.f32 %v1297, %v1385
      %v1387 = vpop.f32.mrf.mxu0
      %v1388 = vadd.f32 %v1299, %v1387
      %1389 = vmatmul.bf16.gmra.mxu0 %v1162
      %v1390 = vpop.f32.mrf.mxu0
      %v1391 = vadd.f32 %v1302, %v1390
      %v1392 = vpop.f32.mrf.mxu0
      %v1393 = vadd.f32 %v1304, %v1392
      %1394 = vmatmul.bf16.gmra.mxu0 %v1166
      %v1395 = vpop.f32.mrf.mxu0
      %v1396 = vadd.f32 %v1307, %v1395
      %v1397 = vpop.f32.mrf.mxu0
      %v1398 = vadd.f32 %v1309, %v1397
      %1399 = vmatmul.bf16.gmra.mxu0 %v1170
      %v1400 = vpop.f32.mrf.mxu0
      %v1401 = vadd.f32 %v1312, %v1400
      %v1402 = vpop.f32.mrf.mxu0
      %v1403 = vadd.f32 %v1314, %v1402
      %1404 = vmatmul.bf16.gmra.mxu0 %v1174
      %v1405 = vpop.f32.mrf.mxu0
      %v1406 = vadd.f32 %v1317, %v1405
      %v1407 = vpop.f32.mrf.mxu0
      %v1408 = vadd.f32 %v1319, %v1407
      %1409 = vmatmul.bf16.gmra.mxu0 %v1178
      %v1410 = vpop.f32.mrf.mxu0
      %v1411 = vadd.f32 %v1322, %v1410
      %v1412 = vpop.f32.mrf.mxu0
      %v1413 = vadd.f32 %v1324, %v1412
      %1414 = vmatmul.bf16.gmra.mxu0 %v1182
      %v1415 = vpop.f32.mrf.mxu0
      %v1416 = vadd.f32 %v1327, %v1415
      %v1417 = vpop.f32.mrf.mxu0
      %v1418 = vadd.f32 %v1329, %v1417
      %1419 = vmatmul.bf16.gmra.mxu0 %v1186
      %v1420 = vpop.f32.mrf.mxu0
      %v1421 = vadd.f32 %v1332, %v1420
      %v1422 = vpop.f32.mrf.mxu0
      %v1423 = vadd.f32 %v1334, %v1422
      %1424 = vmatmul.bf16.gmra.mxu0 %v1190
      %v1425 = vpop.f32.mrf.mxu0
      %v1426 = vadd.f32 %v1337, %v1425
      %v1427 = vpop.f32.mrf.mxu0
      %v1428 = vadd.f32 %v1339, %v1427
      %1429 = vmatmul.bf16.gmra.mxu0 %v1194
      %v1430 = vpop.f32.mrf.mxu0
      %v1431 = vadd.f32 %v1342, %v1430
      %v1432 = vpop.f32.mrf.mxu0
      %v1433 = vadd.f32 %v1344, %v1432
      %1434 = vmatmul.bf16.gmra.mxu0 %v1198
      %v1435 = vpop.f32.mrf.mxu0
      %v1436 = vadd.f32 %v1347, %v1435
      %v1437 = vpop.f32.mrf.mxu0
      %v1438 = vadd.f32 %v1349, %v1437
      %1439 = vmatmul.bf16.gmra.mxu0 %v1202
      %v1440 = vpop.f32.mrf.mxu0
      %v1441 = vadd.f32 %v1352, %v1440
      %v1442 = vpop.f32.mrf.mxu0
      %v1443 = vadd.f32 %v1354, %v1442
      %1444 = vmatmul.bf16.gmra.mxu0 %v1206
      %v1445 = vpop.f32.mrf.mxu0
      %v1446 = vadd.f32 %v1357, %v1445
      %v1447 = vpop.f32.mrf.mxu0
      %v1448 = vadd.f32 %v1359, %v1447
      %1449 = vmatmul.bf16.gmra.mxu0 %v1210
      %v1450 = vpop.f32.mrf.mxu0
      %v1451 = vadd.f32 %v1362, %v1450
      %v1452 = vpop.f32.mrf.mxu0
      %v1453 = vadd.f32 %v1364, %v1452
      %1454 = vdwg.mxu0
      %1455 = vmatpush.bf16.msra.mxu0 %v948
      %1456 = vmatpush.bf16.msra.mxu0 %v947
      %1457 = vmatpush.bf16.msra.mxu0 %v946
      %1458 = vmatpush.bf16.msra.mxu0 %v945
      %1459 = vmatpush.bf16.msra.mxu0 %v944
      %1460 = vmatpush.bf16.msra.mxu0 %v943
      %1461 = vmatpush.bf16.msra.mxu0 %v942
      %1462 = vmatpush.bf16.msra.mxu0 %v941
      %1463 = vmatmul.bf16.gmra.mxu0 %v1151
      %v1464 = vpop.f32.mrf.mxu0
      %v1465 = vadd.f32 %v1376, %v1464
      %v1466 = vpop.f32.mrf.mxu0
      %v1467 = vadd.f32 %v1378, %v1466
      %1468 = vmatmul.bf16.gmra.mxu0 %v1155
      %v1469 = vpop.f32.mrf.mxu0
      %v1470 = vadd.f32 %v1381, %v1469
      %v1471 = vpop.f32.mrf.mxu0
      %v1472 = vadd.f32 %v1383, %v1471
      %1473 = vmatmul.bf16.gmra.mxu0 %v1159
      %v1474 = vpop.f32.mrf.mxu0
      %v1475 = vadd.f32 %v1386, %v1474
      %v1476 = vpop.f32.mrf.mxu0
      %v1477 = vadd.f32 %v1388, %v1476
      %1478 = vmatmul.bf16.gmra.mxu0 %v1163
      %v1479 = vpop.f32.mrf.mxu0
      %v1480 = vadd.f32 %v1391, %v1479
      %v1481 = vpop.f32.mrf.mxu0
      %v1482 = vadd.f32 %v1393, %v1481
      %1483 = vmatmul.bf16.gmra.mxu0 %v1167
      %v1484 = vpop.f32.mrf.mxu0
      %v1485 = vadd.f32 %v1396, %v1484
      %v1486 = vpop.f32.mrf.mxu0
      %v1487 = vadd.f32 %v1398, %v1486
      %1488 = vmatmul.bf16.gmra.mxu0 %v1171
      %v1489 = vpop.f32.mrf.mxu0
      %v1490 = vadd.f32 %v1401, %v1489
      %v1491 = vpop.f32.mrf.mxu0
      %v1492 = vadd.f32 %v1403, %v1491
      %1493 = vmatmul.bf16.gmra.mxu0 %v1175
      %v1494 = vpop.f32.mrf.mxu0
      %v1495 = vadd.f32 %v1406, %v1494
      %v1496 = vpop.f32.mrf.mxu0
      %v1497 = vadd.f32 %v1408, %v1496
      %1498 = vmatmul.bf16.gmra.mxu0 %v1179
      %v1499 = vpop.f32.mrf.mxu0
      %v1500 = vadd.f32 %v1411, %v1499
      %v1501 = vpop.f32.mrf.mxu0
      %v1502 = vadd.f32 %v1413, %v1501
      %1503 = vmatmul.bf16.gmra.mxu0 %v1183
      %v1504 = vpop.f32.mrf.mxu0
      %v1505 = vadd.f32 %v1416, %v1504
      %v1506 = vpop.f32.mrf.mxu0
      %v1507 = vadd.f32 %v1418, %v1506
      %1508 = vmatmul.bf16.gmra.mxu0 %v1187
      %v1509 = vpop.f32.mrf.mxu0
      %v1510 = vadd.f32 %v1421, %v1509
      %v1511 = vpop.f32.mrf.mxu0
      %v1512 = vadd.f32 %v1423, %v1511
      %1513 = vmatmul.bf16.gmra.mxu0 %v1191
      %v1514 = vpop.f32.mrf.mxu0
      %v1515 = vadd.f32 %v1426, %v1514
      %v1516 = vpop.f32.mrf.mxu0
      %v1517 = vadd.f32 %v1428, %v1516
      %1518 = vmatmul.bf16.gmra.mxu0 %v1195
      %v1519 = vpop.f32.mrf.mxu0
      %v1520 = vadd.f32 %v1431, %v1519
      %v1521 = vpop.f32.mrf.mxu0
      %v1522 = vadd.f32 %v1433, %v1521
      %1523 = vmatmul.bf16.gmra.mxu0 %v1199
      %v1524 = vpop.f32.mrf.mxu0
      %v1525 = vadd.f32 %v1436, %v1524
      %v1526 = vpop.f32.mrf.mxu0
      %v1527 = vadd.f32 %v1438, %v1526
      %1528 = vmatmul.bf16.gmra.mxu0 %v1203
      %v1529 = vpop.f32.mrf.mxu0
      %v1530 = vadd.f32 %v1441, %v1529
      %v1531 = vpop.f32.mrf.mxu0
      %v1532 = vadd.f32 %v1443, %v1531
      %1533 = vmatmul.bf16.gmra.mxu0 %v1207
      %v1534 = vpop.f32.mrf.mxu0
      %v1535 = vadd.f32 %v1446, %v1534
      %v1536 = vpop.f32.mrf.mxu0
      %v1537 = vadd.f32 %v1448, %v1536
      %1538 = vmatmul.bf16.gmra.mxu0 %v1211
      %v1539 = vpop.f32.mrf.mxu0
      %v1540 = vadd.f32 %v1451, %v1539
      %v1541 = vpop.f32.mrf.mxu0
      %v1542 = vadd.f32 %v1453, %v1541
      %1543 = vdwg.mxu0
      %1544 = vmatpush.bf16.msra.mxu0 %v956
      %1545 = vmatpush.bf16.msra.mxu0 %v955
      %1546 = vmatpush.bf16.msra.mxu0 %v954
      %1547 = vmatpush.bf16.msra.mxu0 %v953
      %1548 = vmatpush.bf16.msra.mxu0 %v952
      %1549 = vmatpush.bf16.msra.mxu0 %v951
      %1550 = vmatpush.bf16.msra.mxu0 %v950
      %1551 = vmatpush.bf16.msra.mxu0 %v949
      %1552 = vmatmul.bf16.gmra.mxu0 %v1152
      %v1553 = vpop.f32.mrf.mxu0
      %v1554 = vadd.f32 %v1465, %v1553
      %v1555 = vpop.f32.mrf.mxu0
      %v1556 = vadd.f32 %v1467, %v1555
      %1557 = vmatmul.bf16.gmra.mxu0 %v1156
      %v1558 = vpop.f32.mrf.mxu0
      %v1559 = vadd.f32 %v1470, %v1558
      %v1560 = vpop.f32.mrf.mxu0
      %v1561 = vadd.f32 %v1472, %v1560
      %1562 = vmatmul.bf16.gmra.mxu0 %v1160
      %v1563 = vpop.f32.mrf.mxu0
      %v1564 = vadd.f32 %v1475, %v1563
      %v1565 = vpop.f32.mrf.mxu0
      %v1566 = vadd.f32 %v1477, %v1565
      %1567 = vmatmul.bf16.gmra.mxu0 %v1164
      %v1568 = vpop.f32.mrf.mxu0
      %v1569 = vadd.f32 %v1480, %v1568
      %v1570 = vpop.f32.mrf.mxu0
      %v1571 = vadd.f32 %v1482, %v1570
      %1572 = vmatmul.bf16.gmra.mxu0 %v1168
      %v1573 = vpop.f32.mrf.mxu0
      %v1574 = vadd.f32 %v1485, %v1573
      %v1575 = vpop.f32.mrf.mxu0
      %v1576 = vadd.f32 %v1487, %v1575
      %1577 = vmatmul.bf16.gmra.mxu0 %v1172
      %v1578 = vpop.f32.mrf.mxu0
      %v1579 = vadd.f32 %v1490, %v1578
      %v1580 = vpop.f32.mrf.mxu0
      %v1581 = vadd.f32 %v1492, %v1580
      %1582 = vmatmul.bf16.gmra.mxu0 %v1176
      %v1583 = vpop.f32.mrf.mxu0
      %v1584 = vadd.f32 %v1495, %v1583
      %v1585 = vpop.f32.mrf.mxu0
      %v1586 = vadd.f32 %v1497, %v1585
      %1587 = vmatmul.bf16.gmra.mxu0 %v1180
      %v1588 = vpop.f32.mrf.mxu0
      %v1589 = vadd.f32 %v1500, %v1588
      %v1590 = vpop.f32.mrf.mxu0
      %v1591 = vadd.f32 %v1502, %v1590
      %1592 = vmatmul.bf16.gmra.mxu0 %v1184
      %v1593 = vpop.f32.mrf.mxu0
      %v1594 = vadd.f32 %v1505, %v1593
      %v1595 = vpop.f32.mrf.mxu0
      %v1596 = vadd.f32 %v1507, %v1595
      %1597 = vmatmul.bf16.gmra.mxu0 %v1188
      %v1598 = vpop.f32.mrf.mxu0
      %v1599 = vadd.f32 %v1510, %v1598
      %v1600 = vpop.f32.mrf.mxu0
      %v1601 = vadd.f32 %v1512, %v1600
      %1602 = vmatmul.bf16.gmra.mxu0 %v1192
      %v1603 = vpop.f32.mrf.mxu0
      %v1604 = vadd.f32 %v1515, %v1603
      %v1605 = vpop.f32.mrf.mxu0
      %v1606 = vadd.f32 %v1517, %v1605
      %1607 = vmatmul.bf16.gmra.mxu0 %v1196
      %v1608 = vpop.f32.mrf.mxu0
      %v1609 = vadd.f32 %v1520, %v1608
      %v1610 = vpop.f32.mrf.mxu0
      %v1611 = vadd.f32 %v1522, %v1610
      %1612 = vmatmul.bf16.gmra.mxu0 %v1200
      %v1613 = vpop.f32.mrf.mxu0
      %v1614 = vadd.f32 %v1525, %v1613
      %v1615 = vpop.f32.mrf.mxu0
      %v1616 = vadd.f32 %v1527, %v1615
      %1617 = vmatmul.bf16.gmra.mxu0 %v1204
      %v1618 = vpop.f32.mrf.mxu0
      %v1619 = vadd.f32 %v1530, %v1618
      %v1620 = vpop.f32.mrf.mxu0
      %v1621 = vadd.f32 %v1532, %v1620
      %1622 = vmatmul.bf16.gmra.mxu0 %v1208
      %v1623 = vpop.f32.mrf.mxu0
      %v1624 = vadd.f32 %v1535, %v1623
      %v1625 = vpop.f32.mrf.mxu0
      %v1626 = vadd.f32 %v1537, %v1625
      %1627 = vmatmul.bf16.gmra.mxu0 %v1212
      %v1628 = vpop.f32.mrf.mxu0
      %v1629 = vadd.f32 %v1540, %v1628
      %v1630 = vpop.f32.mrf.mxu0
      %v1631 = vadd.f32 %v1542, %v1630
      %1632 = vdwg.mxu0
      %v1633 = vadd.f32 %v829, %v1554
      %v1634 = vadd.f32 %v830, %v1556
      %v1635 = vadd.f32 %v831, %v1559
      %v1636 = vadd.f32 %v832, %v1561
      %v1637 = vadd.f32 %v833, %v1564
      %v1638 = vadd.f32 %v834, %v1566
      %v1639 = vadd.f32 %v835, %v1569
      %v1640 = vadd.f32 %v836, %v1571
      %v1641 = vadd.f32 %v837, %v1574
      %v1642 = vadd.f32 %v838, %v1576
      %v1643 = vadd.f32 %v839, %v1579
      %v1644 = vadd.f32 %v840, %v1581
      %v1645 = vadd.f32 %v841, %v1584
      %v1646 = vadd.f32 %v842, %v1586
      %v1647 = vadd.f32 %v843, %v1589
      %v1648 = vadd.f32 %v844, %v1591
      %v1649 = vadd.f32 %v845, %v1594
      %v1650 = vadd.f32 %v846, %v1596
      %v1651 = vadd.f32 %v847, %v1599
      %v1652 = vadd.f32 %v848, %v1601
      %v1653 = vadd.f32 %v849, %v1604
      %v1654 = vadd.f32 %v850, %v1606
      %v1655 = vadd.f32 %v851, %v1609
      %v1656 = vadd.f32 %v852, %v1611
      %v1657 = vadd.f32 %v853, %v1614
      %v1658 = vadd.f32 %v854, %v1616
      %v1659 = vadd.f32 %v855, %v1619
      %v1660 = vadd.f32 %v856, %v1621
      %v1661 = vadd.f32 %v857, %v1624
      %v1662 = vadd.f32 %v858, %v1626
      %v1663 = vadd.f32 %v859, %v1629
      %v1664 = vadd.f32 %v860, %v1631
      %1665 = vst [vmem:[#allocation2] sm:$0xff] %v1633
      %1666 = vst [vmem:[#allocation2 + $0x8] sm:$0xff] %v1634
      %1667 = vst [vmem:[#allocation2 + $0x10] sm:$0xff] %v1635
      %1668 = vst [vmem:[#allocation2 + $0x18] sm:$0xff] %v1636
      %1669 = vst [vmem:[#allocation2 + $0x20] sm:$0xff] %v1637
      %1670 = vst [vmem:[#allocation2 + $0x28] sm:$0xff] %v1638
      %1671 = vst [vmem:[#allocation2 + $0x30] sm:$0xff] %v1639
      %1672 = vst [vmem:[#allocation2 + $0x38] sm:$0xff] %v1640
      %1673 = vst [vmem:[#allocation2 + $0x40] sm:$0xff] %v1641
      %1674 = vst [vmem:[#allocation2 + $0x48] sm:$0xff] %v1642
      %1675 = vst [vmem:[#allocation2 + $0x50] sm:$0xff] %v1643
      %1676 = vst [vmem:[#allocation2 + $0x58] sm:$0xff] %v1644
      %1677 = vst [vmem:[#allocation2 + $0x60] sm:$0xff] %v1645
      %1678 = vst [vmem:[#allocation2 + $0x68] sm:$0xff] %v1646
      %1679 = vst [vmem:[#allocation2 + $0x70] sm:$0xff] %v1647
      %1680 = vst [vmem:[#allocation2 + $0x78] sm:$0xff] %v1648
      %1681 = vst [vmem:[#allocation2 + $0x80] sm:$0xff] %v1649
      %1682 = vst [vmem:[#allocation2 + $0x88] sm:$0xff] %v1650
      %1683 = vst [vmem:[#allocation2 + $0x90] sm:$0xff] %v1651
      %1684 = vst [vmem:[#allocation2 + $0x98] sm:$0xff] %v1652
      %1685 = vst [vmem:[#allocation2 + $0xa0] sm:$0xff] %v1653
      %1686 = vst [vmem:[#allocation2 + $0xa8] sm:$0xff] %v1654
      %1687 = vst [vmem:[#allocation2 + $0xb0] sm:$0xff] %v1655
      %1688 = vst [vmem:[#allocation2 + $0xb8] sm:$0xff] %v1656
      %1689 = vst [vmem:[#allocation2 + $0xc0] sm:$0xff] %v1657
      %1690 = vst [vmem:[#allocation2 + $0xc8] sm:$0xff] %v1658
      %1691 = vst [vmem:[#allocation2 + $0xd0] sm:$0xff] %v1659
      %1692 = vst [vmem:[#allocation2 + $0xd8] sm:$0xff] %v1660
      %1693 = vst [vmem:[#allocation2 + $0xe0] sm:$0xff] %v1661
      %1694 = vst [vmem:[#allocation2 + $0xe8] sm:$0xff] %v1662
      %1695 = vst [vmem:[#allocation2 + $0xf0] sm:$0xff] %v1663
      %1696 = vst [vmem:[#allocation2 + $0xf8] sm:$0xff] %v1664
      // Predicated region
      $region41: #{gcn1_forward.5} parent=35 // pred_check
        %p1697 = pneg %p300
      $region42: #{gcn1_forward.5} parent=35 // pred_check_branch
        %1699 = sbr.rel (%p1697) target = $region44
      $region43: #{gcn1_forward.5} parent=35 // pred_region
        %v1700 = vld [vmem:[#allocation2] sm:$0xff]
        %v1701 = vld [vmem:[#allocation2 + $0x8] sm:$0xff]
        %v1702 = vld [vmem:[#allocation2 + $0x10] sm:$0xff]
        %v1703 = vld [vmem:[#allocation2 + $0x18] sm:$0xff]
        %v1704 = vld [vmem:[#allocation2 + $0x20] sm:$0xff]
        %v1705 = vld [vmem:[#allocation2 + $0x28] sm:$0xff]
        %v1706 = vld [vmem:[#allocation2 + $0x30] sm:$0xff]
        %v1707 = vld [vmem:[#allocation2 + $0x38] sm:$0xff]
        %v1708 = vld [vmem:[#allocation2 + $0x40] sm:$0xff]
        %v1709 = vld [vmem:[#allocation2 + $0x48] sm:$0xff]
        %v1710 = vld [vmem:[#allocation2 + $0x50] sm:$0xff]
        %v1711 = vld [vmem:[#allocation2 + $0x58] sm:$0xff]
        %v1712 = vld [vmem:[#allocation2 + $0x60] sm:$0xff]
        %v1713 = vld [vmem:[#allocation2 + $0x68] sm:$0xff]
        %v1714 = vld [vmem:[#allocation2 + $0x70] sm:$0xff]
        %v1715 = vld [vmem:[#allocation2 + $0x78] sm:$0xff]
        %v1716 = vld [vmem:[#allocation2 + $0x80] sm:$0xff]
        %v1717 = vld [vmem:[#allocation2 + $0x88] sm:$0xff]
        %v1718 = vld [vmem:[#allocation2 + $0x90] sm:$0xff]
        %v1719 = vld [vmem:[#allocation2 + $0x98] sm:$0xff]
        %v1720 = vld [vmem:[#allocation2 + $0xa0] sm:$0xff]
        %v1721 = vld [vmem:[#allocation2 + $0xa8] sm:$0xff]
        %v1722 = vld [vmem:[#allocation2 + $0xb0] sm:$0xff]
        %v1723 = vld [vmem:[#allocation2 + $0xb8] sm:$0xff]
        %v1724 = vld [vmem:[#allocation2 + $0xc0] sm:$0xff]
        %v1725 = vld [vmem:[#allocation2 + $0xc8] sm:$0xff]
        %v1726 = vld [vmem:[#allocation2 + $0xd0] sm:$0xff]
        %v1727 = vld [vmem:[#allocation2 + $0xd8] sm:$0xff]
        %v1728 = vld [vmem:[#allocation2 + $0xe0] sm:$0xff]
        %v1729 = vld [vmem:[#allocation2 + $0xe8] sm:$0xff]
        %v1730 = vld [vmem:[#allocation2 + $0xf0] sm:$0xff]
        %v1731 = vld [vmem:[#allocation2 + $0xf8] sm:$0xff]
        %v1732 = vlaneseq
        %v1733 = vand.u32 %v1732, 127
        %vm1734 = vcmp.lt.s32.totalorder %v1733, 8
        %v1735 = vsel %vm1734, %v1700, -1e+30
        %v1736 = vsel %vm1734, %v1701, -1e+30
        %v1737 = vsel %vm1734, %v1702, -1e+30
        %v1738 = vsel %vm1734, %v1703, -1e+30
        %v1739 = vsel %vm1734, %v1704, -1e+30
        %v1740 = vsel %vm1734, %v1705, -1e+30
        %v1741 = vsel %vm1734, %v1706, -1e+30
        %v1742 = vsel %vm1734, %v1707, -1e+30
        %v1743 = vsel %vm1734, %v1708, -1e+30
        %v1744 = vsel %vm1734, %v1709, -1e+30
        %v1745 = vsel %vm1734, %v1710, -1e+30
        %v1746 = vsel %vm1734, %v1711, -1e+30
        %v1747 = vsel %vm1734, %v1712, -1e+30
        %v1748 = vsel %vm1734, %v1713, -1e+30
        %v1749 = vsel %vm1734, %v1714, -1e+30
        %v1750 = vsel %vm1734, %v1715, -1e+30
        %v1751 = vsel %vm1734, %v1716, -1e+30
        %v1752 = vsel %vm1734, %v1717, -1e+30
        %v1753 = vsel %vm1734, %v1718, -1e+30
        %v1754 = vsel %vm1734, %v1719, -1e+30
        %v1755 = vsel %vm1734, %v1720, -1e+30
        %v1756 = vsel %vm1734, %v1721, -1e+30
        %v1757 = vsel %vm1734, %v1722, -1e+30
        %v1758 = vsel %vm1734, %v1723, -1e+30
        %v1759 = vsel %vm1734, %v1724, -1e+30
        %v1760 = vsel %vm1734, %v1725, -1e+30
        %v1761 = vsel %vm1734, %v1726, -1e+30
        %v1762 = vsel %vm1734, %v1727, -1e+30
        %v1763 = vsel %vm1734, %v1728, -1e+30
        %v1764 = vsel %vm1734, %v1729, -1e+30
        %v1765 = vsel %vm1734, %v1730, -1e+30
        %v1766 = vsel %vm1734, %v1731, -1e+30
        %1767 = vmax.xlane.f32.xlu0 %v1735
        %v1768 = vpop.xlane.xlu0 %1767
        %1769 = vmax.xlane.f32.xlu0 %v1736
        %v1770 = vpop.xlane.xlu0 %1769
        %1771 = vmax.xlane.f32.xlu0 %v1737
        %v1772 = vpop.xlane.xlu0 %1771
        %1773 = vmax.xlane.f32.xlu0 %v1738
        %v1774 = vpop.xlane.xlu0 %1773
        %1775 = vmax.xlane.f32.xlu0 %v1739
        %v1776 = vpop.xlane.xlu0 %1775
        %1777 = vmax.xlane.f32.xlu0 %v1740
        %v1778 = vpop.xlane.xlu0 %1777
        %1779 = vmax.xlane.f32.xlu0 %v1741
        %v1780 = vpop.xlane.xlu0 %1779
        %1781 = vmax.xlane.f32.xlu0 %v1742
        %v1782 = vpop.xlane.xlu0 %1781
        %1783 = vmax.xlane.f32.xlu0 %v1743
        %v1784 = vpop.xlane.xlu0 %1783
        %1785 = vmax.xlane.f32.xlu0 %v1744
        %v1786 = vpop.xlane.xlu0 %1785
        %1787 = vmax.xlane.f32.xlu0 %v1745
        %v1788 = vpop.xlane.xlu0 %1787
        %1789 = vmax.xlane.f32.xlu0 %v1746
        %v1790 = vpop.xlane.xlu0 %1789
        %1791 = vmax.xlane.f32.xlu0 %v1747
        %v1792 = vpop.xlane.xlu0 %1791
        %1793 = vmax.xlane.f32.xlu0 %v1748
        %v1794 = vpop.xlane.xlu0 %1793
        %1795 = vmax.xlane.f32.xlu0 %v1749
        %v1796 = vpop.xlane.xlu0 %1795
        %1797 = vmax.xlane.f32.xlu0 %v1750
        %v1798 = vpop.xlane.xlu0 %1797
        %1799 = vmax.xlane.f32.xlu0 %v1751
        %v1800 = vpop.xlane.xlu0 %1799
        %1801 = vmax.xlane.f32.xlu0 %v1752
        %v1802 = vpop.xlane.xlu0 %1801
        %1803 = vmax.xlane.f32.xlu0 %v1753
        %v1804 = vpop.xlane.xlu0 %1803
        %1805 = vmax.xlane.f32.xlu0 %v1754
        %v1806 = vpop.xlane.xlu0 %1805
        %1807 = vmax.xlane.f32.xlu0 %v1755
        %v1808 = vpop.xlane.xlu0 %1807
        %1809 = vmax.xlane.f32.xlu0 %v1756
        %v1810 = vpop.xlane.xlu0 %1809
        %1811 = vmax.xlane.f32.xlu0 %v1757
        %v1812 = vpop.xlane.xlu0 %1811
        %1813 = vmax.xlane.f32.xlu0 %v1758
        %v1814 = vpop.xlane.xlu0 %1813
        %1815 = vmax.xlane.f32.xlu0 %v1759
        %v1816 = vpop.xlane.xlu0 %1815
        %1817 = vmax.xlane.f32.xlu0 %v1760
        %v1818 = vpop.xlane.xlu0 %1817
        %1819 = vmax.xlane.f32.xlu0 %v1761
        %v1820 = vpop.xlane.xlu0 %1819
        %1821 = vmax.xlane.f32.xlu0 %v1762
        %v1822 = vpop.xlane.xlu0 %1821
        %1823 = vmax.xlane.f32.xlu0 %v1763
        %v1824 = vpop.xlane.xlu0 %1823
        %1825 = vmax.xlane.f32.xlu0 %v1764
        %v1826 = vpop.xlane.xlu0 %1825
        %1827 = vmax.xlane.f32.xlu0 %v1765
        %v1828 = vpop.xlane.xlu0 %1827
        %1829 = vmax.xlane.f32.xlu0 %v1766
        %v1830 = vpop.xlane.xlu0 %1829
        %v1831 = vsub.f32 %v1735, %v1768
        %v1832 = vsub.f32 %v1736, %v1770
        %v1833 = vsub.f32 %v1737, %v1772
        %v1834 = vsub.f32 %v1738, %v1774
        %v1835 = vsub.f32 %v1739, %v1776
        %v1836 = vsub.f32 %v1740, %v1778
        %v1837 = vsub.f32 %v1741, %v1780
        %v1838 = vsub.f32 %v1742, %v1782
        %v1839 = vsub.f32 %v1743, %v1784
        %v1840 = vsub.f32 %v1744, %v1786
        %v1841 = vsub.f32 %v1745, %v1788
        %v1842 = vsub.f32 %v1746, %v1790
        %v1843 = vsub.f32 %v1747, %v1792
        %v1844 = vsub.f32 %v1748, %v1794
        %v1845 = vsub.f32 %v1749, %v1796
        %v1846 = vsub.f32 %v1750, %v1798
        %v1847 = vsub.f32 %v1751, %v1800
        %v1848 = vsub.f32 %v1752, %v1802
        %v1849 = vsub.f32 %v1753, %v1804
        %v1850 = vsub.f32 %v1754, %v1806
        %v1851 = vsub.f32 %v1755, %v1808
        %v1852 = vsub.f32 %v1756, %v1810
        %v1853 = vsub.f32 %v1757, %v1812
        %v1854 = vsub.f32 %v1758, %v1814
        %v1855 = vsub.f32 %v1759, %v1816
        %v1856 = vsub.f32 %v1760, %v1818
        %v1857 = vsub.f32 %v1761, %v1820
        %v1858 = vsub.f32 %v1762, %v1822
        %v1859 = vsub.f32 %v1763, %v1824
        %v1860 = vsub.f32 %v1764, %v1826
        %v1861 = vsub.f32 %v1765, %v1828
        %v1862 = vsub.f32 %v1766, %v1830
        %v1863 = vmul.f32 %v1831, 1.442695
        %v1864 = vpow.pop %v1863
        %v1865 = vmul.f32 %v1832, 1.442695
        %v1866 = vpow.pop %v1865
        %v1867 = vmul.f32 %v1833, 1.442695
        %v1868 = vpow.pop %v1867
        %v1869 = vmul.f32 %v1834, 1.442695
        %v1870 = vpow.pop %v1869
        %v1871 = vmul.f32 %v1835, 1.442695
        %v1872 = vpow.pop %v1871
        %v1873 = vmul.f32 %v1836, 1.442695
        %v1874 = vpow.pop %v1873
        %v1875 = vmul.f32 %v1837, 1.442695
        %v1876 = vpow.pop %v1875
        %v1877 = vmul.f32 %v1838, 1.442695
        %v1878 = vpow.pop %v1877
        %v1879 = vmul.f32 %v1839, 1.442695
        %v1880 = vpow.pop %v1879
        %v1881 = vmul.f32 %v1840, 1.442695
        %v1882 = vpow.pop %v1881
        %v1883 = vmul.f32 %v1841, 1.442695
        %v1884 = vpow.pop %v1883
        %v1885 = vmul.f32 %v1842, 1.442695
        %v1886 = vpow.pop %v1885
        %v1887 = vmul.f32 %v1843, 1.442695
        %v1888 = vpow.pop %v1887
        %v1889 = vmul.f32 %v1844, 1.442695
        %v1890 = vpow.pop %v1889
        %v1891 = vmul.f32 %v1845, 1.442695
        %v1892 = vpow.pop %v1891
        %v1893 = vmul.f32 %v1846, 1.442695
        %v1894 = vpow.pop %v1893
        %v1895 = vmul.f32 %v1847, 1.442695
        %v1896 = vpow.pop %v1895
        %v1897 = vmul.f32 %v1848, 1.442695
        %v1898 = vpow.pop %v1897
        %v1899 = vmul.f32 %v1849, 1.442695
        %v1900 = vpow.pop %v1899
        %v1901 = vmul.f32 %v1850, 1.442695
        %v1902 = vpow.pop %v1901
        %v1903 = vmul.f32 %v1851, 1.442695
        %v1904 = vpow.pop %v1903
        %v1905 = vmul.f32 %v1852, 1.442695
        %v1906 = vpow.pop %v1905
        %v1907 = vmul.f32 %v1853, 1.442695
        %v1908 = vpow.pop %v1907
        %v1909 = vmul.f32 %v1854, 1.442695
        %v1910 = vpow.pop %v1909
        %v1911 = vmul.f32 %v1855, 1.442695
        %v1912 = vpow.pop %v1911
        %v1913 = vmul.f32 %v1856, 1.442695
        %v1914 = vpow.pop %v1913
        %v1915 = vmul.f32 %v1857, 1.442695
        %v1916 = vpow.pop %v1915
        %v1917 = vmul.f32 %v1858, 1.442695
        %v1918 = vpow.pop %v1917
        %v1919 = vmul.f32 %v1859, 1.442695
        %v1920 = vpow.pop %v1919
        %v1921 = vmul.f32 %v1860, 1.442695
        %v1922 = vpow.pop %v1921
        %v1923 = vmul.f32 %v1861, 1.442695
        %v1924 = vpow.pop %v1923
        %v1925 = vmul.f32 %v1862, 1.442695
        %v1926 = vpow.pop %v1925
        %1927 = vadd.xlane.f32.xlu0 %v1864
        %v1928 = vpop.xlane.xlu0 %1927
        %1929 = vadd.xlane.f32.xlu0 %v1866
        %v1930 = vpop.xlane.xlu0 %1929
        %1931 = vadd.xlane.f32.xlu0 %v1868
        %v1932 = vpop.xlane.xlu0 %1931
        %1933 = vadd.xlane.f32.xlu0 %v1870
        %v1934 = vpop.xlane.xlu0 %1933
        %1935 = vadd.xlane.f32.xlu0 %v1872
        %v1936 = vpop.xlane.xlu0 %1935
        %1937 = vadd.xlane.f32.xlu0 %v1874
        %v1938 = vpop.xlane.xlu0 %1937
        %1939 = vadd.xlane.f32.xlu0 %v1876
        %v1940 = vpop.xlane.xlu0 %1939
        %1941 = vadd.xlane.f32.xlu0 %v1878
        %v1942 = vpop.xlane.xlu0 %1941
        %1943 = vadd.xlane.f32.xlu0 %v1880
        %v1944 = vpop.xlane.xlu0 %1943
        %1945 = vadd.xlane.f32.xlu0 %v1882
        %v1946 = vpop.xlane.xlu0 %1945
        %1947 = vadd.xlane.f32.xlu0 %v1884
        %v1948 = vpop.xlane.xlu0 %1947
        %1949 = vadd.xlane.f32.xlu0 %v1886
        %v1950 = vpop.xlane.xlu0 %1949
        %1951 = vadd.xlane.f32.xlu0 %v1888
        %v1952 = vpop.xlane.xlu0 %1951
        %1953 = vadd.xlane.f32.xlu0 %v1890
        %v1954 = vpop.xlane.xlu0 %1953
        %1955 = vadd.xlane.f32.xlu0 %v1892
        %v1956 = vpop.xlane.xlu0 %1955
        %1957 = vadd.xlane.f32.xlu0 %v1894
        %v1958 = vpop.xlane.xlu0 %1957
        %1959 = vadd.xlane.f32.xlu0 %v1896
        %v1960 = vpop.xlane.xlu0 %1959
        %1961 = vadd.xlane.f32.xlu0 %v1898
        %v1962 = vpop.xlane.xlu0 %1961
        %1963 = vadd.xlane.f32.xlu0 %v1900
        %v1964 = vpop.xlane.xlu0 %1963
        %1965 = vadd.xlane.f32.xlu0 %v1902
        %v1966 = vpop.xlane.xlu0 %1965
        %1967 = vadd.xlane.f32.xlu0 %v1904
        %v1968 = vpop.xlane.xlu0 %1967
        %1969 = vadd.xlane.f32.xlu0 %v1906
        %v1970 = vpop.xlane.xlu0 %1969
        %1971 = vadd.xlane.f32.xlu0 %v1908
        %v1972 = vpop.xlane.xlu0 %1971
        %1973 = vadd.xlane.f32.xlu0 %v1910
        %v1974 = vpop.xlane.xlu0 %1973
        %1975 = vadd.xlane.f32.xlu0 %v1912
        %v1976 = vpop.xlane.xlu0 %1975
        %1977 = vadd.xlane.f32.xlu0 %v1914
        %v1978 = vpop.xlane.xlu0 %1977
        %1979 = vadd.xlane.f32.xlu0 %v1916
        %v1980 = vpop.xlane.xlu0 %1979
        %1981 = vadd.xlane.f32.xlu0 %v1918
        %v1982 = vpop.xlane.xlu0 %1981
        %1983 = vadd.xlane.f32.xlu0 %v1920
        %v1984 = vpop.xlane.xlu0 %1983
        %1985 = vadd.xlane.f32.xlu0 %v1922
        %v1986 = vpop.xlane.xlu0 %1985
        %1987 = vadd.xlane.f32.xlu0 %v1924
        %v1988 = vpop.xlane.xlu0 %1987
        %1989 = vadd.xlane.f32.xlu0 %v1926
        %v1990 = vpop.xlane.xlu0 %1989
        %v1991 = vlog2.pop %v1928
        %v1992 = vmul.f32 %v1991, 0.6931472
        %v1993 = vlog2.pop %v1930
        %v1994 = vmul.f32 %v1993, 0.6931472
        %v1995 = vlog2.pop %v1932
        %v1996 = vmul.f32 %v1995, 0.6931472
        %v1997 = vlog2.pop %v1934
        %v1998 = vmul.f32 %v1997, 0.6931472
        %v1999 = vlog2.pop %v1936
        %v2000 = vmul.f32 %v1999, 0.6931472
        %v2001 = vlog2.pop %v1938
        %v2002 = vmul.f32 %v2001, 0.6931472
        %v2003 = vlog2.pop %v1940
        %v2004 = vmul.f32 %v2003, 0.6931472
        %v2005 = vlog2.pop %v1942
        %v2006 = vmul.f32 %v2005, 0.6931472
        %v2007 = vlog2.pop %v1944
        %v2008 = vmul.f32 %v2007, 0.6931472
        %v2009 = vlog2.pop %v1946
        %v2010 = vmul.f32 %v2009, 0.6931472
        %v2011 = vlog2.pop %v1948
        %v2012 = vmul.f32 %v2011, 0.6931472
        %v2013 = vlog2.pop %v1950
        %v2014 = vmul.f32 %v2013, 0.6931472
        %v2015 = vlog2.pop %v1952
        %v2016 = vmul.f32 %v2015, 0.6931472
        %v2017 = vlog2.pop %v1954
        %v2018 = vmul.f32 %v2017, 0.6931472
        %v2019 = vlog2.pop %v1956
        %v2020 = vmul.f32 %v2019, 0.6931472
        %v2021 = vlog2.pop %v1958
        %v2022 = vmul.f32 %v2021, 0.6931472
        %v2023 = vlog2.pop %v1960
        %v2024 = vmul.f32 %v2023, 0.6931472
        %v2025 = vlog2.pop %v1962
        %v2026 = vmul.f32 %v2025, 0.6931472
        %v2027 = vlog2.pop %v1964
        %v2028 = vmul.f32 %v2027, 0.6931472
        %v2029 = vlog2.pop %v1966
        %v2030 = vmul.f32 %v2029, 0.6931472
        %v2031 = vlog2.pop %v1968
        %v2032 = vmul.f32 %v2031, 0.6931472
        %v2033 = vlog2.pop %v1970
        %v2034 = vmul.f32 %v2033, 0.6931472
        %v2035 = vlog2.pop %v1972
        %v2036 = vmul.f32 %v2035, 0.6931472
        %v2037 = vlog2.pop %v1974
        %v2038 = vmul.f32 %v2037, 0.6931472
        %v2039 = vlog2.pop %v1976
        %v2040 = vmul.f32 %v2039, 0.6931472
        %v2041 = vlog2.pop %v1978
        %v2042 = vmul.f32 %v2041, 0.6931472
        %v2043 = vlog2.pop %v1980
        %v2044 = vmul.f32 %v2043, 0.6931472
        %v2045 = vlog2.pop %v1982
        %v2046 = vmul.f32 %v2045, 0.6931472
        %v2047 = vlog2.pop %v1984
        %v2048 = vmul.f32 %v2047, 0.6931472
        %v2049 = vlog2.pop %v1986
        %v2050 = vmul.f32 %v2049, 0.6931472
        %v2051 = vlog2.pop %v1988
        %v2052 = vmul.f32 %v2051, 0.6931472
        %v2053 = vlog2.pop %v1990
        %v2054 = vmul.f32 %v2053, 0.6931472
        %v2055 = vsub.f32 %v1831, %v1992
        %v2056 = vsub.f32 %v1832, %v1994
        %v2057 = vsub.f32 %v1833, %v1996
        %v2058 = vsub.f32 %v1834, %v1998
        %v2059 = vsub.f32 %v1835, %v2000
        %v2060 = vsub.f32 %v1836, %v2002
        %v2061 = vsub.f32 %v1837, %v2004
        %v2062 = vsub.f32 %v1838, %v2006
        %v2063 = vsub.f32 %v1839, %v2008
        %v2064 = vsub.f32 %v1840, %v2010
        %v2065 = vsub.f32 %v1841, %v2012
        %v2066 = vsub.f32 %v1842, %v2014
        %v2067 = vsub.f32 %v1843, %v2016
        %v2068 = vsub.f32 %v1844, %v2018
        %v2069 = vsub.f32 %v1845, %v2020
        %v2070 = vsub.f32 %v1846, %v2022
        %v2071 = vsub.f32 %v1847, %v2024
        %v2072 = vsub.f32 %v1848, %v2026
        %v2073 = vsub.f32 %v1849, %v2028
        %v2074 = vsub.f32 %v1850, %v2030
        %v2075 = vsub.f32 %v1851, %v2032
        %v2076 = vsub.f32 %v1852, %v2034
        %v2077 = vsub.f32 %v1853, %v2036
        %v2078 = vsub.f32 %v1854, %v2038
        %v2079 = vsub.f32 %v1855, %v2040
        %v2080 = vsub.f32 %v1856, %v2042
        %v2081 = vsub.f32 %v1857, %v2044
        %v2082 = vsub.f32 %v1858, %v2046
        %v2083 = vsub.f32 %v1859, %v2048
        %v2084 = vsub.f32 %v1860, %v2050
        %v2085 = vsub.f32 %v1861, %v2052
        %v2086 = vsub.f32 %v1862, %v2054
        %v2087 = vsel %vm1734, %v2055, 0.0
        %v2088 = vsel %vm1734, %v2056, 0.0
        %v2089 = vsel %vm1734, %v2057, 0.0
        %v2090 = vsel %vm1734, %v2058, 0.0
        %v2091 = vsel %vm1734, %v2059, 0.0
        %v2092 = vsel %vm1734, %v2060, 0.0
        %v2093 = vsel %vm1734, %v2061, 0.0
        %v2094 = vsel %vm1734, %v2062, 0.0
        %v2095 = vsel %vm1734, %v2063, 0.0
        %v2096 = vsel %vm1734, %v2064, 0.0
        %v2097 = vsel %vm1734, %v2065, 0.0
        %v2098 = vsel %vm1734, %v2066, 0.0
        %v2099 = vsel %vm1734, %v2067, 0.0
        %v2100 = vsel %vm1734, %v2068, 0.0
        %v2101 = vsel %vm1734, %v2069, 0.0
        %v2102 = vsel %vm1734, %v2070, 0.0
        %v2103 = vsel %vm1734, %v2071, 0.0
        %v2104 = vsel %vm1734, %v2072, 0.0
        %v2105 = vsel %vm1734, %v2073, 0.0
        %v2106 = vsel %vm1734, %v2074, 0.0
        %v2107 = vsel %vm1734, %v2075, 0.0
        %v2108 = vsel %vm1734, %v2076, 0.0
        %v2109 = vsel %vm1734, %v2077, 0.0
        %v2110 = vsel %vm1734, %v2078, 0.0
        %v2111 = vsel %vm1734, %v2079, 0.0
        %v2112 = vsel %vm1734, %v2080, 0.0
        %v2113 = vsel %vm1734, %v2081, 0.0
        %v2114 = vsel %vm1734, %v2082, 0.0
        %v2115 = vsel %vm1734, %v2083, 0.0
        %v2116 = vsel %vm1734, %v2084, 0.0
        %v2117 = vsel %vm1734, %v2085, 0.0
        %v2118 = vsel %vm1734, %v2086, 0.0
        %2119 = vst [vmem:[%s298] sm:$0xff] %v2087
        %2120 = vst [vmem:[%s298 + $0x8] sm:$0xff] %v2088
        %2121 = vst [vmem:[%s298 + $0x10] sm:$0xff] %v2089
        %2122 = vst [vmem:[%s298 + $0x18] sm:$0xff] %v2090
        %2123 = vst [vmem:[%s298 + $0x20] sm:$0xff] %v2091
        %2124 = vst [vmem:[%s298 + $0x28] sm:$0xff] %v2092
        %2125 = vst [vmem:[%s298 + $0x30] sm:$0xff] %v2093
        %2126 = vst [vmem:[%s298 + $0x38] sm:$0xff] %v2094
        %2127 = vst [vmem:[%s298 + $0x40] sm:$0xff] %v2095
        %2128 = vst [vmem:[%s298 + $0x48] sm:$0xff] %v2096
        %2129 = vst [vmem:[%s298 + $0x50] sm:$0xff] %v2097
        %2130 = vst [vmem:[%s298 + $0x58] sm:$0xff] %v2098
        %2131 = vst [vmem:[%s298 + $0x60] sm:$0xff] %v2099
        %2132 = vst [vmem:[%s298 + $0x68] sm:$0xff] %v2100
        %2133 = vst [vmem:[%s298 + $0x70] sm:$0xff] %v2101
        %2134 = vst [vmem:[%s298 + $0x78] sm:$0xff] %v2102
        %2135 = vst [vmem:[%s298 + $0x80] sm:$0xff] %v2103
        %2136 = vst [vmem:[%s298 + $0x88] sm:$0xff] %v2104
        %2137 = vst [vmem:[%s298 + $0x90] sm:$0xff] %v2105
        %2138 = vst [vmem:[%s298 + $0x98] sm:$0xff] %v2106
        %2139 = vst [vmem:[%s298 + $0xa0] sm:$0xff] %v2107
        %2140 = vst [vmem:[%s298 + $0xa8] sm:$0xff] %v2108
        %2141 = vst [vmem:[%s298 + $0xb0] sm:$0xff] %v2109
        %2142 = vst [vmem:[%s298 + $0xb8] sm:$0xff] %v2110
        %2143 = vst [vmem:[%s298 + $0xc0] sm:$0xff] %v2111
        %2144 = vst [vmem:[%s298 + $0xc8] sm:$0xff] %v2112
        %2145 = vst [vmem:[%s298 + $0xd0] sm:$0xff] %v2113
        %2146 = vst [vmem:[%s298 + $0xd8] sm:$0xff] %v2114
        %2147 = vst [vmem:[%s298 + $0xe0] sm:$0xff] %v2115
        %2148 = vst [vmem:[%s298 + $0xe8] sm:$0xff] %v2116
        %2149 = vst [vmem:[%s298 + $0xf0] sm:$0xff] %v2117
        %2150 = vst [vmem:[%s298 + $0xf8] sm:$0xff] %v2118
      $region44: #{gcn1_forward.5} parent=35 // pred_fallthru
        _
      %s2151 = smul.u32 32, %s20
      %p2152 = scmp.lt.s32.totalorder %s2151, 63
      %s2153 = scalar_select %p2152, %s2151, 63
      %p2154 = scmp.lt.s32.totalorder %s21, 0
      %s2155 = scalar_select %p2154, %s21, 0
      %s2156 = sadd.s32 %s2155, %s2153
      %s2157 = smul.addr %s2156, 8
      %s2158 = scalar_lea.vmem %s4, %s2157
      // Predicated region
      $region45: #{gcn1_forward.5} parent=35 // pred_check
        %p2159 = pneg %p160
      $region46: #{gcn1_forward.5} parent=35 // pred_check_branch
        %2161 = sbr.rel (%p2159) target = $region48
      $region47: #{gcn1_forward.5} parent=35 // pred_region
        %s2162 = smul.u32 32, %s20
      $region48: #{gcn1_forward.5} parent=35 // pred_fallthru
        _
    $region36: #{gcn1_forward.5} parent=5 // pred_fallthru
      _
    %p2163 = scmp.le.s32.totalorder 2, %s10
    // Predicated region
    $region49: #{gcn1_forward.5} parent=5 // pred_check
      %p2164 = pneg %p2163
    $region50: #{gcn1_forward.5} parent=5 // pred_check_branch
      %2166 = sbr.rel (%p2164) target = $region52
    $region51: #{gcn1_forward.5} parent=5 // pred_region
      %s2167 = ssub.s32 %s10, 2
      // Predicated region
      $region53: #{gcn1_forward.5} parent=51 // pred_check
        %p2168 = pneg %p166
      $region54: #{gcn1_forward.5} parent=51 // pred_check_branch
        %2170 = sbr.rel (%p2168) target = $region56
      $region55: #{gcn1_forward.5} parent=51 // pred_region
        %s2171 = smul.u32 32, %s23
        %p2172 = scmp.lt.s32.totalorder %s2171, 63
        %s2173 = scalar_select %p2172, %s2171, 63
        %p2174 = scmp.lt.s32.totalorder %s24, 0
        %s2175 = scalar_select %p2174, %s24, 0
        %s2176 = sadd.s32 %s2175, %s2173
        %s2177 = smul.addr %s2176, 8
        %s2178 = scalar_lea.vmem %s4, %s2177
      $region56: #{gcn1_forward.5} parent=51 // pred_fallthru
        _
    $region52: #{gcn1_forward.5} parent=5 // pred_fallthru
      _
  $region6: #{gcn1_forward.5} parent=0 // loop_footer
    %s14 = sadd.s32 1, %s10
  $region7: #{gcn1_forward.5} parent=0 // loop_footer_branch
    %9 = sbr.rel target = $region3
  $region8: #{gcn1_forward.5} parent=0 // loop_exit
    _

</llo_original>
